<compile_context>
chip_gen: v6e
topology: v6e:2x2x1
jax: 0.10.0
libtpu: 0.0.40
codegen_flags: <defaults>
</compile_context>

<pallas_src>
import functools

import jax
import jax.numpy as jnp
from jax.experimental import pallas as pl
from jax.experimental.pallas import tpu as pltpu


def _bilstm_kernel(x_ref, wih_ref, b_ref, whh_f_ref, whh_b_ref, wlin_ref, blin_ref,
                   out_ref, *, N, H):
    # ---- Hot path 1: single fused input->gates matmul for BOTH directions (MXU, bf16) ----
    # Column layout of wih/b: [ fwd gates (4H) | bwd gates (4H) ], gate order [i|f|g|o].
    x_bf = x_ref[...].astype(jnp.bfloat16)                                   # (N, D)
    xg = jnp.dot(x_bf, wih_ref[...],
                 preferred_element_type=jnp.float32) + b_ref[...]            # (N, 8H) f32

    wlin = wlin_ref[...]                                                     # (1, 2H) f32
    wlin_f = wlin[:, 0:H]
    wlin_b = wlin[:, H:2 * H]

    row_idx = jax.lax.broadcasted_iota(jnp.int32, (N, 1), 0)                 # (N, 1)

    def cell(gate_row, h, c, whh_ref_):
        # One (1,H)@(H,4H) bf16 dot per direction; weight read from VMEM at the dot
        # (hoisting both direction weights would need the whole vreg file -> spills).
        rec = jnp.dot(h.astype(jnp.bfloat16), whh_ref_[...],
                      preferred_element_type=jnp.float32)                    # (1, 4H)
        g = gate_row + rec
        i_g = jax.nn.sigmoid(g[:, 0 * H:1 * H])
        f_g = jax.nn.sigmoid(g[:, 1 * H:2 * H])
        g_g = jnp.tanh(g[:, 2 * H:3 * H])
        o_g = jax.nn.sigmoid(g[:, 3 * H:4 * H])
        c = f_g * c + i_g * g_g
        h = o_g * jnp.tanh(c)
        return h, c

    h_f = jnp.zeros((1, H), jnp.float32)
    c_f = jnp.zeros((1, H), jnp.float32)
    h_b = jnp.zeros((1, H), jnp.float32)
    c_b = jnp.zeros((1, H), jnp.float32)
    logits = jnp.zeros((N, 1), jnp.float32)

    # ---- Hot path 2: serial recurrence, fully unrolled (N static & small) ----
    for t in range(N):
        s = N - 1 - t                                  # time index for the backward cell
        h_f, c_f = cell(xg[t:t + 1, 0:4 * H], h_f, c_f, whh_f_ref)
        h_b, c_b = cell(xg[s:s + 1, 4 * H:8 * H], h_b, c_b, whh_b_ref)
        # Linear(2H->1) fused into the loop: per-step lane reduce (XLU) + masked add.
        lf = jnp.sum(h_f * wlin_f, axis=-1, keepdims=True)                   # (1, 1)
        lb = jnp.sum(h_b * wlin_b, axis=-1, keepdims=True)                   # (1, 1)
        logits = logits + jnp.where(row_idx == t, lf, 0.0) \
                        + jnp.where(row_idx == s, lb, 0.0)

    out_ref[...] = jax.nn.sigmoid(logits + blin_ref[...])                    # (N, 1)


# ------------------------- host-side weight repacking -------------------------
def _pack_params(params):
    wih = jnp.concatenate([params["wih_f"], params["wih_b"]],
                          axis=-1).astype(jnp.bfloat16)                      # (D, 8H)
    b = jnp.concatenate([params["b_f"], params["b_b"]], axis=-1)             # (1, 8H) f32
    return {
        "wih": wih, "b": b,
        "whh_f": params["whh_f"].astype(jnp.bfloat16),                       # (H, 4H)
        "whh_b": params["whh_b"].astype(jnp.bfloat16),                       # (H, 4H)
        "wlin_row": params["wlin"].T,                                        # (1, 2H) f32
        "blin": params["blin"],                                              # (1, 1)  f32
    }


def bilstm_forward(x, params):
    """x: (N, D) float32. Returns (N, 1) float32 sigmoid predictions."""
    N, D = x.shape
    H = params["whh_f"].shape[0]
    packed = _pack_params(params)
    kernel = functools.partial(_bilstm_kernel, N=N, H=H)
    vmem_spec = pl.BlockSpec(memory_space=pltpu.MemorySpace.VMEM)
    return pl.pallas_call(
        kernel,
        out_shape=jax.ShapeDtypeStruct((N, 1), jnp.float32),
        in_specs=[vmem_spec] * 7,
        out_specs=vmem_spec,
    )(x, packed["wih"], packed["b"], packed["whh_f"], packed["whh_b"],
      packed["wlin_row"], packed["blin"])


# ------------------------- pure-JAX reference -------------------------
def _lstm_dir_ref(xg, whh, H, dot_dtype):
    whh_c = whh.astype(dot_dtype)

    def step(carry, g_x):
        h, c = carry
        gates = g_x + jnp.dot(h.astype(dot_dtype), whh_c,
                              preferred_element_type=jnp.float32)
        i = jax.nn.sigmoid(gates[0 * H:1 * H])
        f = jax.nn.sigmoid(gates[1 * H:2 * H])
        g = jnp.tanh(gates[2 * H:3 * H])
        o = jax.nn.sigmoid(gates[3 * H:4 * H])
        c = f * c + i * g
        h = o * jnp.tanh(c)
        return (h, c), h

    h0 = jnp.zeros((H,), jnp.float32)
    c0 = jnp.zeros((H,), jnp.float32)
    _, hs = jax.lax.scan(step, (h0, c0), xg)
    return hs


def bilstm_reference(x, params, dot_dtype=jnp.float32):
    H = params["whh_f"].shape[0]
    xc = x.astype(dot_dtype)
    xg_f = jnp.dot(xc, params["wih_f"].astype(dot_dtype),
                   preferred_element_type=jnp.float32) + params["b_f"][0]
    xg_b = jnp.dot(xc, params["wih_b"].astype(dot_dtype),
                   preferred_element_type=jnp.float32) + params["b_b"][0]
    hf = _lstm_dir_ref(xg_f, params["whh_f"], H, dot_dtype)
    hb = _lstm_dir_ref(xg_b[::-1], params["whh_b"], H, dot_dtype)[::-1]
    lstm_out = jnp.concatenate([hf, hb], axis=-1)
    return jax.nn.sigmoid(lstm_out @ params["wlin"] + params["blin"])


# ------------------------- parameter init -------------------------
def init_params(key, D, H, out_size=1):
    ks = jax.random.split(key, 8)
    k = 1.0 / jnp.sqrt(H)
    u = lambda kk, shape: jax.random.uniform(kk, shape, jnp.float32, -k, k)
    return {
        # pre-transposed so matmuls are x @ W; gate order [i|f|g|o] along last dim
        "wih_f": u(ks[0], (D, 4 * H)),
        "whh_f": u(ks[1], (H, 4 * H)),
        "b_f":   u(ks[2], (1, 4 * H)),   # bias_ih + bias_hh combined (pre-summed)
        "wih_b": u(ks[3], (D, 4 * H)),
        "whh_b": u(ks[4], (H, 4 * H)),
        "b_b":   u(ks[5], (1, 4 * H)),
        "wlin":  u(ks[6], (2 * H, out_size)),
        "blin":  u(ks[7], (1, out_size)),
    }


if __name__ == "__main__":
    # seq_len (== len(input_x)), input_size, hidden_layer_size
    # H, D kept at multiples of 128 for lane-aligned gate slices.
    N, D, H = 8, 128, 128
    key = jax.random.PRNGKey(0)
    kx, kp = jax.random.split(key)
    x = jax.random.normal(kx, (N, D), jnp.float32)
    params = init_params(kp, D, H)

    out = bilstm_forward(x, params)
    out = jax.block_until_ready(out)
    assert out.shape == (N, 1), out.shape

    # Matched-precision reference (same bf16 weight/activation rounding at the dots):
    ref_bf16 = bilstm_reference(x, params, dot_dtype=jnp.bfloat16)
    err_bf16 = float(jnp.max(jnp.abs(out - ref_bf16)))
    assert jnp.allclose(out, ref_bf16, atol=1e-3, rtol=0), err_bf16

    # Full-f32 reference (original module semantics); bf16 weights introduce only tiny error:
    ref_f32 = bilstm_reference(x, params, dot_dtype=jnp.float32)
    err_f32 = float(jnp.max(jnp.abs(out - ref_f32)))
    assert jnp.allclose(out, ref_f32, atol=2e-2, rtol=0), err_f32

    print("KERNEL_OK")
</pallas_src>

<mosaic_0001>
module attributes {stable_mosaic.version = 11 : i64} {
  func.func @_bilstm_kernel(%arg0: memref<8x128xf32, #tpu.memory_space<vmem>>, %arg1: memref<128x1024xbf16, #tpu.memory_space<vmem>>, %arg2: memref<1x1024xf32, #tpu.memory_space<vmem>>, %arg3: memref<128x512xbf16, #tpu.memory_space<vmem>>, %arg4: memref<128x512xbf16, #tpu.memory_space<vmem>>, %arg5: memref<1x256xf32, #tpu.memory_space<vmem>>, %arg6: memref<1x1xf32, #tpu.memory_space<vmem>>, %arg7: memref<8x1xf32, #tpu.memory_space<vmem>>) attributes {dimension_semantics = [], scalar_prefetch = 0 : i64, scratch_operands = 0 : i64, tpu.core_type = #tpu.core_type<tc>} {
    %c0 = arith.constant 0 : index
    %c0_0 = arith.constant 0 : index
    %0 = vector.load %arg0[%c0, %c0_0] : memref<8x128xf32, #tpu.memory_space<vmem>>, vector<8x128xf32>
    %1 = arith.truncf %0 : vector<8x128xf32> to vector<8x128xbf16>
    %c0_1 = arith.constant 0 : index
    %c0_2 = arith.constant 0 : index
    %2 = vector.load %arg1[%c0_1, %c0_2] : memref<128x1024xbf16, #tpu.memory_space<vmem>>, vector<128x1024xbf16>
    %cst = arith.constant dense<0.000000e+00> : vector<8x1024xf32>
    %3 = tpu.matmul %1, %2, %cst {dimension_numbers = #tpu.dot_dimension_numbers<[1], [0], [0], [1], [0, 0, 1, 1], [], []>} : vector<8x128xbf16>, vector<128x1024xbf16>, vector<8x1024xf32> -> vector<8x1024xf32>
    %c0_3 = arith.constant 0 : index
    %c0_4 = arith.constant 0 : index
    %4 = vector.load %arg2[%c0_3, %c0_4] : memref<1x1024xf32, #tpu.memory_space<vmem>>, vector<1x1024xf32>
    %5 = vector.broadcast %4 : vector<1x1024xf32> to vector<8x1024xf32>
    %6 = arith.addf %3, %5 : vector<8x1024xf32>
    %c0_5 = arith.constant 0 : index
    %c0_6 = arith.constant 0 : index
    %7 = vector.load %arg5[%c0_5, %c0_6] : memref<1x256xf32, #tpu.memory_space<vmem>>, vector<1x256xf32>
    %8 = vector.extract_strided_slice %7 {offsets = [0, 0], sizes = [1, 128], strides = [1, 1]} : vector<1x256xf32> to vector<1x128xf32>
    %9 = vector.extract_strided_slice %7 {offsets = [0, 128], sizes = [1, 128], strides = [1, 1]} : vector<1x256xf32> to vector<1x128xf32>
    %10 = tpu.iota {dimensions = array<i32: 0>} : vector<8x1xi32>
    %cst_7 = arith.constant 0.000000e+00 : f32
    %11 = vector.broadcast %cst_7 : f32 to vector<1x128xf32>
    %cst_8 = arith.constant 0.000000e+00 : f32
    %12 = vector.broadcast %cst_8 : f32 to vector<1x128xf32>
    %cst_9 = arith.constant 0.000000e+00 : f32
    %13 = vector.broadcast %cst_9 : f32 to vector<1x128xf32>
    %cst_10 = arith.constant 0.000000e+00 : f32
    %14 = vector.broadcast %cst_10 : f32 to vector<1x128xf32>
    %cst_11 = arith.constant 0.000000e+00 : f32
    %15 = vector.broadcast %cst_11 : f32 to vector<8x1xf32>
    %16 = vector.extract_strided_slice %6 {offsets = [0, 0], sizes = [1, 512], strides = [1, 1]} : vector<8x1024xf32> to vector<1x512xf32>
    %17 = arith.truncf %11 : vector<1x128xf32> to vector<1x128xbf16>
    %c0_12 = arith.constant 0 : index
    %c0_13 = arith.constant 0 : index
    %18 = vector.load %arg3[%c0_12, %c0_13] : memref<128x512xbf16, #tpu.memory_space<vmem>>, vector<128x512xbf16>
    %cst_14 = arith.constant dense<0.000000e+00> : vector<1x512xf32>
    %19 = tpu.matmul %17, %18, %cst_14 {dimension_numbers = #tpu.dot_dimension_numbers<[1], [0], [0], [1], [0, 0, 1, 1], [], []>} : vector<1x128xbf16>, vector<128x512xbf16>, vector<1x512xf32> -> vector<1x512xf32>
    %20 = arith.addf %16, %19 : vector<1x512xf32>
    %21 = vector.extract_strided_slice %20 {offsets = [0, 0], sizes = [1, 128], strides = [1, 1]} : vector<1x512xf32> to vector<1x128xf32>
    %22 = arith.negf %21 : vector<1x128xf32>
    %23 = math.exp %22 : vector<1x128xf32>
    %cst_15 = arith.constant 1.000000e+00 : f32
    %24 = vector.broadcast %cst_15 : f32 to vector<1x128xf32>
    %25 = arith.addf %24, %23 : vector<1x128xf32>
    %26 = arith.divf %24, %25 : vector<1x128xf32>
    %27 = vector.extract_strided_slice %20 {offsets = [0, 128], sizes = [1, 128], strides = [1, 1]} : vector<1x512xf32> to vector<1x128xf32>
    %28 = arith.negf %27 : vector<1x128xf32>
    %29 = math.exp %28 : vector<1x128xf32>
    %cst_16 = arith.constant 1.000000e+00 : f32
    %30 = vector.broadcast %cst_16 : f32 to vector<1x128xf32>
    %31 = arith.addf %30, %29 : vector<1x128xf32>
    %32 = arith.divf %30, %31 : vector<1x128xf32>
    %33 = vector.extract_strided_slice %20 {offsets = [0, 256], sizes = [1, 128], strides = [1, 1]} : vector<1x512xf32> to vector<1x128xf32>
    %34 = math.tanh %33 : vector<1x128xf32>
    %35 = vector.extract_strided_slice %20 {offsets = [0, 384], sizes = [1, 128], strides = [1, 1]} : vector<1x512xf32> to vector<1x128xf32>
    %36 = arith.negf %35 : vector<1x128xf32>
    %37 = math.exp %36 : vector<1x128xf32>
    %cst_17 = arith.constant 1.000000e+00 : f32
    %38 = vector.broadcast %cst_17 : f32 to vector<1x128xf32>
    %39 = arith.addf %38, %37 : vector<1x128xf32>
    %40 = arith.divf %38, %39 : vector<1x128xf32>
    %41 = arith.mulf %32, %12 : vector<1x128xf32>
    %42 = arith.mulf %26, %34 : vector<1x128xf32>
    %43 = arith.addf %41, %42 : vector<1x128xf32>
    %44 = math.tanh %43 : vector<1x128xf32>
    %45 = arith.mulf %40, %44 : vector<1x128xf32>
    %46 = vector.extract_strided_slice %6 {offsets = [7, 512], sizes = [1, 512], strides = [1, 1]} : vector<8x1024xf32> to vector<1x512xf32>
    %47 = arith.truncf %13 : vector<1x128xf32> to vector<1x128xbf16>
    %c0_18 = arith.constant 0 : index
    %c0_19 = arith.constant 0 : index
    %48 = vector.load %arg4[%c0_18, %c0_19] : memref<128x512xbf16, #tpu.memory_space<vmem>>, vector<128x512xbf16>
    %cst_20 = arith.constant dense<0.000000e+00> : vector<1x512xf32>
    %49 = tpu.matmul %47, %48, %cst_20 {dimension_numbers = #tpu.dot_dimension_numbers<[1], [0], [0], [1], [0, 0, 1, 1], [], []>} : vector<1x128xbf16>, vector<128x512xbf16>, vector<1x512xf32> -> vector<1x512xf32>
    %50 = arith.addf %46, %49 : vector<1x512xf32>
    %51 = vector.extract_strided_slice %50 {offsets = [0, 0], sizes = [1, 128], strides = [1, 1]} : vector<1x512xf32> to vector<1x128xf32>
    %52 = arith.negf %51 : vector<1x128xf32>
    %53 = math.exp %52 : vector<1x128xf32>
    %cst_21 = arith.constant 1.000000e+00 : f32
    %54 = vector.broadcast %cst_21 : f32 to vector<1x128xf32>
    %55 = arith.addf %54, %53 : vector<1x128xf32>
    %56 = arith.divf %54, %55 : vector<1x128xf32>
    %57 = vector.extract_strided_slice %50 {offsets = [0, 128], sizes = [1, 128], strides = [1, 1]} : vector<1x512xf32> to vector<1x128xf32>
    %58 = arith.negf %57 : vector<1x128xf32>
    %59 = math.exp %58 : vector<1x128xf32>
    %cst_22 = arith.constant 1.000000e+00 : f32
    %60 = vector.broadcast %cst_22 : f32 to vector<1x128xf32>
    %61 = arith.addf %60, %59 : vector<1x128xf32>
    %62 = arith.divf %60, %61 : vector<1x128xf32>
    %63 = vector.extract_strided_slice %50 {offsets = [0, 256], sizes = [1, 128], strides = [1, 1]} : vector<1x512xf32> to vector<1x128xf32>
    %64 = math.tanh %63 : vector<1x128xf32>
    %65 = vector.extract_strided_slice %50 {offsets = [0, 384], sizes = [1, 128], strides = [1, 1]} : vector<1x512xf32> to vector<1x128xf32>
    %66 = arith.negf %65 : vector<1x128xf32>
    %67 = math.exp %66 : vector<1x128xf32>
    %cst_23 = arith.constant 1.000000e+00 : f32
    %68 = vector.broadcast %cst_23 : f32 to vector<1x128xf32>
    %69 = arith.addf %68, %67 : vector<1x128xf32>
    %70 = arith.divf %68, %69 : vector<1x128xf32>
    %71 = arith.mulf %62, %14 : vector<1x128xf32>
    %72 = arith.mulf %56, %64 : vector<1x128xf32>
    %73 = arith.addf %71, %72 : vector<1x128xf32>
    %74 = math.tanh %73 : vector<1x128xf32>
    %75 = arith.mulf %70, %74 : vector<1x128xf32>
    %76 = arith.mulf %45, %8 : vector<1x128xf32>
    %cst_24 = arith.constant dense<0.000000e+00> : vector<1xf32>
    %77 = vector.multi_reduction <add>, %76, %cst_24 [1] : vector<1x128xf32> to vector<1xf32>
    %78 = vector.shape_cast %77 : vector<1xf32> to vector<1x1xf32>
    %79 = arith.mulf %75, %9 : vector<1x128xf32>
    %cst_25 = arith.constant dense<0.000000e+00> : vector<1xf32>
    %80 = vector.multi_reduction <add>, %79, %cst_25 [1] : vector<1x128xf32> to vector<1xf32>
    %81 = vector.shape_cast %80 : vector<1xf32> to vector<1x1xf32>
    %c0_i32 = arith.constant 0 : i32
    %82 = vector.broadcast %c0_i32 : i32 to vector<8x1xi32>
    %83 = arith.cmpi eq, %10, %82 : vector<8x1xi32>
    %cst_26 = arith.constant 0.000000e+00 : f32
    %84 = vector.shape_cast %78 : vector<1x1xf32> to vector<1x1xf32>
    %85 = vector.broadcast %84 : vector<1x1xf32> to vector<8x1xf32>
    %86 = vector.broadcast %cst_26 : f32 to vector<8x1xf32>
    %87 = arith.select %83, %85, %86 : vector<8x1xi1>, vector<8x1xf32>
    %88 = arith.addf %15, %87 : vector<8x1xf32>
    %c7_i32 = arith.constant 7 : i32
    %89 = vector.broadcast %c7_i32 : i32 to vector<8x1xi32>
    %90 = arith.cmpi eq, %10, %89 : vector<8x1xi32>
    %cst_27 = arith.constant 0.000000e+00 : f32
    %91 = vector.shape_cast %81 : vector<1x1xf32> to vector<1x1xf32>
    %92 = vector.broadcast %91 : vector<1x1xf32> to vector<8x1xf32>
    %93 = vector.broadcast %cst_27 : f32 to vector<8x1xf32>
    %94 = arith.select %90, %92, %93 : vector<8x1xi1>, vector<8x1xf32>
    %95 = arith.addf %88, %94 : vector<8x1xf32>
    %96 = vector.extract_strided_slice %6 {offsets = [1, 0], sizes = [1, 512], strides = [1, 1]} : vector<8x1024xf32> to vector<1x512xf32>
    %97 = arith.truncf %45 : vector<1x128xf32> to vector<1x128xbf16>
    %c0_28 = arith.constant 0 : index
    %c0_29 = arith.constant 0 : index
    %98 = vector.load %arg3[%c0_28, %c0_29] : memref<128x512xbf16, #tpu.memory_space<vmem>>, vector<128x512xbf16>
    %cst_30 = arith.constant dense<0.000000e+00> : vector<1x512xf32>
    %99 = tpu.matmul %97, %98, %cst_30 {dimension_numbers = #tpu.dot_dimension_numbers<[1], [0], [0], [1], [0, 0, 1, 1], [], []>} : vector<1x128xbf16>, vector<128x512xbf16>, vector<1x512xf32> -> vector<1x512xf32>
    %100 = arith.addf %96, %99 : vector<1x512xf32>
    %101 = vector.extract_strided_slice %100 {offsets = [0, 0], sizes = [1, 128], strides = [1, 1]} : vector<1x512xf32> to vector<1x128xf32>
    %102 = arith.negf %101 : vector<1x128xf32>
    %103 = math.exp %102 : vector<1x128xf32>
    %cst_31 = arith.constant 1.000000e+00 : f32
    %104 = vector.broadcast %cst_31 : f32 to vector<1x128xf32>
    %105 = arith.addf %104, %103 : vector<1x128xf32>
    %106 = arith.divf %104, %105 : vector<1x128xf32>
    %107 = vector.extract_strided_slice %100 {offsets = [0, 128], sizes = [1, 128], strides = [1, 1]} : vector<1x512xf32> to vector<1x128xf32>
    %108 = arith.negf %107 : vector<1x128xf32>
    %109 = math.exp %108 : vector<1x128xf32>
    %cst_32 = arith.constant 1.000000e+00 : f32
    %110 = vector.broadcast %cst_32 : f32 to vector<1x128xf32>
    %111 = arith.addf %110, %109 : vector<1x128xf32>
    %112 = arith.divf %110, %111 : vector<1x128xf32>
    %113 = vector.extract_strided_slice %100 {offsets = [0, 256], sizes = [1, 128], strides = [1, 1]} : vector<1x512xf32> to vector<1x128xf32>
    %114 = math.tanh %113 : vector<1x128xf32>
    %115 = vector.extract_strided_slice %100 {offsets = [0, 384], sizes = [1, 128], strides = [1, 1]} : vector<1x512xf32> to vector<1x128xf32>
    %116 = arith.negf %115 : vector<1x128xf32>
    %117 = math.exp %116 : vector<1x128xf32>
    %cst_33 = arith.constant 1.000000e+00 : f32
    %118 = vector.broadcast %cst_33 : f32 to vector<1x128xf32>
    %119 = arith.addf %118, %117 : vector<1x128xf32>
    %120 = arith.divf %118, %119 : vector<1x128xf32>
    %121 = arith.mulf %112, %43 : vector<1x128xf32>
    %122 = arith.mulf %106, %114 : vector<1x128xf32>
    %123 = arith.addf %121, %122 : vector<1x128xf32>
    %124 = math.tanh %123 : vector<1x128xf32>
    %125 = arith.mulf %120, %124 : vector<1x128xf32>
    %126 = vector.extract_strided_slice %6 {offsets = [6, 512], sizes = [1, 512], strides = [1, 1]} : vector<8x1024xf32> to vector<1x512xf32>
    %127 = arith.truncf %75 : vector<1x128xf32> to vector<1x128xbf16>
    %c0_34 = arith.constant 0 : index
    %c0_35 = arith.constant 0 : index
    %128 = vector.load %arg4[%c0_34, %c0_35] : memref<128x512xbf16, #tpu.memory_space<vmem>>, vector<128x512xbf16>
    %cst_36 = arith.constant dense<0.000000e+00> : vector<1x512xf32>
    %129 = tpu.matmul %127, %128, %cst_36 {dimension_numbers = #tpu.dot_dimension_numbers<[1], [0], [0], [1], [0, 0, 1, 1], [], []>} : vector<1x128xbf16>, vector<128x512xbf16>, vector<1x512xf32> -> vector<1x512xf32>
    %130 = arith.addf %126, %129 : vector<1x512xf32>
    %131 = vector.extract_strided_slice %130 {offsets = [0, 0], sizes = [1, 128], strides = [1, 1]} : vector<1x512xf32> to vector<1x128xf32>
    %132 = arith.negf %131 : vector<1x128xf32>
    %133 = math.exp %132 : vector<1x128xf32>
    %cst_37 = arith.constant 1.000000e+00 : f32
    %134 = vector.broadcast %cst_37 : f32 to vector<1x128xf32>
    %135 = arith.addf %134, %133 : vector<1x128xf32>
    %136 = arith.divf %134, %135 : vector<1x128xf32>
    %137 = vector.extract_strided_slice %130 {offsets = [0, 128], sizes = [1, 128], strides = [1, 1]} : vector<1x512xf32> to vector<1x128xf32>
    %138 = arith.negf %137 : vector<1x128xf32>
    %139 = math.exp %138 : vector<1x128xf32>
    %cst_38 = arith.constant 1.000000e+00 : f32
    %140 = vector.broadcast %cst_38 : f32 to vector<1x128xf32>
    %141 = arith.addf %140, %139 : vector<1x128xf32>
    %142 = arith.divf %140, %141 : vector<1x128xf32>
    %143 = vector.extract_strided_slice %130 {offsets = [0, 256], sizes = [1, 128], strides = [1, 1]} : vector<1x512xf32> to vector<1x128xf32>
    %144 = math.tanh %143 : vector<1x128xf32>
    %145 = vector.extract_strided_slice %130 {offsets = [0, 384], sizes = [1, 128], strides = [1, 1]} : vector<1x512xf32> to vector<1x128xf32>
    %146 = arith.negf %145 : vector<1x128xf32>
    %147 = math.exp %146 : vector<1x128xf32>
    %cst_39 = arith.constant 1.000000e+00 : f32
    %148 = vector.broadcast %cst_39 : f32 to vector<1x128xf32>
    %149 = arith.addf %148, %147 : vector<1x128xf32>
    %150 = arith.divf %148, %149 : vector<1x128xf32>
    %151 = arith.mulf %142, %73 : vector<1x128xf32>
    %152 = arith.mulf %136, %144 : vector<1x128xf32>
    %153 = arith.addf %151, %152 : vector<1x128xf32>
    %154 = math.tanh %153 : vector<1x128xf32>
    %155 = arith.mulf %150, %154 : vector<1x128xf32>
    %156 = arith.mulf %125, %8 : vector<1x128xf32>
    %cst_40 = arith.constant dense<0.000000e+00> : vector<1xf32>
    %157 = vector.multi_reduction <add>, %156, %cst_40 [1] : vector<1x128xf32> to vector<1xf32>
    %158 = vector.shape_cast %157 : vector<1xf32> to vector<1x1xf32>
    %159 = arith.mulf %155, %9 : vector<1x128xf32>
    %cst_41 = arith.constant dense<0.000000e+00> : vector<1xf32>
    %160 = vector.multi_reduction <add>, %159, %cst_41 [1] : vector<1x128xf32> to vector<1xf32>
    %161 = vector.shape_cast %160 : vector<1xf32> to vector<1x1xf32>
    %c1_i32 = arith.constant 1 : i32
    %162 = vector.broadcast %c1_i32 : i32 to vector<8x1xi32>
    %163 = arith.cmpi eq, %10, %162 : vector<8x1xi32>
    %cst_42 = arith.constant 0.000000e+00 : f32
    %164 = vector.shape_cast %158 : vector<1x1xf32> to vector<1x1xf32>
    %165 = vector.broadcast %164 : vector<1x1xf32> to vector<8x1xf32>
    %166 = vector.broadcast %cst_42 : f32 to vector<8x1xf32>
    %167 = arith.select %163, %165, %166 : vector<8x1xi1>, vector<8x1xf32>
    %168 = arith.addf %95, %167 : vector<8x1xf32>
    %c6_i32 = arith.constant 6 : i32
    %169 = vector.broadcast %c6_i32 : i32 to vector<8x1xi32>
    %170 = arith.cmpi eq, %10, %169 : vector<8x1xi32>
    %cst_43 = arith.constant 0.000000e+00 : f32
    %171 = vector.shape_cast %161 : vector<1x1xf32> to vector<1x1xf32>
    %172 = vector.broadcast %171 : vector<1x1xf32> to vector<8x1xf32>
    %173 = vector.broadcast %cst_43 : f32 to vector<8x1xf32>
    %174 = arith.select %170, %172, %173 : vector<8x1xi1>, vector<8x1xf32>
    %175 = arith.addf %168, %174 : vector<8x1xf32>
    %176 = vector.extract_strided_slice %6 {offsets = [2, 0], sizes = [1, 512], strides = [1, 1]} : vector<8x1024xf32> to vector<1x512xf32>
    %177 = arith.truncf %125 : vector<1x128xf32> to vector<1x128xbf16>
    %c0_44 = arith.constant 0 : index
    %c0_45 = arith.constant 0 : index
    %178 = vector.load %arg3[%c0_44, %c0_45] : memref<128x512xbf16, #tpu.memory_space<vmem>>, vector<128x512xbf16>
    %cst_46 = arith.constant dense<0.000000e+00> : vector<1x512xf32>
    %179 = tpu.matmul %177, %178, %cst_46 {dimension_numbers = #tpu.dot_dimension_numbers<[1], [0], [0], [1], [0, 0, 1, 1], [], []>} : vector<1x128xbf16>, vector<128x512xbf16>, vector<1x512xf32> -> vector<1x512xf32>
    %180 = arith.addf %176, %179 : vector<1x512xf32>
    %181 = vector.extract_strided_slice %180 {offsets = [0, 0], sizes = [1, 128], strides = [1, 1]} : vector<1x512xf32> to vector<1x128xf32>
    %182 = arith.negf %181 : vector<1x128xf32>
    %183 = math.exp %182 : vector<1x128xf32>
    %cst_47 = arith.constant 1.000000e+00 : f32
    %184 = vector.broadcast %cst_47 : f32 to vector<1x128xf32>
    %185 = arith.addf %184, %183 : vector<1x128xf32>
    %186 = arith.divf %184, %185 : vector<1x128xf32>
    %187 = vector.extract_strided_slice %180 {offsets = [0, 128], sizes = [1, 128], strides = [1, 1]} : vector<1x512xf32> to vector<1x128xf32>
    %188 = arith.negf %187 : vector<1x128xf32>
    %189 = math.exp %188 : vector<1x128xf32>
    %cst_48 = arith.constant 1.000000e+00 : f32
    %190 = vector.broadcast %cst_48 : f32 to vector<1x128xf32>
    %191 = arith.addf %190, %189 : vector<1x128xf32>
    %192 = arith.divf %190, %191 : vector<1x128xf32>
    %193 = vector.extract_strided_slice %180 {offsets = [0, 256], sizes = [1, 128], strides = [1, 1]} : vector<1x512xf32> to vector<1x128xf32>
    %194 = math.tanh %193 : vector<1x128xf32>
    %195 = vector.extract_strided_slice %180 {offsets = [0, 384], sizes = [1, 128], strides = [1, 1]} : vector<1x512xf32> to vector<1x128xf32>
    %196 = arith.negf %195 : vector<1x128xf32>
    %197 = math.exp %196 : vector<1x128xf32>
    %cst_49 = arith.constant 1.000000e+00 : f32
    %198 = vector.broadcast %cst_49 : f32 to vector<1x128xf32>
    %199 = arith.addf %198, %197 : vector<1x128xf32>
    %200 = arith.divf %198, %199 : vector<1x128xf32>
    %201 = arith.mulf %192, %123 : vector<1x128xf32>
    %202 = arith.mulf %186, %194 : vector<1x128xf32>
    %203 = arith.addf %201, %202 : vector<1x128xf32>
    %204 = math.tanh %203 : vector<1x128xf32>
    %205 = arith.mulf %200, %204 : vector<1x128xf32>
    %206 = vector.extract_strided_slice %6 {offsets = [5, 512], sizes = [1, 512], strides = [1, 1]} : vector<8x1024xf32> to vector<1x512xf32>
    %207 = arith.truncf %155 : vector<1x128xf32> to vector<1x128xbf16>
    %c0_50 = arith.constant 0 : index
    %c0_51 = arith.constant 0 : index
    %208 = vector.load %arg4[%c0_50, %c0_51] : memref<128x512xbf16, #tpu.memory_space<vmem>>, vector<128x512xbf16>
    %cst_52 = arith.constant dense<0.000000e+00> : vector<1x512xf32>
    %209 = tpu.matmul %207, %208, %cst_52 {dimension_numbers = #tpu.dot_dimension_numbers<[1], [0], [0], [1], [0, 0, 1, 1], [], []>} : vector<1x128xbf16>, vector<128x512xbf16>, vector<1x512xf32> -> vector<1x512xf32>
    %210 = arith.addf %206, %209 : vector<1x512xf32>
    %211 = vector.extract_strided_slice %210 {offsets = [0, 0], sizes = [1, 128], strides = [1, 1]} : vector<1x512xf32> to vector<1x128xf32>
    %212 = arith.negf %211 : vector<1x128xf32>
    %213 = math.exp %212 : vector<1x128xf32>
    %cst_53 = arith.constant 1.000000e+00 : f32
    %214 = vector.broadcast %cst_53 : f32 to vector<1x128xf32>
    %215 = arith.addf %214, %213 : vector<1x128xf32>
    %216 = arith.divf %214, %215 : vector<1x128xf32>
    %217 = vector.extract_strided_slice %210 {offsets = [0, 128], sizes = [1, 128], strides = [1, 1]} : vector<1x512xf32> to vector<1x128xf32>
    %218 = arith.negf %217 : vector<1x128xf32>
    %219 = math.exp %218 : vector<1x128xf32>
    %cst_54 = arith.constant 1.000000e+00 : f32
    %220 = vector.broadcast %cst_54 : f32 to vector<1x128xf32>
    %221 = arith.addf %220, %219 : vector<1x128xf32>
    %222 = arith.divf %220, %221 : vector<1x128xf32>
    %223 = vector.extract_strided_slice %210 {offsets = [0, 256], sizes = [1, 128], strides = [1, 1]} : vector<1x512xf32> to vector<1x128xf32>
    %224 = math.tanh %223 : vector<1x128xf32>
    %225 = vector.extract_strided_slice %210 {offsets = [0, 384], sizes = [1, 128], strides = [1, 1]} : vector<1x512xf32> to vector<1x128xf32>
    %226 = arith.negf %225 : vector<1x128xf32>
    %227 = math.exp %226 : vector<1x128xf32>
    %cst_55 = arith.constant 1.000000e+00 : f32
    %228 = vector.broadcast %cst_55 : f32 to vector<1x128xf32>
    %229 = arith.addf %228, %227 : vector<1x128xf32>
    %230 = arith.divf %228, %229 : vector<1x128xf32>
    %231 = arith.mulf %222, %153 : vector<1x128xf32>
    %232 = arith.mulf %216, %224 : vector<1x128xf32>
    %233 = arith.addf %231, %232 : vector<1x128xf32>
    %234 = math.tanh %233 : vector<1x128xf32>
    %235 = arith.mulf %230, %234 : vector<1x128xf32>
    %236 = arith.mulf %205, %8 : vector<1x128xf32>
    %cst_56 = arith.constant dense<0.000000e+00> : vector<1xf32>
    %237 = vector.multi_reduction <add>, %236, %cst_56 [1] : vector<1x128xf32> to vector<1xf32>
    %238 = vector.shape_cast %237 : vector<1xf32> to vector<1x1xf32>
    %239 = arith.mulf %235, %9 : vector<1x128xf32>
    %cst_57 = arith.constant dense<0.000000e+00> : vector<1xf32>
    %240 = vector.multi_reduction <add>, %239, %cst_57 [1] : vector<1x128xf32> to vector<1xf32>
    %241 = vector.shape_cast %240 : vector<1xf32> to vector<1x1xf32>
    %c2_i32 = arith.constant 2 : i32
    %242 = vector.broadcast %c2_i32 : i32 to vector<8x1xi32>
    %243 = arith.cmpi eq, %10, %242 : vector<8x1xi32>
    %cst_58 = arith.constant 0.000000e+00 : f32
    %244 = vector.shape_cast %238 : vector<1x1xf32> to vector<1x1xf32>
    %245 = vector.broadcast %244 : vector<1x1xf32> to vector<8x1xf32>
    %246 = vector.broadcast %cst_58 : f32 to vector<8x1xf32>
    %247 = arith.select %243, %245, %246 : vector<8x1xi1>, vector<8x1xf32>
    %248 = arith.addf %175, %247 : vector<8x1xf32>
    %c5_i32 = arith.constant 5 : i32
    %249 = vector.broadcast %c5_i32 : i32 to vector<8x1xi32>
    %250 = arith.cmpi eq, %10, %249 : vector<8x1xi32>
    %cst_59 = arith.constant 0.000000e+00 : f32
    %251 = vector.shape_cast %241 : vector<1x1xf32> to vector<1x1xf32>
    %252 = vector.broadcast %251 : vector<1x1xf32> to vector<8x1xf32>
    %253 = vector.broadcast %cst_59 : f32 to vector<8x1xf32>
    %254 = arith.select %250, %252, %253 : vector<8x1xi1>, vector<8x1xf32>
    %255 = arith.addf %248, %254 : vector<8x1xf32>
    %256 = vector.extract_strided_slice %6 {offsets = [3, 0], sizes = [1, 512], strides = [1, 1]} : vector<8x1024xf32> to vector<1x512xf32>
    %257 = arith.truncf %205 : vector<1x128xf32> to vector<1x128xbf16>
    %c0_60 = arith.constant 0 : index
    %c0_61 = arith.constant 0 : index
    %258 = vector.load %arg3[%c0_60, %c0_61] : memref<128x512xbf16, #tpu.memory_space<vmem>>, vector<128x512xbf16>
    %cst_62 = arith.constant dense<0.000000e+00> : vector<1x512xf32>
    %259 = tpu.matmul %257, %258, %cst_62 {dimension_numbers = #tpu.dot_dimension_numbers<[1], [0], [0], [1], [0, 0, 1, 1], [], []>} : vector<1x128xbf16>, vector<128x512xbf16>, vector<1x512xf32> -> vector<1x512xf32>
    %260 = arith.addf %256, %259 : vector<1x512xf32>
    %261 = vector.extract_strided_slice %260 {offsets = [0, 0], sizes = [1, 128], strides = [1, 1]} : vector<1x512xf32> to vector<1x128xf32>
    %262 = arith.negf %261 : vector<1x128xf32>
    %263 = math.exp %262 : vector<1x128xf32>
    %cst_63 = arith.constant 1.000000e+00 : f32
    %264 = vector.broadcast %cst_63 : f32 to vector<1x128xf32>
    %265 = arith.addf %264, %263 : vector<1x128xf32>
    %266 = arith.divf %264, %265 : vector<1x128xf32>
    %267 = vector.extract_strided_slice %260 {offsets = [0, 128], sizes = [1, 128], strides = [1, 1]} : vector<1x512xf32> to vector<1x128xf32>
    %268 = arith.negf %267 : vector<1x128xf32>
    %269 = math.exp %268 : vector<1x128xf32>
    %cst_64 = arith.constant 1.000000e+00 : f32
    %270 = vector.broadcast %cst_64 : f32 to vector<1x128xf32>
    %271 = arith.addf %270, %269 : vector<1x128xf32>
    %272 = arith.divf %270, %271 : vector<1x128xf32>
    %273 = vector.extract_strided_slice %260 {offsets = [0, 256], sizes = [1, 128], strides = [1, 1]} : vector<1x512xf32> to vector<1x128xf32>
    %274 = math.tanh %273 : vector<1x128xf32>
    %275 = vector.extract_strided_slice %260 {offsets = [0, 384], sizes = [1, 128], strides = [1, 1]} : vector<1x512xf32> to vector<1x128xf32>
    %276 = arith.negf %275 : vector<1x128xf32>
    %277 = math.exp %276 : vector<1x128xf32>
    %cst_65 = arith.constant 1.000000e+00 : f32
    %278 = vector.broadcast %cst_65 : f32 to vector<1x128xf32>
    %279 = arith.addf %278, %277 : vector<1x128xf32>
    %280 = arith.divf %278, %279 : vector<1x128xf32>
    %281 = arith.mulf %272, %203 : vector<1x128xf32>
    %282 = arith.mulf %266, %274 : vector<1x128xf32>
    %283 = arith.addf %281, %282 : vector<1x128xf32>
    %284 = math.tanh %283 : vector<1x128xf32>
    %285 = arith.mulf %280, %284 : vector<1x128xf32>
    %286 = vector.extract_strided_slice %6 {offsets = [4, 512], sizes = [1, 512], strides = [1, 1]} : vector<8x1024xf32> to vector<1x512xf32>
    %287 = arith.truncf %235 : vector<1x128xf32> to vector<1x128xbf16>
    %c0_66 = arith.constant 0 : index
    %c0_67 = arith.constant 0 : index
    %288 = vector.load %arg4[%c0_66, %c0_67] : memref<128x512xbf16, #tpu.memory_space<vmem>>, vector<128x512xbf16>
    %cst_68 = arith.constant dense<0.000000e+00> : vector<1x512xf32>
    %289 = tpu.matmul %287, %288, %cst_68 {dimension_numbers = #tpu.dot_dimension_numbers<[1], [0], [0], [1], [0, 0, 1, 1], [], []>} : vector<1x128xbf16>, vector<128x512xbf16>, vector<1x512xf32> -> vector<1x512xf32>
    %290 = arith.addf %286, %289 : vector<1x512xf32>
    %291 = vector.extract_strided_slice %290 {offsets = [0, 0], sizes = [1, 128], strides = [1, 1]} : vector<1x512xf32> to vector<1x128xf32>
    %292 = arith.negf %291 : vector<1x128xf32>
    %293 = math.exp %292 : vector<1x128xf32>
    %cst_69 = arith.constant 1.000000e+00 : f32
    %294 = vector.broadcast %cst_69 : f32 to vector<1x128xf32>
    %295 = arith.addf %294, %293 : vector<1x128xf32>
    %296 = arith.divf %294, %295 : vector<1x128xf32>
    %297 = vector.extract_strided_slice %290 {offsets = [0, 128], sizes = [1, 128], strides = [1, 1]} : vector<1x512xf32> to vector<1x128xf32>
    %298 = arith.negf %297 : vector<1x128xf32>
    %299 = math.exp %298 : vector<1x128xf32>
    %cst_70 = arith.constant 1.000000e+00 : f32
    %300 = vector.broadcast %cst_70 : f32 to vector<1x128xf32>
    %301 = arith.addf %300, %299 : vector<1x128xf32>
    %302 = arith.divf %300, %301 : vector<1x128xf32>
    %303 = vector.extract_strided_slice %290 {offsets = [0, 256], sizes = [1, 128], strides = [1, 1]} : vector<1x512xf32> to vector<1x128xf32>
    %304 = math.tanh %303 : vector<1x128xf32>
    %305 = vector.extract_strided_slice %290 {offsets = [0, 384], sizes = [1, 128], strides = [1, 1]} : vector<1x512xf32> to vector<1x128xf32>
    %306 = arith.negf %305 : vector<1x128xf32>
    %307 = math.exp %306 : vector<1x128xf32>
    %cst_71 = arith.constant 1.000000e+00 : f32
    %308 = vector.broadcast %cst_71 : f32 to vector<1x128xf32>
    %309 = arith.addf %308, %307 : vector<1x128xf32>
    %310 = arith.divf %308, %309 : vector<1x128xf32>
    %311 = arith.mulf %302, %233 : vector<1x128xf32>
    %312 = arith.mulf %296, %304 : vector<1x128xf32>
    %313 = arith.addf %311, %312 : vector<1x128xf32>
    %314 = math.tanh %313 : vector<1x128xf32>
    %315 = arith.mulf %310, %314 : vector<1x128xf32>
    %316 = arith.mulf %285, %8 : vector<1x128xf32>
    %cst_72 = arith.constant dense<0.000000e+00> : vector<1xf32>
    %317 = vector.multi_reduction <add>, %316, %cst_72 [1] : vector<1x128xf32> to vector<1xf32>
    %318 = vector.shape_cast %317 : vector<1xf32> to vector<1x1xf32>
    %319 = arith.mulf %315, %9 : vector<1x128xf32>
    %cst_73 = arith.constant dense<0.000000e+00> : vector<1xf32>
    %320 = vector.multi_reduction <add>, %319, %cst_73 [1] : vector<1x128xf32> to vector<1xf32>
    %321 = vector.shape_cast %320 : vector<1xf32> to vector<1x1xf32>
    %c3_i32 = arith.constant 3 : i32
    %322 = vector.broadcast %c3_i32 : i32 to vector<8x1xi32>
    %323 = arith.cmpi eq, %10, %322 : vector<8x1xi32>
    %cst_74 = arith.constant 0.000000e+00 : f32
    %324 = vector.shape_cast %318 : vector<1x1xf32> to vector<1x1xf32>
    %325 = vector.broadcast %324 : vector<1x1xf32> to vector<8x1xf32>
    %326 = vector.broadcast %cst_74 : f32 to vector<8x1xf32>
    %327 = arith.select %323, %325, %326 : vector<8x1xi1>, vector<8x1xf32>
    %328 = arith.addf %255, %327 : vector<8x1xf32>
    %c4_i32 = arith.constant 4 : i32
    %329 = vector.broadcast %c4_i32 : i32 to vector<8x1xi32>
    %330 = arith.cmpi eq, %10, %329 : vector<8x1xi32>
    %cst_75 = arith.constant 0.000000e+00 : f32
    %331 = vector.shape_cast %321 : vector<1x1xf32> to vector<1x1xf32>
    %332 = vector.broadcast %331 : vector<1x1xf32> to vector<8x1xf32>
    %333 = vector.broadcast %cst_75 : f32 to vector<8x1xf32>
    %334 = arith.select %330, %332, %333 : vector<8x1xi1>, vector<8x1xf32>
    %335 = arith.addf %328, %334 : vector<8x1xf32>
    %336 = vector.extract_strided_slice %6 {offsets = [4, 0], sizes = [1, 512], strides = [1, 1]} : vector<8x1024xf32> to vector<1x512xf32>
    %337 = arith.truncf %285 : vector<1x128xf32> to vector<1x128xbf16>
    %c0_76 = arith.constant 0 : index
    %c0_77 = arith.constant 0 : index
    %338 = vector.load %arg3[%c0_76, %c0_77] : memref<128x512xbf16, #tpu.memory_space<vmem>>, vector<128x512xbf16>
    %cst_78 = arith.constant dense<0.000000e+00> : vector<1x512xf32>
    %339 = tpu.matmul %337, %338, %cst_78 {dimension_numbers = #tpu.dot_dimension_numbers<[1], [0], [0], [1], [0, 0, 1, 1], [], []>} : vector<1x128xbf16>, vector<128x512xbf16>, vector<1x512xf32> -> vector<1x512xf32>
    %340 = arith.addf %336, %339 : vector<1x512xf32>
    %341 = vector.extract_strided_slice %340 {offsets = [0, 0], sizes = [1, 128], strides = [1, 1]} : vector<1x512xf32> to vector<1x128xf32>
    %342 = arith.negf %341 : vector<1x128xf32>
    %343 = math.exp %342 : vector<1x128xf32>
    %cst_79 = arith.constant 1.000000e+00 : f32
    %344 = vector.broadcast %cst_79 : f32 to vector<1x128xf32>
    %345 = arith.addf %344, %343 : vector<1x128xf32>
    %346 = arith.divf %344, %345 : vector<1x128xf32>
    %347 = vector.extract_strided_slice %340 {offsets = [0, 128], sizes = [1, 128], strides = [1, 1]} : vector<1x512xf32> to vector<1x128xf32>
    %348 = arith.negf %347 : vector<1x128xf32>
    %349 = math.exp %348 : vector<1x128xf32>
    %cst_80 = arith.constant 1.000000e+00 : f32
    %350 = vector.broadcast %cst_80 : f32 to vector<1x128xf32>
    %351 = arith.addf %350, %349 : vector<1x128xf32>
    %352 = arith.divf %350, %351 : vector<1x128xf32>
    %353 = vector.extract_strided_slice %340 {offsets = [0, 256], sizes = [1, 128], strides = [1, 1]} : vector<1x512xf32> to vector<1x128xf32>
    %354 = math.tanh %353 : vector<1x128xf32>
    %355 = vector.extract_strided_slice %340 {offsets = [0, 384], sizes = [1, 128], strides = [1, 1]} : vector<1x512xf32> to vector<1x128xf32>
    %356 = arith.negf %355 : vector<1x128xf32>
    %357 = math.exp %356 : vector<1x128xf32>
    %cst_81 = arith.constant 1.000000e+00 : f32
    %358 = vector.broadcast %cst_81 : f32 to vector<1x128xf32>
    %359 = arith.addf %358, %357 : vector<1x128xf32>
    %360 = arith.divf %358, %359 : vector<1x128xf32>
    %361 = arith.mulf %352, %283 : vector<1x128xf32>
    %362 = arith.mulf %346, %354 : vector<1x128xf32>
    %363 = arith.addf %361, %362 : vector<1x128xf32>
    %364 = math.tanh %363 : vector<1x128xf32>
    %365 = arith.mulf %360, %364 : vector<1x128xf32>
    %366 = vector.extract_strided_slice %6 {offsets = [3, 512], sizes = [1, 512], strides = [1, 1]} : vector<8x1024xf32> to vector<1x512xf32>
    %367 = arith.truncf %315 : vector<1x128xf32> to vector<1x128xbf16>
    %c0_82 = arith.constant 0 : index
    %c0_83 = arith.constant 0 : index
    %368 = vector.load %arg4[%c0_82, %c0_83] : memref<128x512xbf16, #tpu.memory_space<vmem>>, vector<128x512xbf16>
    %cst_84 = arith.constant dense<0.000000e+00> : vector<1x512xf32>
    %369 = tpu.matmul %367, %368, %cst_84 {dimension_numbers = #tpu.dot_dimension_numbers<[1], [0], [0], [1], [0, 0, 1, 1], [], []>} : vector<1x128xbf16>, vector<128x512xbf16>, vector<1x512xf32> -> vector<1x512xf32>
    %370 = arith.addf %366, %369 : vector<1x512xf32>
    %371 = vector.extract_strided_slice %370 {offsets = [0, 0], sizes = [1, 128], strides = [1, 1]} : vector<1x512xf32> to vector<1x128xf32>
    %372 = arith.negf %371 : vector<1x128xf32>
    %373 = math.exp %372 : vector<1x128xf32>
    %cst_85 = arith.constant 1.000000e+00 : f32
    %374 = vector.broadcast %cst_85 : f32 to vector<1x128xf32>
    %375 = arith.addf %374, %373 : vector<1x128xf32>
    %376 = arith.divf %374, %375 : vector<1x128xf32>
    %377 = vector.extract_strided_slice %370 {offsets = [0, 128], sizes = [1, 128], strides = [1, 1]} : vector<1x512xf32> to vector<1x128xf32>
    %378 = arith.negf %377 : vector<1x128xf32>
    %379 = math.exp %378 : vector<1x128xf32>
    %cst_86 = arith.constant 1.000000e+00 : f32
    %380 = vector.broadcast %cst_86 : f32 to vector<1x128xf32>
    %381 = arith.addf %380, %379 : vector<1x128xf32>
    %382 = arith.divf %380, %381 : vector<1x128xf32>
    %383 = vector.extract_strided_slice %370 {offsets = [0, 256], sizes = [1, 128], strides = [1, 1]} : vector<1x512xf32> to vector<1x128xf32>
    %384 = math.tanh %383 : vector<1x128xf32>
    %385 = vector.extract_strided_slice %370 {offsets = [0, 384], sizes = [1, 128], strides = [1, 1]} : vector<1x512xf32> to vector<1x128xf32>
    %386 = arith.negf %385 : vector<1x128xf32>
    %387 = math.exp %386 : vector<1x128xf32>
    %cst_87 = arith.constant 1.000000e+00 : f32
    %388 = vector.broadcast %cst_87 : f32 to vector<1x128xf32>
    %389 = arith.addf %388, %387 : vector<1x128xf32>
    %390 = arith.divf %388, %389 : vector<1x128xf32>
    %391 = arith.mulf %382, %313 : vector<1x128xf32>
    %392 = arith.mulf %376, %384 : vector<1x128xf32>
    %393 = arith.addf %391, %392 : vector<1x128xf32>
    %394 = math.tanh %393 : vector<1x128xf32>
    %395 = arith.mulf %390, %394 : vector<1x128xf32>
    %396 = arith.mulf %365, %8 : vector<1x128xf32>
    %cst_88 = arith.constant dense<0.000000e+00> : vector<1xf32>
    %397 = vector.multi_reduction <add>, %396, %cst_88 [1] : vector<1x128xf32> to vector<1xf32>
    %398 = vector.shape_cast %397 : vector<1xf32> to vector<1x1xf32>
    %399 = arith.mulf %395, %9 : vector<1x128xf32>
    %cst_89 = arith.constant dense<0.000000e+00> : vector<1xf32>
    %400 = vector.multi_reduction <add>, %399, %cst_89 [1] : vector<1x128xf32> to vector<1xf32>
    %401 = vector.shape_cast %400 : vector<1xf32> to vector<1x1xf32>
    %c4_i32_90 = arith.constant 4 : i32
    %402 = vector.broadcast %c4_i32_90 : i32 to vector<8x1xi32>
    %403 = arith.cmpi eq, %10, %402 : vector<8x1xi32>
    %cst_91 = arith.constant 0.000000e+00 : f32
    %404 = vector.shape_cast %398 : vector<1x1xf32> to vector<1x1xf32>
    %405 = vector.broadcast %404 : vector<1x1xf32> to vector<8x1xf32>
    %406 = vector.broadcast %cst_91 : f32 to vector<8x1xf32>
    %407 = arith.select %403, %405, %406 : vector<8x1xi1>, vector<8x1xf32>
    %408 = arith.addf %335, %407 : vector<8x1xf32>
    %c3_i32_92 = arith.constant 3 : i32
    %409 = vector.broadcast %c3_i32_92 : i32 to vector<8x1xi32>
    %410 = arith.cmpi eq, %10, %409 : vector<8x1xi32>
    %cst_93 = arith.constant 0.000000e+00 : f32
    %411 = vector.shape_cast %401 : vector<1x1xf32> to vector<1x1xf32>
    %412 = vector.broadcast %411 : vector<1x1xf32> to vector<8x1xf32>
    %413 = vector.broadcast %cst_93 : f32 to vector<8x1xf32>
    %414 = arith.select %410, %412, %413 : vector<8x1xi1>, vector<8x1xf32>
    %415 = arith.addf %408, %414 : vector<8x1xf32>
    %416 = vector.extract_strided_slice %6 {offsets = [5, 0], sizes = [1, 512], strides = [1, 1]} : vector<8x1024xf32> to vector<1x512xf32>
    %417 = arith.truncf %365 : vector<1x128xf32> to vector<1x128xbf16>
    %c0_94 = arith.constant 0 : index
    %c0_95 = arith.constant 0 : index
    %418 = vector.load %arg3[%c0_94, %c0_95] : memref<128x512xbf16, #tpu.memory_space<vmem>>, vector<128x512xbf16>
    %cst_96 = arith.constant dense<0.000000e+00> : vector<1x512xf32>
    %419 = tpu.matmul %417, %418, %cst_96 {dimension_numbers = #tpu.dot_dimension_numbers<[1], [0], [0], [1], [0, 0, 1, 1], [], []>} : vector<1x128xbf16>, vector<128x512xbf16>, vector<1x512xf32> -> vector<1x512xf32>
    %420 = arith.addf %416, %419 : vector<1x512xf32>
    %421 = vector.extract_strided_slice %420 {offsets = [0, 0], sizes = [1, 128], strides = [1, 1]} : vector<1x512xf32> to vector<1x128xf32>
    %422 = arith.negf %421 : vector<1x128xf32>
    %423 = math.exp %422 : vector<1x128xf32>
    %cst_97 = arith.constant 1.000000e+00 : f32
    %424 = vector.broadcast %cst_97 : f32 to vector<1x128xf32>
    %425 = arith.addf %424, %423 : vector<1x128xf32>
    %426 = arith.divf %424, %425 : vector<1x128xf32>
    %427 = vector.extract_strided_slice %420 {offsets = [0, 128], sizes = [1, 128], strides = [1, 1]} : vector<1x512xf32> to vector<1x128xf32>
    %428 = arith.negf %427 : vector<1x128xf32>
    %429 = math.exp %428 : vector<1x128xf32>
    %cst_98 = arith.constant 1.000000e+00 : f32
    %430 = vector.broadcast %cst_98 : f32 to vector<1x128xf32>
    %431 = arith.addf %430, %429 : vector<1x128xf32>
    %432 = arith.divf %430, %431 : vector<1x128xf32>
    %433 = vector.extract_strided_slice %420 {offsets = [0, 256], sizes = [1, 128], strides = [1, 1]} : vector<1x512xf32> to vector<1x128xf32>
    %434 = math.tanh %433 : vector<1x128xf32>
    %435 = vector.extract_strided_slice %420 {offsets = [0, 384], sizes = [1, 128], strides = [1, 1]} : vector<1x512xf32> to vector<1x128xf32>
    %436 = arith.negf %435 : vector<1x128xf32>
    %437 = math.exp %436 : vector<1x128xf32>
    %cst_99 = arith.constant 1.000000e+00 : f32
    %438 = vector.broadcast %cst_99 : f32 to vector<1x128xf32>
    %439 = arith.addf %438, %437 : vector<1x128xf32>
    %440 = arith.divf %438, %439 : vector<1x128xf32>
    %441 = arith.mulf %432, %363 : vector<1x128xf32>
    %442 = arith.mulf %426, %434 : vector<1x128xf32>
    %443 = arith.addf %441, %442 : vector<1x128xf32>
    %444 = math.tanh %443 : vector<1x128xf32>
    %445 = arith.mulf %440, %444 : vector<1x128xf32>
    %446 = vector.extract_strided_slice %6 {offsets = [2, 512], sizes = [1, 512], strides = [1, 1]} : vector<8x1024xf32> to vector<1x512xf32>
    %447 = arith.truncf %395 : vector<1x128xf32> to vector<1x128xbf16>
    %c0_100 = arith.constant 0 : index
    %c0_101 = arith.constant 0 : index
    %448 = vector.load %arg4[%c0_100, %c0_101] : memref<128x512xbf16, #tpu.memory_space<vmem>>, vector<128x512xbf16>
    %cst_102 = arith.constant dense<0.000000e+00> : vector<1x512xf32>
    %449 = tpu.matmul %447, %448, %cst_102 {dimension_numbers = #tpu.dot_dimension_numbers<[1], [0], [0], [1], [0, 0, 1, 1], [], []>} : vector<1x128xbf16>, vector<128x512xbf16>, vector<1x512xf32> -> vector<1x512xf32>
    %450 = arith.addf %446, %449 : vector<1x512xf32>
    %451 = vector.extract_strided_slice %450 {offsets = [0, 0], sizes = [1, 128], strides = [1, 1]} : vector<1x512xf32> to vector<1x128xf32>
    %452 = arith.negf %451 : vector<1x128xf32>
    %453 = math.exp %452 : vector<1x128xf32>
    %cst_103 = arith.constant 1.000000e+00 : f32
    %454 = vector.broadcast %cst_103 : f32 to vector<1x128xf32>
    %455 = arith.addf %454, %453 : vector<1x128xf32>
    %456 = arith.divf %454, %455 : vector<1x128xf32>
    %457 = vector.extract_strided_slice %450 {offsets = [0, 128], sizes = [1, 128], strides = [1, 1]} : vector<1x512xf32> to vector<1x128xf32>
    %458 = arith.negf %457 : vector<1x128xf32>
    %459 = math.exp %458 : vector<1x128xf32>
    %cst_104 = arith.constant 1.000000e+00 : f32
    %460 = vector.broadcast %cst_104 : f32 to vector<1x128xf32>
    %461 = arith.addf %460, %459 : vector<1x128xf32>
    %462 = arith.divf %460, %461 : vector<1x128xf32>
    %463 = vector.extract_strided_slice %450 {offsets = [0, 256], sizes = [1, 128], strides = [1, 1]} : vector<1x512xf32> to vector<1x128xf32>
    %464 = math.tanh %463 : vector<1x128xf32>
    %465 = vector.extract_strided_slice %450 {offsets = [0, 384], sizes = [1, 128], strides = [1, 1]} : vector<1x512xf32> to vector<1x128xf32>
    %466 = arith.negf %465 : vector<1x128xf32>
    %467 = math.exp %466 : vector<1x128xf32>
    %cst_105 = arith.constant 1.000000e+00 : f32
    %468 = vector.broadcast %cst_105 : f32 to vector<1x128xf32>
    %469 = arith.addf %468, %467 : vector<1x128xf32>
    %470 = arith.divf %468, %469 : vector<1x128xf32>
    %471 = arith.mulf %462, %393 : vector<1x128xf32>
    %472 = arith.mulf %456, %464 : vector<1x128xf32>
    %473 = arith.addf %471, %472 : vector<1x128xf32>
    %474 = math.tanh %473 : vector<1x128xf32>
    %475 = arith.mulf %470, %474 : vector<1x128xf32>
    %476 = arith.mulf %445, %8 : vector<1x128xf32>
    %cst_106 = arith.constant dense<0.000000e+00> : vector<1xf32>
    %477 = vector.multi_reduction <add>, %476, %cst_106 [1] : vector<1x128xf32> to vector<1xf32>
    %478 = vector.shape_cast %477 : vector<1xf32> to vector<1x1xf32>
    %479 = arith.mulf %475, %9 : vector<1x128xf32>
    %cst_107 = arith.constant dense<0.000000e+00> : vector<1xf32>
    %480 = vector.multi_reduction <add>, %479, %cst_107 [1] : vector<1x128xf32> to vector<1xf32>
    %481 = vector.shape_cast %480 : vector<1xf32> to vector<1x1xf32>
    %c5_i32_108 = arith.constant 5 : i32
    %482 = vector.broadcast %c5_i32_108 : i32 to vector<8x1xi32>
    %483 = arith.cmpi eq, %10, %482 : vector<8x1xi32>
    %cst_109 = arith.constant 0.000000e+00 : f32
    %484 = vector.shape_cast %478 : vector<1x1xf32> to vector<1x1xf32>
    %485 = vector.broadcast %484 : vector<1x1xf32> to vector<8x1xf32>
    %486 = vector.broadcast %cst_109 : f32 to vector<8x1xf32>
    %487 = arith.select %483, %485, %486 : vector<8x1xi1>, vector<8x1xf32>
    %488 = arith.addf %415, %487 : vector<8x1xf32>
    %c2_i32_110 = arith.constant 2 : i32
    %489 = vector.broadcast %c2_i32_110 : i32 to vector<8x1xi32>
    %490 = arith.cmpi eq, %10, %489 : vector<8x1xi32>
    %cst_111 = arith.constant 0.000000e+00 : f32
    %491 = vector.shape_cast %481 : vector<1x1xf32> to vector<1x1xf32>
    %492 = vector.broadcast %491 : vector<1x1xf32> to vector<8x1xf32>
    %493 = vector.broadcast %cst_111 : f32 to vector<8x1xf32>
    %494 = arith.select %490, %492, %493 : vector<8x1xi1>, vector<8x1xf32>
    %495 = arith.addf %488, %494 : vector<8x1xf32>
    %496 = vector.extract_strided_slice %6 {offsets = [6, 0], sizes = [1, 512], strides = [1, 1]} : vector<8x1024xf32> to vector<1x512xf32>
    %497 = arith.truncf %445 : vector<1x128xf32> to vector<1x128xbf16>
    %c0_112 = arith.constant 0 : index
    %c0_113 = arith.constant 0 : index
    %498 = vector.load %arg3[%c0_112, %c0_113] : memref<128x512xbf16, #tpu.memory_space<vmem>>, vector<128x512xbf16>
    %cst_114 = arith.constant dense<0.000000e+00> : vector<1x512xf32>
    %499 = tpu.matmul %497, %498, %cst_114 {dimension_numbers = #tpu.dot_dimension_numbers<[1], [0], [0], [1], [0, 0, 1, 1], [], []>} : vector<1x128xbf16>, vector<128x512xbf16>, vector<1x512xf32> -> vector<1x512xf32>
    %500 = arith.addf %496, %499 : vector<1x512xf32>
    %501 = vector.extract_strided_slice %500 {offsets = [0, 0], sizes = [1, 128], strides = [1, 1]} : vector<1x512xf32> to vector<1x128xf32>
    %502 = arith.negf %501 : vector<1x128xf32>
    %503 = math.exp %502 : vector<1x128xf32>
    %cst_115 = arith.constant 1.000000e+00 : f32
    %504 = vector.broadcast %cst_115 : f32 to vector<1x128xf32>
    %505 = arith.addf %504, %503 : vector<1x128xf32>
    %506 = arith.divf %504, %505 : vector<1x128xf32>
    %507 = vector.extract_strided_slice %500 {offsets = [0, 128], sizes = [1, 128], strides = [1, 1]} : vector<1x512xf32> to vector<1x128xf32>
    %508 = arith.negf %507 : vector<1x128xf32>
    %509 = math.exp %508 : vector<1x128xf32>
    %cst_116 = arith.constant 1.000000e+00 : f32
    %510 = vector.broadcast %cst_116 : f32 to vector<1x128xf32>
    %511 = arith.addf %510, %509 : vector<1x128xf32>
    %512 = arith.divf %510, %511 : vector<1x128xf32>
    %513 = vector.extract_strided_slice %500 {offsets = [0, 256], sizes = [1, 128], strides = [1, 1]} : vector<1x512xf32> to vector<1x128xf32>
    %514 = math.tanh %513 : vector<1x128xf32>
    %515 = vector.extract_strided_slice %500 {offsets = [0, 384], sizes = [1, 128], strides = [1, 1]} : vector<1x512xf32> to vector<1x128xf32>
    %516 = arith.negf %515 : vector<1x128xf32>
    %517 = math.exp %516 : vector<1x128xf32>
    %cst_117 = arith.constant 1.000000e+00 : f32
    %518 = vector.broadcast %cst_117 : f32 to vector<1x128xf32>
    %519 = arith.addf %518, %517 : vector<1x128xf32>
    %520 = arith.divf %518, %519 : vector<1x128xf32>
    %521 = arith.mulf %512, %443 : vector<1x128xf32>
    %522 = arith.mulf %506, %514 : vector<1x128xf32>
    %523 = arith.addf %521, %522 : vector<1x128xf32>
    %524 = math.tanh %523 : vector<1x128xf32>
    %525 = arith.mulf %520, %524 : vector<1x128xf32>
    %526 = vector.extract_strided_slice %6 {offsets = [1, 512], sizes = [1, 512], strides = [1, 1]} : vector<8x1024xf32> to vector<1x512xf32>
    %527 = arith.truncf %475 : vector<1x128xf32> to vector<1x128xbf16>
    %c0_118 = arith.constant 0 : index
    %c0_119 = arith.constant 0 : index
    %528 = vector.load %arg4[%c0_118, %c0_119] : memref<128x512xbf16, #tpu.memory_space<vmem>>, vector<128x512xbf16>
    %cst_120 = arith.constant dense<0.000000e+00> : vector<1x512xf32>
    %529 = tpu.matmul %527, %528, %cst_120 {dimension_numbers = #tpu.dot_dimension_numbers<[1], [0], [0], [1], [0, 0, 1, 1], [], []>} : vector<1x128xbf16>, vector<128x512xbf16>, vector<1x512xf32> -> vector<1x512xf32>
    %530 = arith.addf %526, %529 : vector<1x512xf32>
    %531 = vector.extract_strided_slice %530 {offsets = [0, 0], sizes = [1, 128], strides = [1, 1]} : vector<1x512xf32> to vector<1x128xf32>
    %532 = arith.negf %531 : vector<1x128xf32>
    %533 = math.exp %532 : vector<1x128xf32>
    %cst_121 = arith.constant 1.000000e+00 : f32
    %534 = vector.broadcast %cst_121 : f32 to vector<1x128xf32>
    %535 = arith.addf %534, %533 : vector<1x128xf32>
    %536 = arith.divf %534, %535 : vector<1x128xf32>
    %537 = vector.extract_strided_slice %530 {offsets = [0, 128], sizes = [1, 128], strides = [1, 1]} : vector<1x512xf32> to vector<1x128xf32>
    %538 = arith.negf %537 : vector<1x128xf32>
    %539 = math.exp %538 : vector<1x128xf32>
    %cst_122 = arith.constant 1.000000e+00 : f32
    %540 = vector.broadcast %cst_122 : f32 to vector<1x128xf32>
    %541 = arith.addf %540, %539 : vector<1x128xf32>
    %542 = arith.divf %540, %541 : vector<1x128xf32>
    %543 = vector.extract_strided_slice %530 {offsets = [0, 256], sizes = [1, 128], strides = [1, 1]} : vector<1x512xf32> to vector<1x128xf32>
    %544 = math.tanh %543 : vector<1x128xf32>
    %545 = vector.extract_strided_slice %530 {offsets = [0, 384], sizes = [1, 128], strides = [1, 1]} : vector<1x512xf32> to vector<1x128xf32>
    %546 = arith.negf %545 : vector<1x128xf32>
    %547 = math.exp %546 : vector<1x128xf32>
    %cst_123 = arith.constant 1.000000e+00 : f32
    %548 = vector.broadcast %cst_123 : f32 to vector<1x128xf32>
    %549 = arith.addf %548, %547 : vector<1x128xf32>
    %550 = arith.divf %548, %549 : vector<1x128xf32>
    %551 = arith.mulf %542, %473 : vector<1x128xf32>
    %552 = arith.mulf %536, %544 : vector<1x128xf32>
    %553 = arith.addf %551, %552 : vector<1x128xf32>
    %554 = math.tanh %553 : vector<1x128xf32>
    %555 = arith.mulf %550, %554 : vector<1x128xf32>
    %556 = arith.mulf %525, %8 : vector<1x128xf32>
    %cst_124 = arith.constant dense<0.000000e+00> : vector<1xf32>
    %557 = vector.multi_reduction <add>, %556, %cst_124 [1] : vector<1x128xf32> to vector<1xf32>
    %558 = vector.shape_cast %557 : vector<1xf32> to vector<1x1xf32>
    %559 = arith.mulf %555, %9 : vector<1x128xf32>
    %cst_125 = arith.constant dense<0.000000e+00> : vector<1xf32>
    %560 = vector.multi_reduction <add>, %559, %cst_125 [1] : vector<1x128xf32> to vector<1xf32>
    %561 = vector.shape_cast %560 : vector<1xf32> to vector<1x1xf32>
    %c6_i32_126 = arith.constant 6 : i32
    %562 = vector.broadcast %c6_i32_126 : i32 to vector<8x1xi32>
    %563 = arith.cmpi eq, %10, %562 : vector<8x1xi32>
    %cst_127 = arith.constant 0.000000e+00 : f32
    %564 = vector.shape_cast %558 : vector<1x1xf32> to vector<1x1xf32>
    %565 = vector.broadcast %564 : vector<1x1xf32> to vector<8x1xf32>
    %566 = vector.broadcast %cst_127 : f32 to vector<8x1xf32>
    %567 = arith.select %563, %565, %566 : vector<8x1xi1>, vector<8x1xf32>
    %568 = arith.addf %495, %567 : vector<8x1xf32>
    %c1_i32_128 = arith.constant 1 : i32
    %569 = vector.broadcast %c1_i32_128 : i32 to vector<8x1xi32>
    %570 = arith.cmpi eq, %10, %569 : vector<8x1xi32>
    %cst_129 = arith.constant 0.000000e+00 : f32
    %571 = vector.shape_cast %561 : vector<1x1xf32> to vector<1x1xf32>
    %572 = vector.broadcast %571 : vector<1x1xf32> to vector<8x1xf32>
    %573 = vector.broadcast %cst_129 : f32 to vector<8x1xf32>
    %574 = arith.select %570, %572, %573 : vector<8x1xi1>, vector<8x1xf32>
    %575 = arith.addf %568, %574 : vector<8x1xf32>
    %576 = vector.extract_strided_slice %6 {offsets = [7, 0], sizes = [1, 512], strides = [1, 1]} : vector<8x1024xf32> to vector<1x512xf32>
    %577 = arith.truncf %525 : vector<1x128xf32> to vector<1x128xbf16>
    %c0_130 = arith.constant 0 : index
    %c0_131 = arith.constant 0 : index
    %578 = vector.load %arg3[%c0_130, %c0_131] : memref<128x512xbf16, #tpu.memory_space<vmem>>, vector<128x512xbf16>
    %cst_132 = arith.constant dense<0.000000e+00> : vector<1x512xf32>
    %579 = tpu.matmul %577, %578, %cst_132 {dimension_numbers = #tpu.dot_dimension_numbers<[1], [0], [0], [1], [0, 0, 1, 1], [], []>} : vector<1x128xbf16>, vector<128x512xbf16>, vector<1x512xf32> -> vector<1x512xf32>
    %580 = arith.addf %576, %579 : vector<1x512xf32>
    %581 = vector.extract_strided_slice %580 {offsets = [0, 0], sizes = [1, 128], strides = [1, 1]} : vector<1x512xf32> to vector<1x128xf32>
    %582 = arith.negf %581 : vector<1x128xf32>
    %583 = math.exp %582 : vector<1x128xf32>
    %cst_133 = arith.constant 1.000000e+00 : f32
    %584 = vector.broadcast %cst_133 : f32 to vector<1x128xf32>
    %585 = arith.addf %584, %583 : vector<1x128xf32>
    %586 = arith.divf %584, %585 : vector<1x128xf32>
    %587 = vector.extract_strided_slice %580 {offsets = [0, 128], sizes = [1, 128], strides = [1, 1]} : vector<1x512xf32> to vector<1x128xf32>
    %588 = arith.negf %587 : vector<1x128xf32>
    %589 = math.exp %588 : vector<1x128xf32>
    %cst_134 = arith.constant 1.000000e+00 : f32
    %590 = vector.broadcast %cst_134 : f32 to vector<1x128xf32>
    %591 = arith.addf %590, %589 : vector<1x128xf32>
    %592 = arith.divf %590, %591 : vector<1x128xf32>
    %593 = vector.extract_strided_slice %580 {offsets = [0, 256], sizes = [1, 128], strides = [1, 1]} : vector<1x512xf32> to vector<1x128xf32>
    %594 = math.tanh %593 : vector<1x128xf32>
    %595 = vector.extract_strided_slice %580 {offsets = [0, 384], sizes = [1, 128], strides = [1, 1]} : vector<1x512xf32> to vector<1x128xf32>
    %596 = arith.negf %595 : vector<1x128xf32>
    %597 = math.exp %596 : vector<1x128xf32>
    %cst_135 = arith.constant 1.000000e+00 : f32
    %598 = vector.broadcast %cst_135 : f32 to vector<1x128xf32>
    %599 = arith.addf %598, %597 : vector<1x128xf32>
    %600 = arith.divf %598, %599 : vector<1x128xf32>
    %601 = arith.mulf %592, %523 : vector<1x128xf32>
    %602 = arith.mulf %586, %594 : vector<1x128xf32>
    %603 = arith.addf %601, %602 : vector<1x128xf32>
    %604 = math.tanh %603 : vector<1x128xf32>
    %605 = arith.mulf %600, %604 : vector<1x128xf32>
    %606 = vector.extract_strided_slice %6 {offsets = [0, 512], sizes = [1, 512], strides = [1, 1]} : vector<8x1024xf32> to vector<1x512xf32>
    %607 = arith.truncf %555 : vector<1x128xf32> to vector<1x128xbf16>
    %c0_136 = arith.constant 0 : index
    %c0_137 = arith.constant 0 : index
    %608 = vector.load %arg4[%c0_136, %c0_137] : memref<128x512xbf16, #tpu.memory_space<vmem>>, vector<128x512xbf16>
    %cst_138 = arith.constant dense<0.000000e+00> : vector<1x512xf32>
    %609 = tpu.matmul %607, %608, %cst_138 {dimension_numbers = #tpu.dot_dimension_numbers<[1], [0], [0], [1], [0, 0, 1, 1], [], []>} : vector<1x128xbf16>, vector<128x512xbf16>, vector<1x512xf32> -> vector<1x512xf32>
    %610 = arith.addf %606, %609 : vector<1x512xf32>
    %611 = vector.extract_strided_slice %610 {offsets = [0, 0], sizes = [1, 128], strides = [1, 1]} : vector<1x512xf32> to vector<1x128xf32>
    %612 = arith.negf %611 : vector<1x128xf32>
    %613 = math.exp %612 : vector<1x128xf32>
    %cst_139 = arith.constant 1.000000e+00 : f32
    %614 = vector.broadcast %cst_139 : f32 to vector<1x128xf32>
    %615 = arith.addf %614, %613 : vector<1x128xf32>
    %616 = arith.divf %614, %615 : vector<1x128xf32>
    %617 = vector.extract_strided_slice %610 {offsets = [0, 128], sizes = [1, 128], strides = [1, 1]} : vector<1x512xf32> to vector<1x128xf32>
    %618 = arith.negf %617 : vector<1x128xf32>
    %619 = math.exp %618 : vector<1x128xf32>
    %cst_140 = arith.constant 1.000000e+00 : f32
    %620 = vector.broadcast %cst_140 : f32 to vector<1x128xf32>
    %621 = arith.addf %620, %619 : vector<1x128xf32>
    %622 = arith.divf %620, %621 : vector<1x128xf32>
    %623 = vector.extract_strided_slice %610 {offsets = [0, 256], sizes = [1, 128], strides = [1, 1]} : vector<1x512xf32> to vector<1x128xf32>
    %624 = math.tanh %623 : vector<1x128xf32>
    %625 = vector.extract_strided_slice %610 {offsets = [0, 384], sizes = [1, 128], strides = [1, 1]} : vector<1x512xf32> to vector<1x128xf32>
    %626 = arith.negf %625 : vector<1x128xf32>
    %627 = math.exp %626 : vector<1x128xf32>
    %cst_141 = arith.constant 1.000000e+00 : f32
    %628 = vector.broadcast %cst_141 : f32 to vector<1x128xf32>
    %629 = arith.addf %628, %627 : vector<1x128xf32>
    %630 = arith.divf %628, %629 : vector<1x128xf32>
    %631 = arith.mulf %622, %553 : vector<1x128xf32>
    %632 = arith.mulf %616, %624 : vector<1x128xf32>
    %633 = arith.addf %631, %632 : vector<1x128xf32>
    %634 = math.tanh %633 : vector<1x128xf32>
    %635 = arith.mulf %630, %634 : vector<1x128xf32>
    %636 = arith.mulf %605, %8 : vector<1x128xf32>
    %cst_142 = arith.constant dense<0.000000e+00> : vector<1xf32>
    %637 = vector.multi_reduction <add>, %636, %cst_142 [1] : vector<1x128xf32> to vector<1xf32>
    %638 = vector.shape_cast %637 : vector<1xf32> to vector<1x1xf32>
    %639 = arith.mulf %635, %9 : vector<1x128xf32>
    %cst_143 = arith.constant dense<0.000000e+00> : vector<1xf32>
    %640 = vector.multi_reduction <add>, %639, %cst_143 [1] : vector<1x128xf32> to vector<1xf32>
    %641 = vector.shape_cast %640 : vector<1xf32> to vector<1x1xf32>
    %c7_i32_144 = arith.constant 7 : i32
    %642 = vector.broadcast %c7_i32_144 : i32 to vector<8x1xi32>
    %643 = arith.cmpi eq, %10, %642 : vector<8x1xi32>
    %cst_145 = arith.constant 0.000000e+00 : f32
    %644 = vector.shape_cast %638 : vector<1x1xf32> to vector<1x1xf32>
    %645 = vector.broadcast %644 : vector<1x1xf32> to vector<8x1xf32>
    %646 = vector.broadcast %cst_145 : f32 to vector<8x1xf32>
    %647 = arith.select %643, %645, %646 : vector<8x1xi1>, vector<8x1xf32>
    %648 = arith.addf %575, %647 : vector<8x1xf32>
    %c0_i32_146 = arith.constant 0 : i32
    %649 = vector.broadcast %c0_i32_146 : i32 to vector<8x1xi32>
    %650 = arith.cmpi eq, %10, %649 : vector<8x1xi32>
    %cst_147 = arith.constant 0.000000e+00 : f32
    %651 = vector.shape_cast %641 : vector<1x1xf32> to vector<1x1xf32>
    %652 = vector.broadcast %651 : vector<1x1xf32> to vector<8x1xf32>
    %653 = vector.broadcast %cst_147 : f32 to vector<8x1xf32>
    %654 = arith.select %650, %652, %653 : vector<8x1xi1>, vector<8x1xf32>
    %655 = arith.addf %648, %654 : vector<8x1xf32>
    %c0_148 = arith.constant 0 : index
    %c0_149 = arith.constant 0 : index
    %656 = vector.load %arg6[%c0_148, %c0_149] : memref<1x1xf32, #tpu.memory_space<vmem>>, vector<1x1xf32>
    %657 = vector.broadcast %656 : vector<1x1xf32> to vector<8x1xf32>
    %658 = arith.addf %655, %657 : vector<8x1xf32>
    %659 = arith.negf %658 : vector<8x1xf32>
    %660 = math.exp %659 : vector<8x1xf32>
    %cst_150 = arith.constant 1.000000e+00 : f32
    %661 = vector.broadcast %cst_150 : f32 to vector<8x1xf32>
    %662 = arith.addf %661, %660 : vector<8x1xf32>
    %663 = arith.divf %661, %662 : vector<8x1xf32>
    %c0_151 = arith.constant 0 : index
    %c0_152 = arith.constant 0 : index
    %664 = vector.load %arg7[%c0_151, %c0_152] : memref<8x1xf32, #tpu.memory_space<vmem>>, vector<8x1xf32>
    tpu.vector_store %arg7[%c0_151, %c0_152], %663 {strides = array<i32>} : memref<8x1xf32, #tpu.memory_space<vmem>>, vector<8x1xf32>,
    return
  }
}

</mosaic_0001>

<llo_original>
// kernel: tpu_custom_call.1
$region0: #{tpu_custom_call.1}
  #allocation0 [shape = 'u32[]', space=smem, size = 0x4, offset = 0x4, fixed_abs, tag = 'smem constant byte address 0x4 - core index']
  #allocation1 [shape = 'u32[144,128]{1,0:T(1,128)}', space=vmem, size = 0x12000, scoped, tag = 'internal scratch']
  #allocation2 [shape = 'f32[1,1]{1,0:T(1,128)S(1)}', space=vmem, size = 0x200, scoped, tag = 'scoped memory for tpu_custom_call.1']
  %s0 = inlined_call_operand.hbm [shape: f32[8,128], index: 0, kind: input, shape index: {}]
  %s1 = inlined_call_operand.hbm [shape: bf16[128,1024], index: 1, kind: input, shape index: {}]
  %s2 = inlined_call_operand.hbm [shape: f32[1,1024], index: 2, kind: input, shape index: {}]
  %s3 = inlined_call_operand.hbm [shape: bf16[128,512], index: 3, kind: input, shape index: {}]
  %s4 = inlined_call_operand.hbm [shape: bf16[128,512], index: 4, kind: input, shape index: {}]
  %s5 = inlined_call_operand.vmem [shape: f32[1,256], index: 5, kind: input, shape index: {}]
  %s6 = inlined_call_operand.<no memory space> [shape: f32[1,1], index: 6, kind: input, shape index: {}]
  %s7 = inlined_call_operand.vmem [shape: f32[8,1], index: 7, kind: output, shape index: {}]
  %s8 = sld [smem:[#allocation0]]
  $region58: #{tpu_custom_call.1} parent=0
    _
  %s10 = ssub.s32 1, %s8
  %s11 = scalar_select 0, %s10, %s8
  %v12 = vstv %s6
  %13 = vst [vmem:[#allocation2] sm:$0x1] %v12
  $region1: #{tpu_custom_call.1} parent=0
    #allocation3 [shape = 'u8[4096]{0}', space=vmem, size = 0x1000, scoped, tag = 'input window, operand 0, single buffered']
    #allocation4 [shape = 's32[1]{0}', space=sflag, size = 0x4, scoped, tag = 'scoped memory for tpu_custom_call.1']
    #allocation5 [shape = 'u8[262144]{0}', space=vmem, size = 0x40000, scoped, tag = 'input window, operand 1, single buffered']
    #allocation6 [shape = 's32[1]{0}', space=sflag, size = 0x4, scoped, tag = 'scoped memory for tpu_custom_call.1']
    #allocation7 [shape = 'u8[4096]{0}', space=vmem, size = 0x1000, scoped, tag = 'input window, operand 2, single buffered']
    #allocation8 [shape = 'u8[131072]{0}', space=vmem, size = 0x20000, scoped, tag = 'input window, operand 3, single buffered']
    #allocation9 [shape = 's32[1]{0}', space=sflag, size = 0x4, scoped, tag = 'scoped memory for tpu_custom_call.1']
    #allocation10 [shape = 'u8[131072]{0}', space=vmem, size = 0x20000, scoped, tag = 'input window, operand 4, single buffered']
    %14 = vsyncpa [#allocation4], 0
    %15 = vsyncpa [#allocation6], 0
    %16 = vsyncpa [#allocation9], 0
    // Predicated region
    $region2: #{tpu_custom_call.1} parent=1 // pred_check
      _
    $region3: #{tpu_custom_call.1} parent=1 // pred_check_branch
      %18 = sbr.rel (0) target = $region5
    $region4: #{tpu_custom_call.1} parent=1 // pred_region
      %s20 = ssub.s32 128, 128
      %21 = vsyncadd [#allocation4], %s20
      %s23 = sshll.u32 [#allocation3], 4
      %s24 = int_to_ptr.vmem [resolvable:$true] %s23
      %26 = dma.hbm_to_vmem [thread:$0]  %s0, 128, %s24, [#allocation4]
    $region5: #{tpu_custom_call.1} parent=1 // pred_fallthru
      _
    // Predicated region
    $region6: #{tpu_custom_call.1} parent=1 // pred_check
      _
    $region7: #{tpu_custom_call.1} parent=1 // pred_check_branch
      %28 = sbr.rel (0) target = $region9
    $region8: #{tpu_custom_call.1} parent=1 // pred_region
      %s30 = ssub.s32 8192, 8192
      %31 = vsyncadd [#allocation6], %s30
      %s32 = sshll.u32 [#allocation5], 4
      %s33 = int_to_ptr.vmem [resolvable:$true] %s32
      %38 = dma.hbm_to_vmem [thread:$0]  %s1, 8192, %s33, [#allocation6], 512, 512, 32
    $region9: #{tpu_custom_call.1} parent=1 // pred_fallthru
      _
    // Predicated region
    $region10: #{tpu_custom_call.1} parent=1 // pred_check
      _
    $region11: #{tpu_custom_call.1} parent=1 // pred_check_branch
      %40 = sbr.rel (0) target = $region13
    $region12: #{tpu_custom_call.1} parent=1 // pred_region
      %s42 = ssub.s32 128, 128
      %43 = vsyncadd [#allocation6], %s42
      %s45 = sshll.u32 [#allocation7], 4
      %s46 = int_to_ptr.vmem [resolvable:$true] %s45
      %48 = dma.hbm_to_vmem [thread:$0]  %s2, 128, %s46, [#allocation6]
    $region13: #{tpu_custom_call.1} parent=1 // pred_fallthru
      _
    // Predicated region
    $region14: #{tpu_custom_call.1} parent=1 // pred_check
      _
    $region15: #{tpu_custom_call.1} parent=1 // pred_check_branch
      %50 = sbr.rel (0) target = $region17
    $region16: #{tpu_custom_call.1} parent=1 // pred_region
      %s52 = ssub.s32 4096, 4096
      %53 = vsyncadd [#allocation9], %s52
      %s54 = sshll.u32 [#allocation8], 4
      %s55 = int_to_ptr.vmem [resolvable:$true] %s54
      %60 = dma.hbm_to_vmem [thread:$0]  %s3, 4096, %s55, [#allocation9], 256, 256, 16
    $region17: #{tpu_custom_call.1} parent=1 // pred_fallthru
      _
    // Predicated region
    $region18: #{tpu_custom_call.1} parent=1 // pred_check
      _
    $region19: #{tpu_custom_call.1} parent=1 // pred_check_branch
      %62 = sbr.rel (0) target = $region21
    $region20: #{tpu_custom_call.1} parent=1 // pred_region
      %s64 = ssub.s32 4096, 4096
      %65 = vsyncadd [#allocation9], %s64
      %s66 = sshll.u32 [#allocation10], 4
      %s67 = int_to_ptr.vmem [resolvable:$true] %s66
      %72 = dma.hbm_to_vmem [thread:$0]  %s4, 4096, %s67, [#allocation9], 256, 256, 16
    $region21: #{tpu_custom_call.1} parent=1 // pred_fallthru
      _
    // Predicated region
    $region22: #{tpu_custom_call.1} parent=1 // pred_check
      _
    $region23: #{tpu_custom_call.1} parent=1 // pred_check_branch
      %74 = sbr.rel (0) target = $region25
    $region24: #{tpu_custom_call.1} parent=1 // pred_region
      _
    $region25: #{tpu_custom_call.1} parent=1 // pred_fallthru
      _
    // Predicated region
    $region26: #{tpu_custom_call.1} parent=1 // pred_check
      _
    $region27: #{tpu_custom_call.1} parent=1 // pred_check_branch
      %76 = sbr.rel (0) target = $region29
    $region28: #{tpu_custom_call.1} parent=1 // pred_region
      _
    $region29: #{tpu_custom_call.1} parent=1 // pred_fallthru
      _
    // Predicated region
    $region30: #{tpu_custom_call.1} parent=1 // pred_check
      _
    $region31: #{tpu_custom_call.1} parent=1 // pred_check_branch
      %78 = sbr.rel (0) target = $region33
    $region32: #{tpu_custom_call.1} parent=1 // pred_region
      %79 = dma.done [#allocation4], 128
    $region33: #{tpu_custom_call.1} parent=1 // pred_fallthru
      _
    // Predicated region
    $region34: #{tpu_custom_call.1} parent=1 // pred_check
      _
    $region35: #{tpu_custom_call.1} parent=1 // pred_check_branch
      %81 = sbr.rel (0) target = $region37
    $region36: #{tpu_custom_call.1} parent=1 // pred_region
      %82 = dma.done [#allocation6], 8192
    $region37: #{tpu_custom_call.1} parent=1 // pred_fallthru
      _
    // Predicated region
    $region38: #{tpu_custom_call.1} parent=1 // pred_check
      _
    $region39: #{tpu_custom_call.1} parent=1 // pred_check_branch
      %84 = sbr.rel (0) target = $region41
    $region40: #{tpu_custom_call.1} parent=1 // pred_region
      %85 = dma.done [#allocation6], 128
    $region41: #{tpu_custom_call.1} parent=1 // pred_fallthru
      _
    // Predicated region
    $region42: #{tpu_custom_call.1} parent=1 // pred_check
      _
    $region43: #{tpu_custom_call.1} parent=1 // pred_check_branch
      %87 = sbr.rel (0) target = $region45
    $region44: #{tpu_custom_call.1} parent=1 // pred_region
      %88 = dma.done [#allocation9], 4096
    $region45: #{tpu_custom_call.1} parent=1 // pred_fallthru
      _
    // Predicated region
    $region46: #{tpu_custom_call.1} parent=1 // pred_check
      _
    $region47: #{tpu_custom_call.1} parent=1 // pred_check_branch
      %90 = sbr.rel (0) target = $region49
    $region48: #{tpu_custom_call.1} parent=1 // pred_region
      %91 = dma.done [#allocation9], 4096
    $region49: #{tpu_custom_call.1} parent=1 // pred_fallthru
      _
    %v93 = vld [vmem:[#allocation3] sm:$0xff]
    %v94 = vpack.c.bf16 %v93, %v93
    %v95 = vld [vmem:[#allocation5] sm:$0xff]
    %v96 = vld [vmem:[#allocation5 + $0x8] sm:$0xff]
    %v97 = vld [vmem:[#allocation5 + $0x10] sm:$0xff]
    %v98 = vld [vmem:[#allocation5 + $0x18] sm:$0xff]
    %v99 = vld [vmem:[#allocation5 + $0x20] sm:$0xff]
    %v100 = vld [vmem:[#allocation5 + $0x28] sm:$0xff]
    %v101 = vld [vmem:[#allocation5 + $0x30] sm:$0xff]
    %v102 = vld [vmem:[#allocation5 + $0x38] sm:$0xff]
    %v103 = vld [vmem:[#allocation5 + $0x40] sm:$0xff]
    %v104 = vld [vmem:[#allocation5 + $0x48] sm:$0xff]
    %v105 = vld [vmem:[#allocation5 + $0x50] sm:$0xff]
    %v106 = vld [vmem:[#allocation5 + $0x58] sm:$0xff]
    %v107 = vld [vmem:[#allocation5 + $0x60] sm:$0xff]
    %v108 = vld [vmem:[#allocation5 + $0x68] sm:$0xff]
    %v109 = vld [vmem:[#allocation5 + $0x70] sm:$0xff]
    %v110 = vld [vmem:[#allocation5 + $0x78] sm:$0xff]
    %v111 = vld [vmem:[#allocation5 + $0x80] sm:$0xff]
    %v112 = vld [vmem:[#allocation5 + $0x88] sm:$0xff]
    %v113 = vld [vmem:[#allocation5 + $0x90] sm:$0xff]
    %v114 = vld [vmem:[#allocation5 + $0x98] sm:$0xff]
    %v115 = vld [vmem:[#allocation5 + $0xa0] sm:$0xff]
    %v116 = vld [vmem:[#allocation5 + $0xa8] sm:$0xff]
    %v117 = vld [vmem:[#allocation5 + $0xb0] sm:$0xff]
    %v118 = vld [vmem:[#allocation5 + $0xb8] sm:$0xff]
    %v119 = vld [vmem:[#allocation5 + $0xc0] sm:$0xff]
    %v120 = vld [vmem:[#allocation5 + $0xc8] sm:$0xff]
    %v121 = vld [vmem:[#allocation5 + $0xd0] sm:$0xff]
    %v122 = vld [vmem:[#allocation5 + $0xd8] sm:$0xff]
    %v123 = vld [vmem:[#allocation5 + $0xe0] sm:$0xff]
    %v124 = vld [vmem:[#allocation5 + $0xe8] sm:$0xff]
    %v125 = vld [vmem:[#allocation5 + $0xf0] sm:$0xff]
    %v126 = vld [vmem:[#allocation5 + $0xf8] sm:$0xff]
    %v127 = vld [vmem:[#allocation5 + $0x100] sm:$0xff]
    %v128 = vld [vmem:[#allocation5 + $0x108] sm:$0xff]
    %v129 = vld [vmem:[#allocation5 + $0x110] sm:$0xff]
    %v130 = vld [vmem:[#allocation5 + $0x118] sm:$0xff]
    %v131 = vld [vmem:[#allocation5 + $0x120] sm:$0xff]
    %v132 = vld [vmem:[#allocation5 + $0x128] sm:$0xff]
    %v133 = vld [vmem:[#allocation5 + $0x130] sm:$0xff]
    %v134 = vld [vmem:[#allocation5 + $0x138] sm:$0xff]
    %v135 = vld [vmem:[#allocation5 + $0x140] sm:$0xff]
    %v136 = vld [vmem:[#allocation5 + $0x148] sm:$0xff]
    %v137 = vld [vmem:[#allocation5 + $0x150] sm:$0xff]
    %v138 = vld [vmem:[#allocation5 + $0x158] sm:$0xff]
    %v139 = vld [vmem:[#allocation5 + $0x160] sm:$0xff]
    %v140 = vld [vmem:[#allocation5 + $0x168] sm:$0xff]
    %v141 = vld [vmem:[#allocation5 + $0x170] sm:$0xff]
    %v142 = vld [vmem:[#allocation5 + $0x178] sm:$0xff]
    %v143 = vld [vmem:[#allocation5 + $0x180] sm:$0xff]
    %v144 = vld [vmem:[#allocation5 + $0x188] sm:$0xff]
    %v145 = vld [vmem:[#allocation5 + $0x190] sm:$0xff]
    %v146 = vld [vmem:[#allocation5 + $0x198] sm:$0xff]
    %v147 = vld [vmem:[#allocation5 + $0x1a0] sm:$0xff]
    %v148 = vld [vmem:[#allocation5 + $0x1a8] sm:$0xff]
    %v149 = vld [vmem:[#allocation5 + $0x1b0] sm:$0xff]
    %v150 = vld [vmem:[#allocation5 + $0x1b8] sm:$0xff]
    %v151 = vld [vmem:[#allocation5 + $0x1c0] sm:$0xff]
    %v152 = vld [vmem:[#allocation5 + $0x1c8] sm:$0xff]
    %v153 = vld [vmem:[#allocation5 + $0x1d0] sm:$0xff]
    %v154 = vld [vmem:[#allocation5 + $0x1d8] sm:$0xff]
    %v155 = vld [vmem:[#allocation5 + $0x1e0] sm:$0xff]
    %v156 = vld [vmem:[#allocation5 + $0x1e8] sm:$0xff]
    %v157 = vld [vmem:[#allocation5 + $0x1f0] sm:$0xff]
    %v158 = vld [vmem:[#allocation5 + $0x1f8] sm:$0xff]
    %v159 = vld [vmem:[#allocation7] sm:$0xff]
    %v161 = vlaneseq
    %v162 = vshrl.u32 %v161, 7
    %v163 = vsub.s32 0, %v162
    %v164 = vrot.slane %v159, %v163
    %v165 = vlaneseq
    %v166 = vshrl.u32 %v165, 7
    %v167 = vsub.s32 1, %v166
    %v168 = vrot.slane %v159, %v167
    %v169 = vlaneseq
    %v170 = vshrl.u32 %v169, 7
    %v171 = vsub.s32 2, %v170
    %v172 = vrot.slane %v159, %v171
    %v173 = vlaneseq
    %v174 = vshrl.u32 %v173, 7
    %v175 = vsub.s32 3, %v174
    %v176 = vrot.slane %v159, %v175
    %v177 = vlaneseq
    %v178 = vshrl.u32 %v177, 7
    %v179 = vsub.s32 4, %v178
    %v180 = vrot.slane %v159, %v179
    %v181 = vlaneseq
    %v182 = vshrl.u32 %v181, 7
    %v183 = vsub.s32 5, %v182
    %v184 = vrot.slane %v159, %v183
    %v185 = vlaneseq
    %v186 = vshrl.u32 %v185, 7
    %v187 = vsub.s32 6, %v186
    %v188 = vrot.slane %v159, %v187
    %v189 = vlaneseq
    %v190 = vshrl.u32 %v189, 7
    %v191 = vsub.s32 7, %v190
    %v192 = vrot.slane %v159, %v191
    %v265 = vunpack.c.l.b16 %v95
    %v266 = vunpack.c.h.b16 %v95
    %v267 = vunpack.c.l.b16 %v96
    %v268 = vunpack.c.h.b16 %v96
    %v269 = vunpack.c.l.b16 %v97
    %v270 = vunpack.c.h.b16 %v97
    %v271 = vunpack.c.l.b16 %v98
    %v272 = vunpack.c.h.b16 %v98
    %v273 = vunpack.c.l.b16 %v99
    %v274 = vunpack.c.h.b16 %v99
    %v275 = vunpack.c.l.b16 %v100
    %v276 = vunpack.c.h.b16 %v100
    %v277 = vunpack.c.l.b16 %v101
    %v278 = vunpack.c.h.b16 %v101
    %v279 = vunpack.c.l.b16 %v102
    %v280 = vunpack.c.h.b16 %v102
    %v281 = vunpack.c.l.b16 %v103
    %v282 = vunpack.c.h.b16 %v103
    %v283 = vunpack.c.l.b16 %v104
    %v284 = vunpack.c.h.b16 %v104
    %v285 = vunpack.c.l.b16 %v105
    %v286 = vunpack.c.h.b16 %v105
    %v287 = vunpack.c.l.b16 %v106
    %v288 = vunpack.c.h.b16 %v106
    %v289 = vunpack.c.l.b16 %v107
    %v290 = vunpack.c.h.b16 %v107
    %v291 = vunpack.c.l.b16 %v108
    %v292 = vunpack.c.h.b16 %v108
    %v293 = vunpack.c.l.b16 %v109
    %v294 = vunpack.c.h.b16 %v109
    %v295 = vunpack.c.l.b16 %v110
    %v296 = vunpack.c.h.b16 %v110
    %v297 = vunpack.c.l.b16 %v111
    %v298 = vunpack.c.h.b16 %v111
    %v299 = vunpack.c.l.b16 %v112
    %v300 = vunpack.c.h.b16 %v112
    %v301 = vunpack.c.l.b16 %v113
    %v302 = vunpack.c.h.b16 %v113
    %v303 = vunpack.c.l.b16 %v114
    %v304 = vunpack.c.h.b16 %v114
    %v305 = vunpack.c.l.b16 %v115
    %v306 = vunpack.c.h.b16 %v115
    %v307 = vunpack.c.l.b16 %v116
    %v308 = vunpack.c.h.b16 %v116
    %v309 = vunpack.c.l.b16 %v117
    %v310 = vunpack.c.h.b16 %v117
    %v311 = vunpack.c.l.b16 %v118
    %v312 = vunpack.c.h.b16 %v118
    %v313 = vunpack.c.l.b16 %v119
    %v314 = vunpack.c.h.b16 %v119
    %v315 = vunpack.c.l.b16 %v120
    %v316 = vunpack.c.h.b16 %v120
    %v317 = vunpack.c.l.b16 %v121
    %v318 = vunpack.c.h.b16 %v121
    %v319 = vunpack.c.l.b16 %v122
    %v320 = vunpack.c.h.b16 %v122
    %v321 = vunpack.c.l.b16 %v123
    %v322 = vunpack.c.h.b16 %v123
    %v323 = vunpack.c.l.b16 %v124
    %v324 = vunpack.c.h.b16 %v124
    %v325 = vunpack.c.l.b16 %v125
    %v326 = vunpack.c.h.b16 %v125
    %v327 = vunpack.c.l.b16 %v126
    %v328 = vunpack.c.h.b16 %v126
    %v329 = vunpack.c.l.b16 %v127
    %v330 = vunpack.c.h.b16 %v127
    %v331 = vunpack.c.l.b16 %v128
    %v332 = vunpack.c.h.b16 %v128
    %v333 = vunpack.c.l.b16 %v129
    %v334 = vunpack.c.h.b16 %v129
    %v335 = vunpack.c.l.b16 %v130
    %v336 = vunpack.c.h.b16 %v130
    %v337 = vunpack.c.l.b16 %v131
    %v338 = vunpack.c.h.b16 %v131
    %v339 = vunpack.c.l.b16 %v132
    %v340 = vunpack.c.h.b16 %v132
    %v341 = vunpack.c.l.b16 %v133
    %v342 = vunpack.c.h.b16 %v133
    %v343 = vunpack.c.l.b16 %v134
    %v344 = vunpack.c.h.b16 %v134
    %v345 = vunpack.c.l.b16 %v135
    %v346 = vunpack.c.h.b16 %v135
    %v347 = vunpack.c.l.b16 %v136
    %v348 = vunpack.c.h.b16 %v136
    %v349 = vunpack.c.l.b16 %v137
    %v350 = vunpack.c.h.b16 %v137
    %v351 = vunpack.c.l.b16 %v138
    %v352 = vunpack.c.h.b16 %v138
    %v353 = vunpack.c.l.b16 %v139
    %v354 = vunpack.c.h.b16 %v139
    %v355 = vunpack.c.l.b16 %v140
    %v356 = vunpack.c.h.b16 %v140
    %v357 = vunpack.c.l.b16 %v141
    %v358 = vunpack.c.h.b16 %v141
    %v359 = vunpack.c.l.b16 %v142
    %v360 = vunpack.c.h.b16 %v142
    %v361 = vunpack.c.l.b16 %v143
    %v362 = vunpack.c.h.b16 %v143
    %v363 = vunpack.c.l.b16 %v144
    %v364 = vunpack.c.h.b16 %v144
    %v365 = vunpack.c.l.b16 %v145
    %v366 = vunpack.c.h.b16 %v145
    %v367 = vunpack.c.l.b16 %v146
    %v368 = vunpack.c.h.b16 %v146
    %v369 = vunpack.c.l.b16 %v147
    %v370 = vunpack.c.h.b16 %v147
    %v371 = vunpack.c.l.b16 %v148
    %v372 = vunpack.c.h.b16 %v148
    %v373 = vunpack.c.l.b16 %v149
    %v374 = vunpack.c.h.b16 %v149
    %v375 = vunpack.c.l.b16 %v150
    %v376 = vunpack.c.h.b16 %v150
    %v377 = vunpack.c.l.b16 %v151
    %v378 = vunpack.c.h.b16 %v151
    %v379 = vunpack.c.l.b16 %v152
    %v380 = vunpack.c.h.b16 %v152
    %v381 = vunpack.c.l.b16 %v153
    %v382 = vunpack.c.h.b16 %v153
    %v383 = vunpack.c.l.b16 %v154
    %v384 = vunpack.c.h.b16 %v154
    %v385 = vunpack.c.l.b16 %v155
    %v386 = vunpack.c.h.b16 %v155
    %v387 = vunpack.c.l.b16 %v156
    %v388 = vunpack.c.h.b16 %v156
    %v389 = vunpack.c.l.b16 %v157
    %v390 = vunpack.c.h.b16 %v157
    %v391 = vunpack.c.l.b16 %v158
    %v392 = vunpack.c.h.b16 %v158
    %v393 = vpack.c.b16 %v273, %v265
    %v394 = vpack.c.b16 %v274, %v266
    %v395 = vpack.c.b16 %v275, %v267
    %v396 = vpack.c.b16 %v276, %v268
    %v397 = vpack.c.b16 %v277, %v269
    %v398 = vpack.c.b16 %v278, %v270
    %v399 = vpack.c.b16 %v279, %v271
    %v400 = vpack.c.b16 %v280, %v272
    %v401 = vpack.c.b16 %v289, %v281
    %v402 = vpack.c.b16 %v290, %v282
    %v403 = vpack.c.b16 %v291, %v283
    %v404 = vpack.c.b16 %v292, %v284
    %v405 = vpack.c.b16 %v293, %v285
    %v406 = vpack.c.b16 %v294, %v286
    %v407 = vpack.c.b16 %v295, %v287
    %v408 = vpack.c.b16 %v296, %v288
    %v409 = vpack.c.b16 %v305, %v297
    %v410 = vpack.c.b16 %v306, %v298
    %v411 = vpack.c.b16 %v307, %v299
    %v412 = vpack.c.b16 %v308, %v300
    %v413 = vpack.c.b16 %v309, %v301
    %v414 = vpack.c.b16 %v310, %v302
    %v415 = vpack.c.b16 %v311, %v303
    %v416 = vpack.c.b16 %v312, %v304
    %v417 = vpack.c.b16 %v321, %v313
    %v418 = vpack.c.b16 %v322, %v314
    %v419 = vpack.c.b16 %v323, %v315
    %v420 = vpack.c.b16 %v324, %v316
    %v421 = vpack.c.b16 %v325, %v317
    %v422 = vpack.c.b16 %v326, %v318
    %v423 = vpack.c.b16 %v327, %v319
    %v424 = vpack.c.b16 %v328, %v320
    %v425 = vpack.c.b16 %v337, %v329
    %v426 = vpack.c.b16 %v338, %v330
    %v427 = vpack.c.b16 %v339, %v331
    %v428 = vpack.c.b16 %v340, %v332
    %v429 = vpack.c.b16 %v341, %v333
    %v430 = vpack.c.b16 %v342, %v334
    %v431 = vpack.c.b16 %v343, %v335
    %v432 = vpack.c.b16 %v344, %v336
    %v433 = vpack.c.b16 %v353, %v345
    %v434 = vpack.c.b16 %v354, %v346
    %v435 = vpack.c.b16 %v355, %v347
    %v436 = vpack.c.b16 %v356, %v348
    %v437 = vpack.c.b16 %v357, %v349
    %v438 = vpack.c.b16 %v358, %v350
    %v439 = vpack.c.b16 %v359, %v351
    %v440 = vpack.c.b16 %v360, %v352
    %v441 = vpack.c.b16 %v369, %v361
    %v442 = vpack.c.b16 %v370, %v362
    %v443 = vpack.c.b16 %v371, %v363
    %v444 = vpack.c.b16 %v372, %v364
    %v445 = vpack.c.b16 %v373, %v365
    %v446 = vpack.c.b16 %v374, %v366
    %v447 = vpack.c.b16 %v375, %v367
    %v448 = vpack.c.b16 %v376, %v368
    %v449 = vpack.c.b16 %v385, %v377
    %v450 = vpack.c.b16 %v386, %v378
    %v451 = vpack.c.b16 %v387, %v379
    %v452 = vpack.c.b16 %v388, %v380
    %v453 = vpack.c.b16 %v389, %v381
    %v454 = vpack.c.b16 %v390, %v382
    %v455 = vpack.c.b16 %v391, %v383
    %v456 = vpack.c.b16 %v392, %v384
    %521 = vmatprep.subr.bf16.mxu0 %v450
    %522 = vmatpush1.bf16.msra.mxu0 %v449
    %523 = vmatprep.subr.bf16.mxu0 %v442
    %524 = vmatpush1.bf16.msra.mxu0 %v441
    %525 = vmatprep.subr.bf16.mxu0 %v434
    %526 = vmatpush1.bf16.msra.mxu0 %v433
    %527 = vmatprep.subr.bf16.mxu0 %v426
    %528 = vmatpush1.bf16.msra.mxu0 %v425
    %529 = vmatprep.subr.bf16.mxu0 %v418
    %530 = vmatpush1.bf16.msra.mxu0 %v417
    %531 = vmatprep.subr.bf16.mxu0 %v410
    %532 = vmatpush1.bf16.msra.mxu0 %v409
    %533 = vmatprep.subr.bf16.mxu0 %v402
    %534 = vmatpush1.bf16.msra.mxu0 %v401
    %535 = vmatprep.subr.bf16.mxu0 %v394
    %536 = vmatpush1.bf16.msra.mxu0 %v393
    %537 = vmatprep.subr.bf16.mxu0 0
    %538 = vmatpush2.bf16.msra.mxu0 0
    %539 = vmatprep.subr.bf16.mxu0 0
    %540 = vmatpush2.bf16.msra.mxu0 0
    %541 = vmatprep.subr.bf16.mxu0 0
    %542 = vmatpush2.bf16.msra.mxu0 0
    %543 = vmatprep.subr.bf16.mxu0 0
    %544 = vmatpush2.bf16.msra.mxu0 0
    %545 = vmatprep.subr.bf16.mxu0 0
    %546 = vmatpush2.bf16.msra.mxu0 0
    %547 = vmatprep.subr.bf16.mxu0 0
    %548 = vmatpush2.bf16.msra.mxu0 0
    %549 = vmatprep.subr.bf16.mxu0 0
    %550 = vmatpush2.bf16.msra.mxu0 0
    %551 = vmatprep.subr.bf16.mxu0 0
    %552 = vmatpush2.bf16.msra.mxu0 0
    %553 = vmatprep.mubr.bf16.mxu0 0
    %554 = vmatmul.mubr.bf16.gmra.mxu0 %v94
    %v555 = vpop.f32.mrf.mxu0
    %v556 = vadd.f32 %v164, %v555
    %v557 = vpop.f32.mrf.mxu0
    %v558 = vadd.f32 %v168, %v557
    %v559 = vpop.f32.mrf.mxu0
    %v560 = vpop.f32.mrf.mxu0
    %561 = vdwg.mxu0
    %562 = vmatprep.subr.bf16.mxu0 %v452
    %563 = vmatpush1.bf16.msra.mxu0 %v451
    %564 = vmatprep.subr.bf16.mxu0 %v444
    %565 = vmatpush1.bf16.msra.mxu0 %v443
    %566 = vmatprep.subr.bf16.mxu0 %v436
    %567 = vmatpush1.bf16.msra.mxu0 %v435
    %568 = vmatprep.subr.bf16.mxu0 %v428
    %569 = vmatpush1.bf16.msra.mxu0 %v427
    %570 = vmatprep.subr.bf16.mxu0 %v420
    %571 = vmatpush1.bf16.msra.mxu0 %v419
    %572 = vmatprep.subr.bf16.mxu0 %v412
    %573 = vmatpush1.bf16.msra.mxu0 %v411
    %574 = vmatprep.subr.bf16.mxu0 %v404
    %575 = vmatpush1.bf16.msra.mxu0 %v403
    %576 = vmatprep.subr.bf16.mxu0 %v396
    %577 = vmatpush1.bf16.msra.mxu0 %v395
    %578 = vmatprep.subr.bf16.mxu0 0
    %579 = vmatpush2.bf16.msra.mxu0 0
    %580 = vmatprep.subr.bf16.mxu0 0
    %581 = vmatpush2.bf16.msra.mxu0 0
    %582 = vmatprep.subr.bf16.mxu0 0
    %583 = vmatpush2.bf16.msra.mxu0 0
    %584 = vmatprep.subr.bf16.mxu0 0
    %585 = vmatpush2.bf16.msra.mxu0 0
    %586 = vmatprep.subr.bf16.mxu0 0
    %587 = vmatpush2.bf16.msra.mxu0 0
    %588 = vmatprep.subr.bf16.mxu0 0
    %589 = vmatpush2.bf16.msra.mxu0 0
    %590 = vmatprep.subr.bf16.mxu0 0
    %591 = vmatpush2.bf16.msra.mxu0 0
    %592 = vmatprep.subr.bf16.mxu0 0
    %593 = vmatpush2.bf16.msra.mxu0 0
    %594 = vmatprep.mubr.bf16.mxu0 0
    %595 = vmatmul.mubr.bf16.gmra.mxu0 %v94
    %v596 = vpop.f32.mrf.mxu0
    %v597 = vadd.f32 %v172, %v596
    %v598 = vpop.f32.mrf.mxu0
    %v599 = vadd.f32 %v176, %v598
    %v600 = vpop.f32.mrf.mxu0
    %v601 = vpop.f32.mrf.mxu0
    %602 = vdwg.mxu0
    %603 = vmatprep.subr.bf16.mxu0 %v454
    %604 = vmatpush1.bf16.msra.mxu0 %v453
    %605 = vmatprep.subr.bf16.mxu0 %v446
    %606 = vmatpush1.bf16.msra.mxu0 %v445
    %607 = vmatprep.subr.bf16.mxu0 %v438
    %608 = vmatpush1.bf16.msra.mxu0 %v437
    %609 = vmatprep.subr.bf16.mxu0 %v430
    %610 = vmatpush1.bf16.msra.mxu0 %v429
    %611 = vmatprep.subr.bf16.mxu0 %v422
    %612 = vmatpush1.bf16.msra.mxu0 %v421
    %613 = vmatprep.subr.bf16.mxu0 %v414
    %614 = vmatpush1.bf16.msra.mxu0 %v413
    %615 = vmatprep.subr.bf16.mxu0 %v406
    %616 = vmatpush1.bf16.msra.mxu0 %v405
    %617 = vmatprep.subr.bf16.mxu0 %v398
    %618 = vmatpush1.bf16.msra.mxu0 %v397
    %619 = vmatprep.subr.bf16.mxu0 0
    %620 = vmatpush2.bf16.msra.mxu0 0
    %621 = vmatprep.subr.bf16.mxu0 0
    %622 = vmatpush2.bf16.msra.mxu0 0
    %623 = vmatprep.subr.bf16.mxu0 0
    %624 = vmatpush2.bf16.msra.mxu0 0
    %625 = vmatprep.subr.bf16.mxu0 0
    %626 = vmatpush2.bf16.msra.mxu0 0
    %627 = vmatprep.subr.bf16.mxu0 0
    %628 = vmatpush2.bf16.msra.mxu0 0
    %629 = vmatprep.subr.bf16.mxu0 0
    %630 = vmatpush2.bf16.msra.mxu0 0
    %631 = vmatprep.subr.bf16.mxu0 0
    %632 = vmatpush2.bf16.msra.mxu0 0
    %633 = vmatprep.subr.bf16.mxu0 0
    %634 = vmatpush2.bf16.msra.mxu0 0
    %635 = vmatprep.mubr.bf16.mxu0 0
    %636 = vmatmul.mubr.bf16.gmra.mxu0 %v94
    %v637 = vpop.f32.mrf.mxu0
    %v638 = vadd.f32 %v180, %v637
    %v639 = vpop.f32.mrf.mxu0
    %v640 = vadd.f32 %v184, %v639
    %v641 = vpop.f32.mrf.mxu0
    %v642 = vpop.f32.mrf.mxu0
    %643 = vdwg.mxu0
    %644 = vmatprep.subr.bf16.mxu0 %v456
    %645 = vmatpush1.bf16.msra.mxu0 %v455
    %646 = vmatprep.subr.bf16.mxu0 %v448
    %647 = vmatpush1.bf16.msra.mxu0 %v447
    %648 = vmatprep.subr.bf16.mxu0 %v440
    %649 = vmatpush1.bf16.msra.mxu0 %v439
    %650 = vmatprep.subr.bf16.mxu0 %v432
    %651 = vmatpush1.bf16.msra.mxu0 %v431
    %652 = vmatprep.subr.bf16.mxu0 %v424
    %653 = vmatpush1.bf16.msra.mxu0 %v423
    %654 = vmatprep.subr.bf16.mxu0 %v416
    %655 = vmatpush1.bf16.msra.mxu0 %v415
    %656 = vmatprep.subr.bf16.mxu0 %v408
    %657 = vmatpush1.bf16.msra.mxu0 %v407
    %658 = vmatprep.subr.bf16.mxu0 %v400
    %659 = vmatpush1.bf16.msra.mxu0 %v399
    %660 = vmatprep.subr.bf16.mxu0 0
    %661 = vmatpush2.bf16.msra.mxu0 0
    %662 = vmatprep.subr.bf16.mxu0 0
    %663 = vmatpush2.bf16.msra.mxu0 0
    %664 = vmatprep.subr.bf16.mxu0 0
    %665 = vmatpush2.bf16.msra.mxu0 0
    %666 = vmatprep.subr.bf16.mxu0 0
    %667 = vmatpush2.bf16.msra.mxu0 0
    %668 = vmatprep.subr.bf16.mxu0 0
    %669 = vmatpush2.bf16.msra.mxu0 0
    %670 = vmatprep.subr.bf16.mxu0 0
    %671 = vmatpush2.bf16.msra.mxu0 0
    %672 = vmatprep.subr.bf16.mxu0 0
    %673 = vmatpush2.bf16.msra.mxu0 0
    %674 = vmatprep.subr.bf16.mxu0 0
    %675 = vmatpush2.bf16.msra.mxu0 0
    %676 = vmatprep.mubr.bf16.mxu0 0
    %677 = vmatmul.mubr.bf16.gmra.mxu0 %v94
    %v678 = vpop.f32.mrf.mxu0
    %v679 = vadd.f32 %v188, %v678
    %v680 = vpop.f32.mrf.mxu0
    %v681 = vadd.f32 %v192, %v680
    %v682 = vpop.f32.mrf.mxu0
    %v683 = vpop.f32.mrf.mxu0
    %684 = vdwg.mxu0
    %v685 = vld [vmem:[%s5] sm:$0x3]
    %v686 = vlaneseq
    %v687 = vshrl.u32 %v686, 7
    %v688 = vld [vmem:[#allocation8] sm:$0xff]
    %v689 = vld [vmem:[#allocation8 + $0x8] sm:$0xff]
    %v690 = vld [vmem:[#allocation8 + $0x10] sm:$0xff]
    %v691 = vld [vmem:[#allocation8 + $0x18] sm:$0xff]
    %v692 = vld [vmem:[#allocation8 + $0x20] sm:$0xff]
    %v693 = vld [vmem:[#allocation8 + $0x28] sm:$0xff]
    %v694 = vld [vmem:[#allocation8 + $0x30] sm:$0xff]
    %v695 = vld [vmem:[#allocation8 + $0x38] sm:$0xff]
    %v696 = vld [vmem:[#allocation8 + $0x40] sm:$0xff]
    %v697 = vld [vmem:[#allocation8 + $0x48] sm:$0xff]
    %v698 = vld [vmem:[#allocation8 + $0x50] sm:$0xff]
    %v699 = vld [vmem:[#allocation8 + $0x58] sm:$0xff]
    %v700 = vld [vmem:[#allocation8 + $0x60] sm:$0xff]
    %v701 = vld [vmem:[#allocation8 + $0x68] sm:$0xff]
    %v702 = vld [vmem:[#allocation8 + $0x70] sm:$0xff]
    %v703 = vld [vmem:[#allocation8 + $0x78] sm:$0xff]
    %v704 = vld [vmem:[#allocation8 + $0x80] sm:$0xff]
    %v705 = vld [vmem:[#allocation8 + $0x88] sm:$0xff]
    %v706 = vld [vmem:[#allocation8 + $0x90] sm:$0xff]
    %v707 = vld [vmem:[#allocation8 + $0x98] sm:$0xff]
    %v708 = vld [vmem:[#allocation8 + $0xa0] sm:$0xff]
    %v709 = vld [vmem:[#allocation8 + $0xa8] sm:$0xff]
    %v710 = vld [vmem:[#allocation8 + $0xb0] sm:$0xff]
    %v711 = vld [vmem:[#allocation8 + $0xb8] sm:$0xff]
    %v712 = vld [vmem:[#allocation8 + $0xc0] sm:$0xff]
    %v713 = vld [vmem:[#allocation8 + $0xc8] sm:$0xff]
    %v714 = vld [vmem:[#allocation8 + $0xd0] sm:$0xff]
    %v715 = vld [vmem:[#allocation8 + $0xd8] sm:$0xff]
    %v716 = vld [vmem:[#allocation8 + $0xe0] sm:$0xff]
    %v717 = vld [vmem:[#allocation8 + $0xe8] sm:$0xff]
    %v718 = vld [vmem:[#allocation8 + $0xf0] sm:$0xff]
    %v719 = vld [vmem:[#allocation8 + $0xf8] sm:$0xff]
    %v752 = vunpack.c.l.b16 %v688
    %v753 = vunpack.c.h.b16 %v688
    %v754 = vunpack.c.l.b16 %v689
    %v755 = vunpack.c.h.b16 %v689
    %v756 = vunpack.c.l.b16 %v690
    %v757 = vunpack.c.h.b16 %v690
    %v758 = vunpack.c.l.b16 %v691
    %v759 = vunpack.c.h.b16 %v691
    %v760 = vunpack.c.l.b16 %v692
    %v761 = vunpack.c.h.b16 %v692
    %v762 = vunpack.c.l.b16 %v693
    %v763 = vunpack.c.h.b16 %v693
    %v764 = vunpack.c.l.b16 %v694
    %v765 = vunpack.c.h.b16 %v694
    %v766 = vunpack.c.l.b16 %v695
    %v767 = vunpack.c.h.b16 %v695
    %v768 = vunpack.c.l.b16 %v696
    %v769 = vunpack.c.h.b16 %v696
    %v770 = vunpack.c.l.b16 %v697
    %v771 = vunpack.c.h.b16 %v697
    %v772 = vunpack.c.l.b16 %v698
    %v773 = vunpack.c.h.b16 %v698
    %v774 = vunpack.c.l.b16 %v699
    %v775 = vunpack.c.h.b16 %v699
    %v776 = vunpack.c.l.b16 %v700
    %v777 = vunpack.c.h.b16 %v700
    %v778 = vunpack.c.l.b16 %v701
    %v779 = vunpack.c.h.b16 %v701
    %v780 = vunpack.c.l.b16 %v702
    %v781 = vunpack.c.h.b16 %v702
    %v782 = vunpack.c.l.b16 %v703
    %v783 = vunpack.c.h.b16 %v703
    %v784 = vunpack.c.l.b16 %v704
    %v785 = vunpack.c.h.b16 %v704
    %v786 = vunpack.c.l.b16 %v705
    %v787 = vunpack.c.h.b16 %v705
    %v788 = vunpack.c.l.b16 %v706
    %v789 = vunpack.c.h.b16 %v706
    %v790 = vunpack.c.l.b16 %v707
    %v791 = vunpack.c.h.b16 %v707
    %v792 = vunpack.c.l.b16 %v708
    %v793 = vunpack.c.h.b16 %v708
    %v794 = vunpack.c.l.b16 %v709
    %v795 = vunpack.c.h.b16 %v709
    %v796 = vunpack.c.l.b16 %v710
    %v797 = vunpack.c.h.b16 %v710
    %v798 = vunpack.c.l.b16 %v711
    %v799 = vunpack.c.h.b16 %v711
    %v800 = vunpack.c.l.b16 %v712
    %v801 = vunpack.c.h.b16 %v712
    %v802 = vunpack.c.l.b16 %v713
    %v803 = vunpack.c.h.b16 %v713
    %v804 = vunpack.c.l.b16 %v714
    %v805 = vunpack.c.h.b16 %v714
    %v806 = vunpack.c.l.b16 %v715
    %v807 = vunpack.c.h.b16 %v715
    %v808 = vunpack.c.l.b16 %v716
    %v809 = vunpack.c.h.b16 %v716
    %v810 = vunpack.c.l.b16 %v717
    %v811 = vunpack.c.h.b16 %v717
    %v812 = vunpack.c.l.b16 %v718
    %v813 = vunpack.c.h.b16 %v718
    %v814 = vunpack.c.l.b16 %v719
    %v815 = vunpack.c.h.b16 %v719
    %v816 = vpack.c.b16 %v756, %v752
    %v817 = vpack.c.b16 %v757, %v753
    %v818 = vpack.c.b16 %v758, %v754
    %v819 = vpack.c.b16 %v759, %v755
    %v820 = vpack.c.b16 %v764, %v760
    %v821 = vpack.c.b16 %v765, %v761
    %v822 = vpack.c.b16 %v766, %v762
    %v823 = vpack.c.b16 %v767, %v763
    %v824 = vpack.c.b16 %v772, %v768
    %v825 = vpack.c.b16 %v773, %v769
    %v826 = vpack.c.b16 %v774, %v770
    %v827 = vpack.c.b16 %v775, %v771
    %v828 = vpack.c.b16 %v780, %v776
    %v829 = vpack.c.b16 %v781, %v777
    %v830 = vpack.c.b16 %v782, %v778
    %v831 = vpack.c.b16 %v783, %v779
    %v832 = vpack.c.b16 %v788, %v784
    %v833 = vpack.c.b16 %v789, %v785
    %v834 = vpack.c.b16 %v790, %v786
    %v835 = vpack.c.b16 %v791, %v787
    %v836 = vpack.c.b16 %v796, %v792
    %v837 = vpack.c.b16 %v797, %v793
    %v838 = vpack.c.b16 %v798, %v794
    %v839 = vpack.c.b16 %v799, %v795
    %v840 = vpack.c.b16 %v804, %v800
    %v841 = vpack.c.b16 %v805, %v801
    %v842 = vpack.c.b16 %v806, %v802
    %v843 = vpack.c.b16 %v807, %v803
    %v844 = vpack.c.b16 %v812, %v808
    %v845 = vpack.c.b16 %v813, %v809
    %v846 = vpack.c.b16 %v814, %v810
    %v847 = vpack.c.b16 %v815, %v811
    %880 = vmatprep.subr.bf16.mxu0 %v845
    %881 = vmatpush1.bf16.msra.mxu0 %v844
    %882 = vmatprep.subr.bf16.mxu0 %v841
    %883 = vmatpush1.bf16.msra.mxu0 %v840
    %884 = vmatprep.subr.bf16.mxu0 %v837
    %885 = vmatpush1.bf16.msra.mxu0 %v836
    %886 = vmatprep.subr.bf16.mxu0 %v833
    %887 = vmatpush1.bf16.msra.mxu0 %v832
    %888 = vmatprep.subr.bf16.mxu0 %v829
    %889 = vmatpush1.bf16.msra.mxu0 %v828
    %890 = vmatprep.subr.bf16.mxu0 %v825
    %891 = vmatpush1.bf16.msra.mxu0 %v824
    %892 = vmatprep.subr.bf16.mxu0 %v821
    %893 = vmatpush1.bf16.msra.mxu0 %v820
    %894 = vmatprep.subr.bf16.mxu0 %v817
    %895 = vmatpush1.bf16.msra.mxu0 %v816
    %896 = vmatprep.subr.bf16.mxu0 0
    %897 = vmatpush2.bf16.msra.mxu0 0
    %898 = vmatprep.subr.bf16.mxu0 0
    %899 = vmatpush2.bf16.msra.mxu0 0
    %900 = vmatprep.subr.bf16.mxu0 0
    %901 = vmatpush2.bf16.msra.mxu0 0
    %902 = vmatprep.subr.bf16.mxu0 0
    %903 = vmatpush2.bf16.msra.mxu0 0
    %904 = vmatprep.subr.bf16.mxu0 0
    %905 = vmatpush2.bf16.msra.mxu0 0
    %906 = vmatprep.subr.bf16.mxu0 0
    %907 = vmatpush2.bf16.msra.mxu0 0
    %908 = vmatprep.subr.bf16.mxu0 0
    %909 = vmatpush2.bf16.msra.mxu0 0
    %910 = vmatprep.subr.bf16.mxu0 0
    %911 = vmatpush2.bf16.msra.mxu0 0
    %912 = vmatprep.mubr.bf16.mxu0 0
    %913 = vmatmul.mubr.bf16.gmra.mxu0 0
    %v914 = vpop.f32.mrf.mxu0
    %v915 = vadd.f32 0.0, %v914
    %v916 = vpop.f32.mrf.mxu0
    %v917 = vadd.f32 0.0, %v916
    %v918 = vpop.f32.mrf.mxu0
    %v919 = vpop.f32.mrf.mxu0
    %920 = vdwg.mxu0
    %921 = vmatprep.subr.bf16.mxu0 %v847
    %922 = vmatpush1.bf16.msra.mxu0 %v846
    %923 = vmatprep.subr.bf16.mxu0 %v843
    %924 = vmatpush1.bf16.msra.mxu0 %v842
    %925 = vmatprep.subr.bf16.mxu0 %v839
    %926 = vmatpush1.bf16.msra.mxu0 %v838
    %927 = vmatprep.subr.bf16.mxu0 %v835
    %928 = vmatpush1.bf16.msra.mxu0 %v834
    %929 = vmatprep.subr.bf16.mxu0 %v831
    %930 = vmatpush1.bf16.msra.mxu0 %v830
    %931 = vmatprep.subr.bf16.mxu0 %v827
    %932 = vmatpush1.bf16.msra.mxu0 %v826
    %933 = vmatprep.subr.bf16.mxu0 %v823
    %934 = vmatpush1.bf16.msra.mxu0 %v822
    %935 = vmatprep.subr.bf16.mxu0 %v819
    %936 = vmatpush1.bf16.msra.mxu0 %v818
    %937 = vmatprep.subr.bf16.mxu0 0
    %938 = vmatpush2.bf16.msra.mxu0 0
    %939 = vmatprep.subr.bf16.mxu0 0
    %940 = vmatpush2.bf16.msra.mxu0 0
    %941 = vmatprep.subr.bf16.mxu0 0
    %942 = vmatpush2.bf16.msra.mxu0 0
    %943 = vmatprep.subr.bf16.mxu0 0
    %944 = vmatpush2.bf16.msra.mxu0 0
    %945 = vmatprep.subr.bf16.mxu0 0
    %946 = vmatpush2.bf16.msra.mxu0 0
    %947 = vmatprep.subr.bf16.mxu0 0
    %948 = vmatpush2.bf16.msra.mxu0 0
    %949 = vmatprep.subr.bf16.mxu0 0
    %950 = vmatpush2.bf16.msra.mxu0 0
    %951 = vmatprep.subr.bf16.mxu0 0
    %952 = vmatpush2.bf16.msra.mxu0 0
    %953 = vmatprep.mubr.bf16.mxu0 0
    %954 = vmatmul.mubr.bf16.gmra.mxu0 0
    %v955 = vpop.f32.mrf.mxu0
    %v956 = vadd.f32 0.0, %v955
    %v957 = vpop.f32.mrf.mxu0
    %v958 = vadd.f32 0.0, %v957
    %v959 = vpop.f32.mrf.mxu0
    %v960 = vpop.f32.mrf.mxu0
    %961 = vdwg.mxu0
    %v962 = vadd.f32 %v556, %v915
    %v963 = vadd.f32 %v558, %v917
    %v964 = vadd.f32 %v597, %v956
    %v965 = vadd.f32 %v599, %v958
    %v966 = vxor.u32 %v962, 2147483648
    %v967 = vmul.f32 %v966, 1.442695
    %v968 = vpow.pop %v967
    %v969 = vadd.f32 %v968, 1.0
    %v970 = vrcp.pop %v969
    %v971 = vmul.f32 1.0, %v970
    %v972 = vxor.u32 %v963, 2147483648
    %v973 = vmul.f32 %v972, 1.442695
    %v974 = vpow.pop %v973
    %v975 = vadd.f32 %v974, 1.0
    %v976 = vrcp.pop %v975
    %v977 = vmul.f32 1.0, %v976
    %v978 = vtanh.pop %v964
    %v979 = vxor.u32 %v965, 2147483648
    %v980 = vmul.f32 %v979, 1.442695
    %v981 = vpow.pop %v980
    %v982 = vadd.f32 %v981, 1.0
    %v983 = vrcp.pop %v982
    %v984 = vmul.f32 1.0, %v983
    %v985 = vmul.f32 %v977, 0.0
    %v986 = vmul.f32 %v971, %v978
    %v987 = vadd.f32 %v985, %v986
    %v988 = vtanh.pop %v987
    %v989 = vmul.f32 %v984, %v988
    %v990 = vld [vmem:[#allocation10] sm:$0xff]
    %v991 = vld [vmem:[#allocation10 + $0x8] sm:$0xff]
    %v992 = vld [vmem:[#allocation10 + $0x10] sm:$0xff]
    %v993 = vld [vmem:[#allocation10 + $0x18] sm:$0xff]
    %v994 = vld [vmem:[#allocation10 + $0x20] sm:$0xff]
    %v995 = vld [vmem:[#allocation10 + $0x28] sm:$0xff]
    %v996 = vld [vmem:[#allocation10 + $0x30] sm:$0xff]
    %v997 = vld [vmem:[#allocation10 + $0x38] sm:$0xff]
    %v998 = vld [vmem:[#allocation10 + $0x40] sm:$0xff]
    %v999 = vld [vmem:[#allocation10 + $0x48] sm:$0xff]
    %v1000 = vld [vmem:[#allocation10 + $0x50] sm:$0xff]
    %v1001 = vld [vmem:[#allocation10 + $0x58] sm:$0xff]
    %v1002 = vld [vmem:[#allocation10 + $0x60] sm:$0xff]
    %v1003 = vld [vmem:[#allocation10 + $0x68] sm:$0xff]
    %v1004 = vld [vmem:[#allocation10 + $0x70] sm:$0xff]
    %v1005 = vld [vmem:[#allocation10 + $0x78] sm:$0xff]
    %v1006 = vld [vmem:[#allocation10 + $0x80] sm:$0xff]
    %v1007 = vld [vmem:[#allocation10 + $0x88] sm:$0xff]
    %v1008 = vld [vmem:[#allocation10 + $0x90] sm:$0xff]
    %v1009 = vld [vmem:[#allocation10 + $0x98] sm:$0xff]
    %v1010 = vld [vmem:[#allocation10 + $0xa0] sm:$0xff]
    %v1011 = vld [vmem:[#allocation10 + $0xa8] sm:$0xff]
    %v1012 = vld [vmem:[#allocation10 + $0xb0] sm:$0xff]
    %v1013 = vld [vmem:[#allocation10 + $0xb8] sm:$0xff]
    %v1014 = vld [vmem:[#allocation10 + $0xc0] sm:$0xff]
    %v1015 = vld [vmem:[#allocation10 + $0xc8] sm:$0xff]
    %v1016 = vld [vmem:[#allocation10 + $0xd0] sm:$0xff]
    %v1017 = vld [vmem:[#allocation10 + $0xd8] sm:$0xff]
    %v1018 = vld [vmem:[#allocation10 + $0xe0] sm:$0xff]
    %v1019 = vld [vmem:[#allocation10 + $0xe8] sm:$0xff]
    %v1020 = vld [vmem:[#allocation10 + $0xf0] sm:$0xff]
    %v1021 = vld [vmem:[#allocation10 + $0xf8] sm:$0xff]
    %v1054 = vunpack.c.l.b16 %v990
    %v1055 = vunpack.c.h.b16 %v990
    %v1056 = vunpack.c.l.b16 %v991
    %v1057 = vunpack.c.h.b16 %v991
    %v1058 = vunpack.c.l.b16 %v992
    %v1059 = vunpack.c.h.b16 %v992
    %v1060 = vunpack.c.l.b16 %v993
    %v1061 = vunpack.c.h.b16 %v993
    %v1062 = vunpack.c.l.b16 %v994
    %v1063 = vunpack.c.h.b16 %v994
    %v1064 = vunpack.c.l.b16 %v995
    %v1065 = vunpack.c.h.b16 %v995
    %v1066 = vunpack.c.l.b16 %v996
    %v1067 = vunpack.c.h.b16 %v996
    %v1068 = vunpack.c.l.b16 %v997
    %v1069 = vunpack.c.h.b16 %v997
    %v1070 = vunpack.c.l.b16 %v998
    %v1071 = vunpack.c.h.b16 %v998
    %v1072 = vunpack.c.l.b16 %v999
    %v1073 = vunpack.c.h.b16 %v999
    %v1074 = vunpack.c.l.b16 %v1000
    %v1075 = vunpack.c.h.b16 %v1000
    %v1076 = vunpack.c.l.b16 %v1001
    %v1077 = vunpack.c.h.b16 %v1001
    %v1078 = vunpack.c.l.b16 %v1002
    %v1079 = vunpack.c.h.b16 %v1002
    %v1080 = vunpack.c.l.b16 %v1003
    %v1081 = vunpack.c.h.b16 %v1003
    %v1082 = vunpack.c.l.b16 %v1004
    %v1083 = vunpack.c.h.b16 %v1004
    %v1084 = vunpack.c.l.b16 %v1005
    %v1085 = vunpack.c.h.b16 %v1005
    %v1086 = vunpack.c.l.b16 %v1006
    %v1087 = vunpack.c.h.b16 %v1006
    %v1088 = vunpack.c.l.b16 %v1007
    %v1089 = vunpack.c.h.b16 %v1007
    %v1090 = vunpack.c.l.b16 %v1008
    %v1091 = vunpack.c.h.b16 %v1008
    %v1092 = vunpack.c.l.b16 %v1009
    %v1093 = vunpack.c.h.b16 %v1009
    %v1094 = vunpack.c.l.b16 %v1010
    %v1095 = vunpack.c.h.b16 %v1010
    %v1096 = vunpack.c.l.b16 %v1011
    %v1097 = vunpack.c.h.b16 %v1011
    %v1098 = vunpack.c.l.b16 %v1012
    %v1099 = vunpack.c.h.b16 %v1012
    %v1100 = vunpack.c.l.b16 %v1013
    %v1101 = vunpack.c.h.b16 %v1013
    %v1102 = vunpack.c.l.b16 %v1014
    %v1103 = vunpack.c.h.b16 %v1014
    %v1104 = vunpack.c.l.b16 %v1015
    %v1105 = vunpack.c.h.b16 %v1015
    %v1106 = vunpack.c.l.b16 %v1016
    %v1107 = vunpack.c.h.b16 %v1016
    %v1108 = vunpack.c.l.b16 %v1017
    %v1109 = vunpack.c.h.b16 %v1017
    %v1110 = vunpack.c.l.b16 %v1018
    %v1111 = vunpack.c.h.b16 %v1018
    %v1112 = vunpack.c.l.b16 %v1019
    %v1113 = vunpack.c.h.b16 %v1019
    %v1114 = vunpack.c.l.b16 %v1020
    %v1115 = vunpack.c.h.b16 %v1020
    %v1116 = vunpack.c.l.b16 %v1021
    %v1117 = vunpack.c.h.b16 %v1021
    %v1118 = vpack.c.b16 %v1058, %v1054
    %v1119 = vpack.c.b16 %v1059, %v1055
    %v1120 = vpack.c.b16 %v1060, %v1056
    %v1121 = vpack.c.b16 %v1061, %v1057
    %v1122 = vpack.c.b16 %v1066, %v1062
    %v1123 = vpack.c.b16 %v1067, %v1063
    %v1124 = vpack.c.b16 %v1068, %v1064
    %v1125 = vpack.c.b16 %v1069, %v1065
    %v1126 = vpack.c.b16 %v1074, %v1070
    %v1127 = vpack.c.b16 %v1075, %v1071
    %v1128 = vpack.c.b16 %v1076, %v1072
    %v1129 = vpack.c.b16 %v1077, %v1073
    %v1130 = vpack.c.b16 %v1082, %v1078
    %v1131 = vpack.c.b16 %v1083, %v1079
    %v1132 = vpack.c.b16 %v1084, %v1080
    %v1133 = vpack.c.b16 %v1085, %v1081
    %v1134 = vpack.c.b16 %v1090, %v1086
    %v1135 = vpack.c.b16 %v1091, %v1087
    %v1136 = vpack.c.b16 %v1092, %v1088
    %v1137 = vpack.c.b16 %v1093, %v1089
    %v1138 = vpack.c.b16 %v1098, %v1094
    %v1139 = vpack.c.b16 %v1099, %v1095
    %v1140 = vpack.c.b16 %v1100, %v1096
    %v1141 = vpack.c.b16 %v1101, %v1097
    %v1142 = vpack.c.b16 %v1106, %v1102
    %v1143 = vpack.c.b16 %v1107, %v1103
    %v1144 = vpack.c.b16 %v1108, %v1104
    %v1145 = vpack.c.b16 %v1109, %v1105
    %v1146 = vpack.c.b16 %v1114, %v1110
    %v1147 = vpack.c.b16 %v1115, %v1111
    %v1148 = vpack.c.b16 %v1116, %v1112
    %v1149 = vpack.c.b16 %v1117, %v1113
    %1182 = vmatprep.subr.bf16.mxu0 %v1147
    %1183 = vmatpush1.bf16.msra.mxu0 %v1146
    %1184 = vmatprep.subr.bf16.mxu0 %v1143
    %1185 = vmatpush1.bf16.msra.mxu0 %v1142
    %1186 = vmatprep.subr.bf16.mxu0 %v1139
    %1187 = vmatpush1.bf16.msra.mxu0 %v1138
    %1188 = vmatprep.subr.bf16.mxu0 %v1135
    %1189 = vmatpush1.bf16.msra.mxu0 %v1134
    %1190 = vmatprep.subr.bf16.mxu0 %v1131
    %1191 = vmatpush1.bf16.msra.mxu0 %v1130
    %1192 = vmatprep.subr.bf16.mxu0 %v1127
    %1193 = vmatpush1.bf16.msra.mxu0 %v1126
    %1194 = vmatprep.subr.bf16.mxu0 %v1123
    %1195 = vmatpush1.bf16.msra.mxu0 %v1122
    %1196 = vmatprep.subr.bf16.mxu0 %v1119
    %1197 = vmatpush1.bf16.msra.mxu0 %v1118
    %1198 = vmatprep.subr.bf16.mxu0 0
    %1199 = vmatpush2.bf16.msra.mxu0 0
    %1200 = vmatprep.subr.bf16.mxu0 0
    %1201 = vmatpush2.bf16.msra.mxu0 0
    %1202 = vmatprep.subr.bf16.mxu0 0
    %1203 = vmatpush2.bf16.msra.mxu0 0
    %1204 = vmatprep.subr.bf16.mxu0 0
    %1205 = vmatpush2.bf16.msra.mxu0 0
    %1206 = vmatprep.subr.bf16.mxu0 0
    %1207 = vmatpush2.bf16.msra.mxu0 0
    %1208 = vmatprep.subr.bf16.mxu0 0
    %1209 = vmatpush2.bf16.msra.mxu0 0
    %1210 = vmatprep.subr.bf16.mxu0 0
    %1211 = vmatpush2.bf16.msra.mxu0 0
    %1212 = vmatprep.subr.bf16.mxu0 0
    %1213 = vmatpush2.bf16.msra.mxu0 0
    %1214 = vmatprep.mubr.bf16.mxu0 0
    %1215 = vmatmul.mubr.bf16.gmra.mxu0 0
    %v1216 = vpop.f32.mrf.mxu0
    %v1217 = vadd.f32 0.0, %v1216
    %v1218 = vpop.f32.mrf.mxu0
    %v1219 = vadd.f32 0.0, %v1218
    %v1220 = vpop.f32.mrf.mxu0
    %v1221 = vpop.f32.mrf.mxu0
    %1222 = vdwg.mxu0
    %1223 = vmatprep.subr.bf16.mxu0 %v1149
    %1224 = vmatpush1.bf16.msra.mxu0 %v1148
    %1225 = vmatprep.subr.bf16.mxu0 %v1145
    %1226 = vmatpush1.bf16.msra.mxu0 %v1144
    %1227 = vmatprep.subr.bf16.mxu0 %v1141
    %1228 = vmatpush1.bf16.msra.mxu0 %v1140
    %1229 = vmatprep.subr.bf16.mxu0 %v1137
    %1230 = vmatpush1.bf16.msra.mxu0 %v1136
    %1231 = vmatprep.subr.bf16.mxu0 %v1133
    %1232 = vmatpush1.bf16.msra.mxu0 %v1132
    %1233 = vmatprep.subr.bf16.mxu0 %v1129
    %1234 = vmatpush1.bf16.msra.mxu0 %v1128
    %1235 = vmatprep.subr.bf16.mxu0 %v1125
    %1236 = vmatpush1.bf16.msra.mxu0 %v1124
    %1237 = vmatprep.subr.bf16.mxu0 %v1121
    %1238 = vmatpush1.bf16.msra.mxu0 %v1120
    %1239 = vmatprep.subr.bf16.mxu0 0
    %1240 = vmatpush2.bf16.msra.mxu0 0
    %1241 = vmatprep.subr.bf16.mxu0 0
    %1242 = vmatpush2.bf16.msra.mxu0 0
    %1243 = vmatprep.subr.bf16.mxu0 0
    %1244 = vmatpush2.bf16.msra.mxu0 0
    %1245 = vmatprep.subr.bf16.mxu0 0
    %1246 = vmatpush2.bf16.msra.mxu0 0
    %1247 = vmatprep.subr.bf16.mxu0 0
    %1248 = vmatpush2.bf16.msra.mxu0 0
    %1249 = vmatprep.subr.bf16.mxu0 0
    %1250 = vmatpush2.bf16.msra.mxu0 0
    %1251 = vmatprep.subr.bf16.mxu0 0
    %1252 = vmatpush2.bf16.msra.mxu0 0
    %1253 = vmatprep.subr.bf16.mxu0 0
    %1254 = vmatpush2.bf16.msra.mxu0 0
    %1255 = vmatprep.mubr.bf16.mxu0 0
    %1256 = vmatmul.mubr.bf16.gmra.mxu0 0
    %v1257 = vpop.f32.mrf.mxu0
    %v1258 = vadd.f32 0.0, %v1257
    %v1259 = vpop.f32.mrf.mxu0
    %v1260 = vadd.f32 0.0, %v1259
    %v1261 = vpop.f32.mrf.mxu0
    %v1262 = vpop.f32.mrf.mxu0
    %1263 = vdwg.mxu0
    %v1268 = vrot.slane %v1217, 1
    %v1269 = vrot.slane %v1219, 1
    %v1270 = vrot.slane %v1258, 1
    %v1271 = vrot.slane %v1260, 1
    %v1276 = vadd.f32 %v638, %v1268
    %v1277 = vadd.f32 %v640, %v1269
    %v1278 = vadd.f32 %v679, %v1270
    %v1279 = vadd.f32 %v681, %v1271
    %v1280 = vxor.u32 %v1276, 2147483648
    %v1281 = vmul.f32 %v1280, 1.442695
    %v1282 = vpow.pop %v1281
    %v1283 = vadd.f32 %v1282, 1.0
    %v1284 = vrcp.pop %v1283
    %v1285 = vmul.f32 1.0, %v1284
    %v1286 = vxor.u32 %v1277, 2147483648
    %v1287 = vmul.f32 %v1286, 1.442695
    %v1288 = vpow.pop %v1287
    %v1289 = vadd.f32 %v1288, 1.0
    %v1290 = vrcp.pop %v1289
    %v1291 = vmul.f32 1.0, %v1290
    %v1292 = vtanh.pop %v1278
    %v1293 = vxor.u32 %v1279, 2147483648
    %v1294 = vmul.f32 %v1293, 1.442695
    %v1295 = vpow.pop %v1294
    %v1296 = vadd.f32 %v1295, 1.0
    %v1297 = vrcp.pop %v1296
    %v1298 = vmul.f32 1.0, %v1297
    %v1299 = vmul.f32 %v1291, 0.0
    %v1300 = vmul.f32 %v1285, %v1292
    %v1301 = vadd.f32 %v1299, %v1300
    %v1302 = vtanh.pop %v1301
    %v1303 = vmul.f32 %v1298, %v1302
    %v1304 = vmul.f32 %v989, %v685
    %vm1305 = vcmask 1040384
    %v1306 = vsel %vm1305, %v1304, 0.0
    %1307 = vadd.xlane.f32.xlu0 %v1306
    %v1308 = vpop.xlane.xlu0 %1307
    %v1310 = vlaneseq
    %v1311 = vshrl.u32 %v1310, 7
    %v1312 = vsub.s32 1, %v1311
    %v1313 = vrot.slane %v685, %v1312
    %v1315 = vmul.f32 %v1303, %v1313
    %vm1316 = vcmask 1047559
    %v1317 = vsel %vm1316, %v1315, 0.0
    %1318 = vadd.xlane.f32.xlu0 %v1317
    %v1319 = vpop.xlane.xlu0 %1318
    %vm1320 = vcmp.eq.s32.totalorder %v687, 0
    %v1321 = vlaneseq
    %v1322 = vshrl.u32 %v1321, 7
    %v1323 = vsub.s32 0, %v1322
    %v1324 = vrot.slane %v1308, %v1323
    %v1325 = vsel %vm1320, %v1324, 0.0
    %v1326 = vadd.f32 %v1325, 0.0
    %vm1327 = vcmp.eq.s32.totalorder %v687, 7
    %v1328 = vlaneseq
    %v1329 = vshrl.u32 %v1328, 7
    %v1330 = vsub.s32 7, %v1329
    %v1331 = vrot.slane %v1319, %v1330
    %v1332 = vsel %vm1327, %v1331, 0.0
    %v1333 = vadd.f32 %v1326, %v1332
    %v1334 = vpack.c.bf16 %v989, %v989
    %1335 = vmatprep.subr.bf16.mxu0 %v845
    %1336 = vmatpush1.bf16.msra.mxu0 %v844
    %1337 = vmatprep.subr.bf16.mxu0 %v841
    %1338 = vmatpush1.bf16.msra.mxu0 %v840
    %1339 = vmatprep.subr.bf16.mxu0 %v837
    %1340 = vmatpush1.bf16.msra.mxu0 %v836
    %1341 = vmatprep.subr.bf16.mxu0 %v833
    %1342 = vmatpush1.bf16.msra.mxu0 %v832
    %1343 = vmatprep.subr.bf16.mxu0 %v829
    %1344 = vmatpush1.bf16.msra.mxu0 %v828
    %1345 = vmatprep.subr.bf16.mxu0 %v825
    %1346 = vmatpush1.bf16.msra.mxu0 %v824
    %1347 = vmatprep.subr.bf16.mxu0 %v821
    %1348 = vmatpush1.bf16.msra.mxu0 %v820
    %1349 = vmatprep.subr.bf16.mxu0 %v817
    %1350 = vmatpush1.bf16.msra.mxu0 %v816
    %1351 = vmatprep.subr.bf16.mxu0 0
    %1352 = vmatpush2.bf16.msra.mxu0 0
    %1353 = vmatprep.subr.bf16.mxu0 0
    %1354 = vmatpush2.bf16.msra.mxu0 0
    %1355 = vmatprep.subr.bf16.mxu0 0
    %1356 = vmatpush2.bf16.msra.mxu0 0
    %1357 = vmatprep.subr.bf16.mxu0 0
    %1358 = vmatpush2.bf16.msra.mxu0 0
    %1359 = vmatprep.subr.bf16.mxu0 0
    %1360 = vmatpush2.bf16.msra.mxu0 0
    %1361 = vmatprep.subr.bf16.mxu0 0
    %1362 = vmatpush2.bf16.msra.mxu0 0
    %1363 = vmatprep.subr.bf16.mxu0 0
    %1364 = vmatpush2.bf16.msra.mxu0 0
    %1365 = vmatprep.subr.bf16.mxu0 0
    %1366 = vmatpush2.bf16.msra.mxu0 0
    %1367 = vmatprep.mubr.bf16.mxu0 0
    %1368 = vmatmul.mubr.bf16.gmra.mxu0 %v1334
    %v1369 = vpop.f32.mrf.mxu0
    %v1370 = vadd.f32 0.0, %v1369
    %v1371 = vpop.f32.mrf.mxu0
    %v1372 = vadd.f32 0.0, %v1371
    %v1373 = vpop.f32.mrf.mxu0
    %v1374 = vpop.f32.mrf.mxu0
    %1375 = vdwg.mxu0
    %1376 = vmatprep.subr.bf16.mxu0 %v847
    %1377 = vmatpush1.bf16.msra.mxu0 %v846
    %1378 = vmatprep.subr.bf16.mxu0 %v843
    %1379 = vmatpush1.bf16.msra.mxu0 %v842
    %1380 = vmatprep.subr.bf16.mxu0 %v839
    %1381 = vmatpush1.bf16.msra.mxu0 %v838
    %1382 = vmatprep.subr.bf16.mxu0 %v835
    %1383 = vmatpush1.bf16.msra.mxu0 %v834
    %1384 = vmatprep.subr.bf16.mxu0 %v831
    %1385 = vmatpush1.bf16.msra.mxu0 %v830
    %1386 = vmatprep.subr.bf16.mxu0 %v827
    %1387 = vmatpush1.bf16.msra.mxu0 %v826
    %1388 = vmatprep.subr.bf16.mxu0 %v823
    %1389 = vmatpush1.bf16.msra.mxu0 %v822
    %1390 = vmatprep.subr.bf16.mxu0 %v819
    %1391 = vmatpush1.bf16.msra.mxu0 %v818
    %1392 = vmatprep.subr.bf16.mxu0 0
    %1393 = vmatpush2.bf16.msra.mxu0 0
    %1394 = vmatprep.subr.bf16.mxu0 0
    %1395 = vmatpush2.bf16.msra.mxu0 0
    %1396 = vmatprep.subr.bf16.mxu0 0
    %1397 = vmatpush2.bf16.msra.mxu0 0
    %1398 = vmatprep.subr.bf16.mxu0 0
    %1399 = vmatpush2.bf16.msra.mxu0 0
    %1400 = vmatprep.subr.bf16.mxu0 0
    %1401 = vmatpush2.bf16.msra.mxu0 0
    %1402 = vmatprep.subr.bf16.mxu0 0
    %1403 = vmatpush2.bf16.msra.mxu0 0
    %1404 = vmatprep.subr.bf16.mxu0 0
    %1405 = vmatpush2.bf16.msra.mxu0 0
    %1406 = vmatprep.subr.bf16.mxu0 0
    %1407 = vmatpush2.bf16.msra.mxu0 0
    %1408 = vmatprep.mubr.bf16.mxu0 0
    %1409 = vmatmul.mubr.bf16.gmra.mxu0 %v1334
    %v1410 = vpop.f32.mrf.mxu0
    %v1411 = vadd.f32 0.0, %v1410
    %v1412 = vpop.f32.mrf.mxu0
    %v1413 = vadd.f32 0.0, %v1412
    %v1414 = vpop.f32.mrf.mxu0
    %v1415 = vpop.f32.mrf.mxu0
    %1416 = vdwg.mxu0
    %v1421 = vrot.slane %v1370, 7
    %v1422 = vrot.slane %v1372, 7
    %v1423 = vrot.slane %v1411, 7
    %v1424 = vrot.slane %v1413, 7
    %v1429 = vadd.f32 %v556, %v1421
    %v1430 = vadd.f32 %v558, %v1422
    %v1431 = vadd.f32 %v597, %v1423
    %v1432 = vadd.f32 %v599, %v1424
    %v1433 = vxor.u32 %v1429, 2147483648
    %v1434 = vmul.f32 %v1433, 1.442695
    %v1435 = vpow.pop %v1434
    %v1436 = vadd.f32 %v1435, 1.0
    %v1437 = vrcp.pop %v1436
    %v1438 = vmul.f32 1.0, %v1437
    %v1439 = vxor.u32 %v1430, 2147483648
    %v1440 = vmul.f32 %v1439, 1.442695
    %v1441 = vpow.pop %v1440
    %v1442 = vadd.f32 %v1441, 1.0
    %v1443 = vrcp.pop %v1442
    %v1444 = vmul.f32 1.0, %v1443
    %v1445 = vtanh.pop %v1431
    %v1446 = vxor.u32 %v1432, 2147483648
    %v1447 = vmul.f32 %v1446, 1.442695
    %v1448 = vpow.pop %v1447
    %v1449 = vadd.f32 %v1448, 1.0
    %v1450 = vrcp.pop %v1449
    %v1451 = vmul.f32 1.0, %v1450
    %v1453 = vrot.slane %v987, 7
    %v1455 = vmul.f32 %v1444, %v1453
    %v1456 = vmul.f32 %v1438, %v1445
    %v1457 = vadd.f32 %v1455, %v1456
    %v1458 = vtanh.pop %v1457
    %v1459 = vmul.f32 %v1451, %v1458
    %v1460 = vpack.c.bf16 %v1303, %v1303
    %v1462 = vshrl.u32 %v1460, 16
    %v1464 = vrot.slane %v1462, 3
    %1466 = vmatprep.subr.bf16.mxu0 %v1147
    %1467 = vmatpush1.bf16.msra.mxu0 %v1146
    %1468 = vmatprep.subr.bf16.mxu0 %v1143
    %1469 = vmatpush1.bf16.msra.mxu0 %v1142
    %1470 = vmatprep.subr.bf16.mxu0 %v1139
    %1471 = vmatpush1.bf16.msra.mxu0 %v1138
    %1472 = vmatprep.subr.bf16.mxu0 %v1135
    %1473 = vmatpush1.bf16.msra.mxu0 %v1134
    %1474 = vmatprep.subr.bf16.mxu0 %v1131
    %1475 = vmatpush1.bf16.msra.mxu0 %v1130
    %1476 = vmatprep.subr.bf16.mxu0 %v1127
    %1477 = vmatpush1.bf16.msra.mxu0 %v1126
    %1478 = vmatprep.subr.bf16.mxu0 %v1123
    %1479 = vmatpush1.bf16.msra.mxu0 %v1122
    %1480 = vmatprep.subr.bf16.mxu0 %v1119
    %1481 = vmatpush1.bf16.msra.mxu0 %v1118
    %1482 = vmatprep.subr.bf16.mxu0 0
    %1483 = vmatpush2.bf16.msra.mxu0 0
    %1484 = vmatprep.subr.bf16.mxu0 0
    %1485 = vmatpush2.bf16.msra.mxu0 0
    %1486 = vmatprep.subr.bf16.mxu0 0
    %1487 = vmatpush2.bf16.msra.mxu0 0
    %1488 = vmatprep.subr.bf16.mxu0 0
    %1489 = vmatpush2.bf16.msra.mxu0 0
    %1490 = vmatprep.subr.bf16.mxu0 0
    %1491 = vmatpush2.bf16.msra.mxu0 0
    %1492 = vmatprep.subr.bf16.mxu0 0
    %1493 = vmatpush2.bf16.msra.mxu0 0
    %1494 = vmatprep.subr.bf16.mxu0 0
    %1495 = vmatpush2.bf16.msra.mxu0 0
    %1496 = vmatprep.subr.bf16.mxu0 0
    %1497 = vmatpush2.bf16.msra.mxu0 0
    %1498 = vmatprep.mubr.bf16.mxu0 0
    %1499 = vmatmul.mubr.bf16.gmra.mxu0 %v1464
    %v1500 = vpop.f32.mrf.mxu0
    %v1501 = vadd.f32 0.0, %v1500
    %v1502 = vpop.f32.mrf.mxu0
    %v1503 = vadd.f32 0.0, %v1502
    %v1504 = vpop.f32.mrf.mxu0
    %v1505 = vpop.f32.mrf.mxu0
    %1506 = vdwg.mxu0
    %1507 = vmatprep.subr.bf16.mxu0 %v1149
    %1508 = vmatpush1.bf16.msra.mxu0 %v1148
    %1509 = vmatprep.subr.bf16.mxu0 %v1145
    %1510 = vmatpush1.bf16.msra.mxu0 %v1144
    %1511 = vmatprep.subr.bf16.mxu0 %v1141
    %1512 = vmatpush1.bf16.msra.mxu0 %v1140
    %1513 = vmatprep.subr.bf16.mxu0 %v1137
    %1514 = vmatpush1.bf16.msra.mxu0 %v1136
    %1515 = vmatprep.subr.bf16.mxu0 %v1133
    %1516 = vmatpush1.bf16.msra.mxu0 %v1132
    %1517 = vmatprep.subr.bf16.mxu0 %v1129
    %1518 = vmatpush1.bf16.msra.mxu0 %v1128
    %1519 = vmatprep.subr.bf16.mxu0 %v1125
    %1520 = vmatpush1.bf16.msra.mxu0 %v1124
    %1521 = vmatprep.subr.bf16.mxu0 %v1121
    %1522 = vmatpush1.bf16.msra.mxu0 %v1120
    %1523 = vmatprep.subr.bf16.mxu0 0
    %1524 = vmatpush2.bf16.msra.mxu0 0
    %1525 = vmatprep.subr.bf16.mxu0 0
    %1526 = vmatpush2.bf16.msra.mxu0 0
    %1527 = vmatprep.subr.bf16.mxu0 0
    %1528 = vmatpush2.bf16.msra.mxu0 0
    %1529 = vmatprep.subr.bf16.mxu0 0
    %1530 = vmatpush2.bf16.msra.mxu0 0
    %1531 = vmatprep.subr.bf16.mxu0 0
    %1532 = vmatpush2.bf16.msra.mxu0 0
    %1533 = vmatprep.subr.bf16.mxu0 0
    %1534 = vmatpush2.bf16.msra.mxu0 0
    %1535 = vmatprep.subr.bf16.mxu0 0
    %1536 = vmatpush2.bf16.msra.mxu0 0
    %1537 = vmatprep.subr.bf16.mxu0 0
    %1538 = vmatpush2.bf16.msra.mxu0 0
    %1539 = vmatprep.mubr.bf16.mxu0 0
    %1540 = vmatmul.mubr.bf16.gmra.mxu0 %v1464
    %v1541 = vpop.f32.mrf.mxu0
    %v1542 = vadd.f32 0.0, %v1541
    %v1543 = vpop.f32.mrf.mxu0
    %v1544 = vadd.f32 0.0, %v1543
    %v1545 = vpop.f32.mrf.mxu0
    %v1546 = vpop.f32.mrf.mxu0
    %1547 = vdwg.mxu0
    %v1552 = vrot.slane %v1501, 2
    %v1553 = vrot.slane %v1503, 2
    %v1554 = vrot.slane %v1542, 2
    %v1555 = vrot.slane %v1544, 2
    %v1560 = vadd.f32 %v638, %v1552
    %v1561 = vadd.f32 %v640, %v1553
    %v1562 = vadd.f32 %v679, %v1554
    %v1563 = vadd.f32 %v681, %v1555
    %v1564 = vxor.u32 %v1560, 2147483648
    %v1565 = vmul.f32 %v1564, 1.442695
    %v1566 = vpow.pop %v1565
    %v1567 = vadd.f32 %v1566, 1.0
    %v1568 = vrcp.pop %v1567
    %v1569 = vmul.f32 1.0, %v1568
    %v1570 = vxor.u32 %v1561, 2147483648
    %v1571 = vmul.f32 %v1570, 1.442695
    %v1572 = vpow.pop %v1571
    %v1573 = vadd.f32 %v1572, 1.0
    %v1574 = vrcp.pop %v1573
    %v1575 = vmul.f32 1.0, %v1574
    %v1576 = vtanh.pop %v1562
    %v1577 = vxor.u32 %v1563, 2147483648
    %v1578 = vmul.f32 %v1577, 1.442695
    %v1579 = vpow.pop %v1578
    %v1580 = vadd.f32 %v1579, 1.0
    %v1581 = vrcp.pop %v1580
    %v1582 = vmul.f32 1.0, %v1581
    %v1584 = vrot.slane %v1301, 1
    %v1586 = vmul.f32 %v1575, %v1584
    %v1587 = vmul.f32 %v1569, %v1576
    %v1588 = vadd.f32 %v1586, %v1587
    %v1589 = vtanh.pop %v1588
    %v1590 = vmul.f32 %v1582, %v1589
    %v1591 = vlaneseq
    %v1592 = vshrl.u32 %v1591, 7
    %v1593 = vsub.s32 0, %v1592
    %v1594 = vrot.slane %v685, %v1593
    %v1596 = vmul.f32 %v1459, %v1594
    %vm1597 = vcmask 1041409
    %v1598 = vsel %vm1597, %v1596, 0.0
    %1599 = vadd.xlane.f32.xlu0 %v1598
    %v1600 = vpop.xlane.xlu0 %1599
    %v1601 = vmul.f32 %v1590, %v1313
    %vm1602 = vcmask 1046534
    %v1603 = vsel %vm1602, %v1601, 0.0
    %1604 = vadd.xlane.f32.xlu0 %v1603
    %v1605 = vpop.xlane.xlu0 %1604
    %vm1606 = vcmp.eq.s32.totalorder %v687, 1
    %v1607 = vlaneseq
    %v1608 = vshrl.u32 %v1607, 7
    %v1609 = vsub.s32 1, %v1608
    %v1610 = vrot.slane %v1600, %v1609
    %v1611 = vsel %vm1606, %v1610, 0.0
    %v1612 = vadd.f32 %v1333, %v1611
    %vm1613 = vcmp.eq.s32.totalorder %v687, 6
    %v1614 = vlaneseq
    %v1615 = vshrl.u32 %v1614, 7
    %v1616 = vsub.s32 6, %v1615
    %v1617 = vrot.slane %v1605, %v1616
    %v1618 = vsel %vm1613, %v1617, 0.0
    %v1619 = vadd.f32 %v1612, %v1618
    %v1620 = vpack.c.bf16 %v1459, %v1459
    %v1622 = vshrl.u32 %v1620, 16
    %1625 = vmatprep.subr.bf16.mxu0 %v845
    %1626 = vmatpush1.bf16.msra.mxu0 %v844
    %1627 = vmatprep.subr.bf16.mxu0 %v841
    %1628 = vmatpush1.bf16.msra.mxu0 %v840
    %1629 = vmatprep.subr.bf16.mxu0 %v837
    %1630 = vmatpush1.bf16.msra.mxu0 %v836
    %1631 = vmatprep.subr.bf16.mxu0 %v833
    %1632 = vmatpush1.bf16.msra.mxu0 %v832
    %1633 = vmatprep.subr.bf16.mxu0 %v829
    %1634 = vmatpush1.bf16.msra.mxu0 %v828
    %1635 = vmatprep.subr.bf16.mxu0 %v825
    %1636 = vmatpush1.bf16.msra.mxu0 %v824
    %1637 = vmatprep.subr.bf16.mxu0 %v821
    %1638 = vmatpush1.bf16.msra.mxu0 %v820
    %1639 = vmatprep.subr.bf16.mxu0 %v817
    %1640 = vmatpush1.bf16.msra.mxu0 %v816
    %1641 = vmatprep.subr.bf16.mxu0 0
    %1642 = vmatpush2.bf16.msra.mxu0 0
    %1643 = vmatprep.subr.bf16.mxu0 0
    %1644 = vmatpush2.bf16.msra.mxu0 0
    %1645 = vmatprep.subr.bf16.mxu0 0
    %1646 = vmatpush2.bf16.msra.mxu0 0
    %1647 = vmatprep.subr.bf16.mxu0 0
    %1648 = vmatpush2.bf16.msra.mxu0 0
    %1649 = vmatprep.subr.bf16.mxu0 0
    %1650 = vmatpush2.bf16.msra.mxu0 0
    %1651 = vmatprep.subr.bf16.mxu0 0
    %1652 = vmatpush2.bf16.msra.mxu0 0
    %1653 = vmatprep.subr.bf16.mxu0 0
    %1654 = vmatpush2.bf16.msra.mxu0 0
    %1655 = vmatprep.subr.bf16.mxu0 0
    %1656 = vmatpush2.bf16.msra.mxu0 0
    %1657 = vmatprep.mubr.bf16.mxu0 0
    %1658 = vmatmul.mubr.bf16.gmra.mxu0 %v1622
    %v1659 = vpop.f32.mrf.mxu0
    %v1660 = vadd.f32 0.0, %v1659
    %v1661 = vpop.f32.mrf.mxu0
    %v1662 = vadd.f32 0.0, %v1661
    %v1663 = vpop.f32.mrf.mxu0
    %v1664 = vpop.f32.mrf.mxu0
    %1665 = vdwg.mxu0
    %1666 = vmatprep.subr.bf16.mxu0 %v847
    %1667 = vmatpush1.bf16.msra.mxu0 %v846
    %1668 = vmatprep.subr.bf16.mxu0 %v843
    %1669 = vmatpush1.bf16.msra.mxu0 %v842
    %1670 = vmatprep.subr.bf16.mxu0 %v839
    %1671 = vmatpush1.bf16.msra.mxu0 %v838
    %1672 = vmatprep.subr.bf16.mxu0 %v835
    %1673 = vmatpush1.bf16.msra.mxu0 %v834
    %1674 = vmatprep.subr.bf16.mxu0 %v831
    %1675 = vmatpush1.bf16.msra.mxu0 %v830
    %1676 = vmatprep.subr.bf16.mxu0 %v827
    %1677 = vmatpush1.bf16.msra.mxu0 %v826
    %1678 = vmatprep.subr.bf16.mxu0 %v823
    %1679 = vmatpush1.bf16.msra.mxu0 %v822
    %1680 = vmatprep.subr.bf16.mxu0 %v819
    %1681 = vmatpush1.bf16.msra.mxu0 %v818
    %1682 = vmatprep.subr.bf16.mxu0 0
    %1683 = vmatpush2.bf16.msra.mxu0 0
    %1684 = vmatprep.subr.bf16.mxu0 0
    %1685 = vmatpush2.bf16.msra.mxu0 0
    %1686 = vmatprep.subr.bf16.mxu0 0
    %1687 = vmatpush2.bf16.msra.mxu0 0
    %1688 = vmatprep.subr.bf16.mxu0 0
    %1689 = vmatpush2.bf16.msra.mxu0 0
    %1690 = vmatprep.subr.bf16.mxu0 0
    %1691 = vmatpush2.bf16.msra.mxu0 0
    %1692 = vmatprep.subr.bf16.mxu0 0
    %1693 = vmatpush2.bf16.msra.mxu0 0
    %1694 = vmatprep.subr.bf16.mxu0 0
    %1695 = vmatpush2.bf16.msra.mxu0 0
    %1696 = vmatprep.subr.bf16.mxu0 0
    %1697 = vmatpush2.bf16.msra.mxu0 0
    %1698 = vmatprep.mubr.bf16.mxu0 0
    %1699 = vmatmul.mubr.bf16.gmra.mxu0 %v1622
    %v1700 = vpop.f32.mrf.mxu0
    %v1701 = vadd.f32 0.0, %v1700
    %v1702 = vpop.f32.mrf.mxu0
    %v1703 = vadd.f32 0.0, %v1702
    %v1704 = vpop.f32.mrf.mxu0
    %v1705 = vpop.f32.mrf.mxu0
    %1706 = vdwg.mxu0
    %v1711 = vrot.slane %v1660, 6
    %v1712 = vrot.slane %v1662, 6
    %v1713 = vrot.slane %v1701, 6
    %v1714 = vrot.slane %v1703, 6
    %v1719 = vadd.f32 %v556, %v1711
    %v1720 = vadd.f32 %v558, %v1712
    %v1721 = vadd.f32 %v597, %v1713
    %v1722 = vadd.f32 %v599, %v1714
    %v1723 = vxor.u32 %v1719, 2147483648
    %v1724 = vmul.f32 %v1723, 1.442695
    %v1725 = vpow.pop %v1724
    %v1726 = vadd.f32 %v1725, 1.0
    %v1727 = vrcp.pop %v1726
    %v1728 = vmul.f32 1.0, %v1727
    %v1729 = vxor.u32 %v1720, 2147483648
    %v1730 = vmul.f32 %v1729, 1.442695
    %v1731 = vpow.pop %v1730
    %v1732 = vadd.f32 %v1731, 1.0
    %v1733 = vrcp.pop %v1732
    %v1734 = vmul.f32 1.0, %v1733
    %v1735 = vtanh.pop %v1721
    %v1736 = vxor.u32 %v1722, 2147483648
    %v1737 = vmul.f32 %v1736, 1.442695
    %v1738 = vpow.pop %v1737
    %v1739 = vadd.f32 %v1738, 1.0
    %v1740 = vrcp.pop %v1739
    %v1741 = vmul.f32 1.0, %v1740
    %v1743 = vrot.slane %v1457, 7
    %v1745 = vmul.f32 %v1734, %v1743
    %v1746 = vmul.f32 %v1728, %v1735
    %v1747 = vadd.f32 %v1745, %v1746
    %v1748 = vtanh.pop %v1747
    %v1749 = vmul.f32 %v1741, %v1748
    %v1750 = vpack.c.bf16 %v1590, %v1590
    %v1752 = vrot.slane %v1750, 3
    %1754 = vmatprep.subr.bf16.mxu0 %v1147
    %1755 = vmatpush1.bf16.msra.mxu0 %v1146
    %1756 = vmatprep.subr.bf16.mxu0 %v1143
    %1757 = vmatpush1.bf16.msra.mxu0 %v1142
    %1758 = vmatprep.subr.bf16.mxu0 %v1139
    %1759 = vmatpush1.bf16.msra.mxu0 %v1138
    %1760 = vmatprep.subr.bf16.mxu0 %v1135
    %1761 = vmatpush1.bf16.msra.mxu0 %v1134
    %1762 = vmatprep.subr.bf16.mxu0 %v1131
    %1763 = vmatpush1.bf16.msra.mxu0 %v1130
    %1764 = vmatprep.subr.bf16.mxu0 %v1127
    %1765 = vmatpush1.bf16.msra.mxu0 %v1126
    %1766 = vmatprep.subr.bf16.mxu0 %v1123
    %1767 = vmatpush1.bf16.msra.mxu0 %v1122
    %1768 = vmatprep.subr.bf16.mxu0 %v1119
    %1769 = vmatpush1.bf16.msra.mxu0 %v1118
    %1770 = vmatprep.subr.bf16.mxu0 0
    %1771 = vmatpush2.bf16.msra.mxu0 0
    %1772 = vmatprep.subr.bf16.mxu0 0
    %1773 = vmatpush2.bf16.msra.mxu0 0
    %1774 = vmatprep.subr.bf16.mxu0 0
    %1775 = vmatpush2.bf16.msra.mxu0 0
    %1776 = vmatprep.subr.bf16.mxu0 0
    %1777 = vmatpush2.bf16.msra.mxu0 0
    %1778 = vmatprep.subr.bf16.mxu0 0
    %1779 = vmatpush2.bf16.msra.mxu0 0
    %1780 = vmatprep.subr.bf16.mxu0 0
    %1781 = vmatpush2.bf16.msra.mxu0 0
    %1782 = vmatprep.subr.bf16.mxu0 0
    %1783 = vmatpush2.bf16.msra.mxu0 0
    %1784 = vmatprep.subr.bf16.mxu0 0
    %1785 = vmatpush2.bf16.msra.mxu0 0
    %1786 = vmatprep.mubr.bf16.mxu0 0
    %1787 = vmatmul.mubr.bf16.gmra.mxu0 %v1752
    %v1788 = vpop.f32.mrf.mxu0
    %v1789 = vadd.f32 0.0, %v1788
    %v1790 = vpop.f32.mrf.mxu0
    %v1791 = vadd.f32 0.0, %v1790
    %v1792 = vpop.f32.mrf.mxu0
    %v1793 = vpop.f32.mrf.mxu0
    %1794 = vdwg.mxu0
    %1795 = vmatprep.subr.bf16.mxu0 %v1149
    %1796 = vmatpush1.bf16.msra.mxu0 %v1148
    %1797 = vmatprep.subr.bf16.mxu0 %v1145
    %1798 = vmatpush1.bf16.msra.mxu0 %v1144
    %1799 = vmatprep.subr.bf16.mxu0 %v1141
    %1800 = vmatpush1.bf16.msra.mxu0 %v1140
    %1801 = vmatprep.subr.bf16.mxu0 %v1137
    %1802 = vmatpush1.bf16.msra.mxu0 %v1136
    %1803 = vmatprep.subr.bf16.mxu0 %v1133
    %1804 = vmatpush1.bf16.msra.mxu0 %v1132
    %1805 = vmatprep.subr.bf16.mxu0 %v1129
    %1806 = vmatpush1.bf16.msra.mxu0 %v1128
    %1807 = vmatprep.subr.bf16.mxu0 %v1125
    %1808 = vmatpush1.bf16.msra.mxu0 %v1124
    %1809 = vmatprep.subr.bf16.mxu0 %v1121
    %1810 = vmatpush1.bf16.msra.mxu0 %v1120
    %1811 = vmatprep.subr.bf16.mxu0 0
    %1812 = vmatpush2.bf16.msra.mxu0 0
    %1813 = vmatprep.subr.bf16.mxu0 0
    %1814 = vmatpush2.bf16.msra.mxu0 0
    %1815 = vmatprep.subr.bf16.mxu0 0
    %1816 = vmatpush2.bf16.msra.mxu0 0
    %1817 = vmatprep.subr.bf16.mxu0 0
    %1818 = vmatpush2.bf16.msra.mxu0 0
    %1819 = vmatprep.subr.bf16.mxu0 0
    %1820 = vmatpush2.bf16.msra.mxu0 0
    %1821 = vmatprep.subr.bf16.mxu0 0
    %1822 = vmatpush2.bf16.msra.mxu0 0
    %1823 = vmatprep.subr.bf16.mxu0 0
    %1824 = vmatpush2.bf16.msra.mxu0 0
    %1825 = vmatprep.subr.bf16.mxu0 0
    %1826 = vmatpush2.bf16.msra.mxu0 0
    %1827 = vmatprep.mubr.bf16.mxu0 0
    %1828 = vmatmul.mubr.bf16.gmra.mxu0 %v1752
    %v1829 = vpop.f32.mrf.mxu0
    %v1830 = vadd.f32 0.0, %v1829
    %v1831 = vpop.f32.mrf.mxu0
    %v1832 = vadd.f32 0.0, %v1831
    %v1833 = vpop.f32.mrf.mxu0
    %v1834 = vpop.f32.mrf.mxu0
    %1835 = vdwg.mxu0
    %v1840 = vrot.slane %v1789, 3
    %v1841 = vrot.slane %v1791, 3
    %v1842 = vrot.slane %v1830, 3
    %v1843 = vrot.slane %v1832, 3
    %v1848 = vadd.f32 %v638, %v1840
    %v1849 = vadd.f32 %v640, %v1841
    %v1850 = vadd.f32 %v679, %v1842
    %v1851 = vadd.f32 %v681, %v1843
    %v1852 = vxor.u32 %v1848, 2147483648
    %v1853 = vmul.f32 %v1852, 1.442695
    %v1854 = vpow.pop %v1853
    %v1855 = vadd.f32 %v1854, 1.0
    %v1856 = vrcp.pop %v1855
    %v1857 = vmul.f32 1.0, %v1856
    %v1858 = vxor.u32 %v1849, 2147483648
    %v1859 = vmul.f32 %v1858, 1.442695
    %v1860 = vpow.pop %v1859
    %v1861 = vadd.f32 %v1860, 1.0
    %v1862 = vrcp.pop %v1861
    %v1863 = vmul.f32 1.0, %v1862
    %v1864 = vtanh.pop %v1850
    %v1865 = vxor.u32 %v1851, 2147483648
    %v1866 = vmul.f32 %v1865, 1.442695
    %v1867 = vpow.pop %v1866
    %v1868 = vadd.f32 %v1867, 1.0
    %v1869 = vrcp.pop %v1868
    %v1870 = vmul.f32 1.0, %v1869
    %v1872 = vrot.slane %v1588, 1
    %v1874 = vmul.f32 %v1863, %v1872
    %v1875 = vmul.f32 %v1857, %v1864
    %v1876 = vadd.f32 %v1874, %v1875
    %v1877 = vtanh.pop %v1876
    %v1878 = vmul.f32 %v1870, %v1877
    %v1879 = vmul.f32 %v1749, %v1594
    %vm1880 = vcmask 1042434
    %v1881 = vsel %vm1880, %v1879, 0.0
    %1882 = vadd.xlane.f32.xlu0 %v1881
    %v1883 = vpop.xlane.xlu0 %1882
    %v1884 = vmul.f32 %v1878, %v1313
    %vm1885 = vcmask 1045509
    %v1886 = vsel %vm1885, %v1884, 0.0
    %1887 = vadd.xlane.f32.xlu0 %v1886
    %v1888 = vpop.xlane.xlu0 %1887
    %vm1889 = vcmp.eq.s32.totalorder %v687, 2
    %v1890 = vlaneseq
    %v1891 = vshrl.u32 %v1890, 7
    %v1892 = vsub.s32 2, %v1891
    %v1893 = vrot.slane %v1883, %v1892
    %v1894 = vsel %vm1889, %v1893, 0.0
    %v1895 = vadd.f32 %v1619, %v1894
    %vm1896 = vcmp.eq.s32.totalorder %v687, 5
    %v1897 = vlaneseq
    %v1898 = vshrl.u32 %v1897, 7
    %v1899 = vsub.s32 5, %v1898
    %v1900 = vrot.slane %v1888, %v1899
    %v1901 = vsel %vm1896, %v1900, 0.0
    %v1902 = vadd.f32 %v1895, %v1901
    %v1903 = vpack.c.bf16 %v1749, %v1749
    %v1905 = vrot.slane %v1903, 1
    %1907 = vmatprep.subr.bf16.mxu0 %v845
    %1908 = vmatpush1.bf16.msra.mxu0 %v844
    %1909 = vmatprep.subr.bf16.mxu0 %v841
    %1910 = vmatpush1.bf16.msra.mxu0 %v840
    %1911 = vmatprep.subr.bf16.mxu0 %v837
    %1912 = vmatpush1.bf16.msra.mxu0 %v836
    %1913 = vmatprep.subr.bf16.mxu0 %v833
    %1914 = vmatpush1.bf16.msra.mxu0 %v832
    %1915 = vmatprep.subr.bf16.mxu0 %v829
    %1916 = vmatpush1.bf16.msra.mxu0 %v828
    %1917 = vmatprep.subr.bf16.mxu0 %v825
    %1918 = vmatpush1.bf16.msra.mxu0 %v824
    %1919 = vmatprep.subr.bf16.mxu0 %v821
    %1920 = vmatpush1.bf16.msra.mxu0 %v820
    %1921 = vmatprep.subr.bf16.mxu0 %v817
    %1922 = vmatpush1.bf16.msra.mxu0 %v816
    %1923 = vmatprep.subr.bf16.mxu0 0
    %1924 = vmatpush2.bf16.msra.mxu0 0
    %1925 = vmatprep.subr.bf16.mxu0 0
    %1926 = vmatpush2.bf16.msra.mxu0 0
    %1927 = vmatprep.subr.bf16.mxu0 0
    %1928 = vmatpush2.bf16.msra.mxu0 0
    %1929 = vmatprep.subr.bf16.mxu0 0
    %1930 = vmatpush2.bf16.msra.mxu0 0
    %1931 = vmatprep.subr.bf16.mxu0 0
    %1932 = vmatpush2.bf16.msra.mxu0 0
    %1933 = vmatprep.subr.bf16.mxu0 0
    %1934 = vmatpush2.bf16.msra.mxu0 0
    %1935 = vmatprep.subr.bf16.mxu0 0
    %1936 = vmatpush2.bf16.msra.mxu0 0
    %1937 = vmatprep.subr.bf16.mxu0 0
    %1938 = vmatpush2.bf16.msra.mxu0 0
    %1939 = vmatprep.mubr.bf16.mxu0 0
    %1940 = vmatmul.mubr.bf16.gmra.mxu0 %v1905
    %v1941 = vpop.f32.mrf.mxu0
    %v1942 = vadd.f32 0.0, %v1941
    %v1943 = vpop.f32.mrf.mxu0
    %v1944 = vadd.f32 0.0, %v1943
    %v1945 = vpop.f32.mrf.mxu0
    %v1946 = vpop.f32.mrf.mxu0
    %1947 = vdwg.mxu0
    %1948 = vmatprep.subr.bf16.mxu0 %v847
    %1949 = vmatpush1.bf16.msra.mxu0 %v846
    %1950 = vmatprep.subr.bf16.mxu0 %v843
    %1951 = vmatpush1.bf16.msra.mxu0 %v842
    %1952 = vmatprep.subr.bf16.mxu0 %v839
    %1953 = vmatpush1.bf16.msra.mxu0 %v838
    %1954 = vmatprep.subr.bf16.mxu0 %v835
    %1955 = vmatpush1.bf16.msra.mxu0 %v834
    %1956 = vmatprep.subr.bf16.mxu0 %v831
    %1957 = vmatpush1.bf16.msra.mxu0 %v830
    %1958 = vmatprep.subr.bf16.mxu0 %v827
    %1959 = vmatpush1.bf16.msra.mxu0 %v826
    %1960 = vmatprep.subr.bf16.mxu0 %v823
    %1961 = vmatpush1.bf16.msra.mxu0 %v822
    %1962 = vmatprep.subr.bf16.mxu0 %v819
    %1963 = vmatpush1.bf16.msra.mxu0 %v818
    %1964 = vmatprep.subr.bf16.mxu0 0
    %1965 = vmatpush2.bf16.msra.mxu0 0
    %1966 = vmatprep.subr.bf16.mxu0 0
    %1967 = vmatpush2.bf16.msra.mxu0 0
    %1968 = vmatprep.subr.bf16.mxu0 0
    %1969 = vmatpush2.bf16.msra.mxu0 0
    %1970 = vmatprep.subr.bf16.mxu0 0
    %1971 = vmatpush2.bf16.msra.mxu0 0
    %1972 = vmatprep.subr.bf16.mxu0 0
    %1973 = vmatpush2.bf16.msra.mxu0 0
    %1974 = vmatprep.subr.bf16.mxu0 0
    %1975 = vmatpush2.bf16.msra.mxu0 0
    %1976 = vmatprep.subr.bf16.mxu0 0
    %1977 = vmatpush2.bf16.msra.mxu0 0
    %1978 = vmatprep.subr.bf16.mxu0 0
    %1979 = vmatpush2.bf16.msra.mxu0 0
    %1980 = vmatprep.mubr.bf16.mxu0 0
    %1981 = vmatmul.mubr.bf16.gmra.mxu0 %v1905
    %v1982 = vpop.f32.mrf.mxu0
    %v1983 = vadd.f32 0.0, %v1982
    %v1984 = vpop.f32.mrf.mxu0
    %v1985 = vadd.f32 0.0, %v1984
    %v1986 = vpop.f32.mrf.mxu0
    %v1987 = vpop.f32.mrf.mxu0
    %1988 = vdwg.mxu0
    %v1993 = vrot.slane %v1942, 5
    %v1994 = vrot.slane %v1944, 5
    %v1995 = vrot.slane %v1983, 5
    %v1996 = vrot.slane %v1985, 5
    %v2001 = vadd.f32 %v556, %v1993
    %v2002 = vadd.f32 %v558, %v1994
    %v2003 = vadd.f32 %v597, %v1995
    %v2004 = vadd.f32 %v599, %v1996
    %v2005 = vxor.u32 %v2001, 2147483648
    %v2006 = vmul.f32 %v2005, 1.442695
    %v2007 = vpow.pop %v2006
    %v2008 = vadd.f32 %v2007, 1.0
    %v2009 = vrcp.pop %v2008
    %v2010 = vmul.f32 1.0, %v2009
    %v2011 = vxor.u32 %v2002, 2147483648
    %v2012 = vmul.f32 %v2011, 1.442695
    %v2013 = vpow.pop %v2012
    %v2014 = vadd.f32 %v2013, 1.0
    %v2015 = vrcp.pop %v2014
    %v2016 = vmul.f32 1.0, %v2015
    %v2017 = vtanh.pop %v2003
    %v2018 = vxor.u32 %v2004, 2147483648
    %v2019 = vmul.f32 %v2018, 1.442695
    %v2020 = vpow.pop %v2019
    %v2021 = vadd.f32 %v2020, 1.0
    %v2022 = vrcp.pop %v2021
    %v2023 = vmul.f32 1.0, %v2022
    %v2025 = vrot.slane %v1747, 7
    %v2027 = vmul.f32 %v2016, %v2025
    %v2028 = vmul.f32 %v2010, %v2017
    %v2029 = vadd.f32 %v2027, %v2028
    %v2030 = vtanh.pop %v2029
    %v2031 = vmul.f32 %v2023, %v2030
    %v2032 = vpack.c.bf16 %v1878, %v1878
    %v2034 = vshrl.u32 %v2032, 16
    %v2036 = vrot.slane %v2034, 2
    %2038 = vmatprep.subr.bf16.mxu0 %v1147
    %2039 = vmatpush1.bf16.msra.mxu0 %v1146
    %2040 = vmatprep.subr.bf16.mxu0 %v1143
    %2041 = vmatpush1.bf16.msra.mxu0 %v1142
    %2042 = vmatprep.subr.bf16.mxu0 %v1139
    %2043 = vmatpush1.bf16.msra.mxu0 %v1138
    %2044 = vmatprep.subr.bf16.mxu0 %v1135
    %2045 = vmatpush1.bf16.msra.mxu0 %v1134
    %2046 = vmatprep.subr.bf16.mxu0 %v1131
    %2047 = vmatpush1.bf16.msra.mxu0 %v1130
    %2048 = vmatprep.subr.bf16.mxu0 %v1127
    %2049 = vmatpush1.bf16.msra.mxu0 %v1126
    %2050 = vmatprep.subr.bf16.mxu0 %v1123
    %2051 = vmatpush1.bf16.msra.mxu0 %v1122
    %2052 = vmatprep.subr.bf16.mxu0 %v1119
    %2053 = vmatpush1.bf16.msra.mxu0 %v1118
    %2054 = vmatprep.subr.bf16.mxu0 0
    %2055 = vmatpush2.bf16.msra.mxu0 0
    %2056 = vmatprep.subr.bf16.mxu0 0
    %2057 = vmatpush2.bf16.msra.mxu0 0
    %2058 = vmatprep.subr.bf16.mxu0 0
    %2059 = vmatpush2.bf16.msra.mxu0 0
    %2060 = vmatprep.subr.bf16.mxu0 0
    %2061 = vmatpush2.bf16.msra.mxu0 0
    %2062 = vmatprep.subr.bf16.mxu0 0
    %2063 = vmatpush2.bf16.msra.mxu0 0
    %2064 = vmatprep.subr.bf16.mxu0 0
    %2065 = vmatpush2.bf16.msra.mxu0 0
    %2066 = vmatprep.subr.bf16.mxu0 0
    %2067 = vmatpush2.bf16.msra.mxu0 0
    %2068 = vmatprep.subr.bf16.mxu0 0
    %2069 = vmatpush2.bf16.msra.mxu0 0
    %2070 = vmatprep.mubr.bf16.mxu0 0
    %2071 = vmatmul.mubr.bf16.gmra.mxu0 %v2036
    %v2072 = vpop.f32.mrf.mxu0
    %v2073 = vadd.f32 0.0, %v2072
    %v2074 = vpop.f32.mrf.mxu0
    %v2075 = vadd.f32 0.0, %v2074
    %v2076 = vpop.f32.mrf.mxu0
    %v2077 = vpop.f32.mrf.mxu0
    %2078 = vdwg.mxu0
    %2079 = vmatprep.subr.bf16.mxu0 %v1149
    %2080 = vmatpush1.bf16.msra.mxu0 %v1148
    %2081 = vmatprep.subr.bf16.mxu0 %v1145
    %2082 = vmatpush1.bf16.msra.mxu0 %v1144
    %2083 = vmatprep.subr.bf16.mxu0 %v1141
    %2084 = vmatpush1.bf16.msra.mxu0 %v1140
    %2085 = vmatprep.subr.bf16.mxu0 %v1137
    %2086 = vmatpush1.bf16.msra.mxu0 %v1136
    %2087 = vmatprep.subr.bf16.mxu0 %v1133
    %2088 = vmatpush1.bf16.msra.mxu0 %v1132
    %2089 = vmatprep.subr.bf16.mxu0 %v1129
    %2090 = vmatpush1.bf16.msra.mxu0 %v1128
    %2091 = vmatprep.subr.bf16.mxu0 %v1125
    %2092 = vmatpush1.bf16.msra.mxu0 %v1124
    %2093 = vmatprep.subr.bf16.mxu0 %v1121
    %2094 = vmatpush1.bf16.msra.mxu0 %v1120
    %2095 = vmatprep.subr.bf16.mxu0 0
    %2096 = vmatpush2.bf16.msra.mxu0 0
    %2097 = vmatprep.subr.bf16.mxu0 0
    %2098 = vmatpush2.bf16.msra.mxu0 0
    %2099 = vmatprep.subr.bf16.mxu0 0
    %2100 = vmatpush2.bf16.msra.mxu0 0
    %2101 = vmatprep.subr.bf16.mxu0 0
    %2102 = vmatpush2.bf16.msra.mxu0 0
    %2103 = vmatprep.subr.bf16.mxu0 0
    %2104 = vmatpush2.bf16.msra.mxu0 0
    %2105 = vmatprep.subr.bf16.mxu0 0
    %2106 = vmatpush2.bf16.msra.mxu0 0
    %2107 = vmatprep.subr.bf16.mxu0 0
    %2108 = vmatpush2.bf16.msra.mxu0 0
    %2109 = vmatprep.subr.bf16.mxu0 0
    %2110 = vmatpush2.bf16.msra.mxu0 0
    %2111 = vmatprep.mubr.bf16.mxu0 0
    %2112 = vmatmul.mubr.bf16.gmra.mxu0 %v2036
    %v2113 = vpop.f32.mrf.mxu0
    %v2114 = vadd.f32 0.0, %v2113
    %v2115 = vpop.f32.mrf.mxu0
    %v2116 = vadd.f32 0.0, %v2115
    %v2117 = vpop.f32.mrf.mxu0
    %v2118 = vpop.f32.mrf.mxu0
    %2119 = vdwg.mxu0
    %v2124 = vrot.slane %v2073, 4
    %v2125 = vrot.slane %v2075, 4
    %v2126 = vrot.slane %v2114, 4
    %v2127 = vrot.slane %v2116, 4
    %v2132 = vadd.f32 %v638, %v2124
    %v2133 = vadd.f32 %v640, %v2125
    %v2134 = vadd.f32 %v679, %v2126
    %v2135 = vadd.f32 %v681, %v2127
    %v2136 = vxor.u32 %v2132, 2147483648
    %v2137 = vmul.f32 %v2136, 1.442695
    %v2138 = vpow.pop %v2137
    %v2139 = vadd.f32 %v2138, 1.0
    %v2140 = vrcp.pop %v2139
    %v2141 = vmul.f32 1.0, %v2140
    %v2142 = vxor.u32 %v2133, 2147483648
    %v2143 = vmul.f32 %v2142, 1.442695
    %v2144 = vpow.pop %v2143
    %v2145 = vadd.f32 %v2144, 1.0
    %v2146 = vrcp.pop %v2145
    %v2147 = vmul.f32 1.0, %v2146
    %v2148 = vtanh.pop %v2134
    %v2149 = vxor.u32 %v2135, 2147483648
    %v2150 = vmul.f32 %v2149, 1.442695
    %v2151 = vpow.pop %v2150
    %v2152 = vadd.f32 %v2151, 1.0
    %v2153 = vrcp.pop %v2152
    %v2154 = vmul.f32 1.0, %v2153
    %v2156 = vrot.slane %v1876, 1
    %v2158 = vmul.f32 %v2147, %v2156
    %v2159 = vmul.f32 %v2141, %v2148
    %v2160 = vadd.f32 %v2158, %v2159
    %v2161 = vtanh.pop %v2160
    %v2162 = vmul.f32 %v2154, %v2161
    %v2163 = vmul.f32 %v2031, %v1594
    %vm2164 = vcmask 1043459
    %v2165 = vsel %vm2164, %v2163, 0.0
    %2166 = vadd.xlane.f32.xlu0 %v2165
    %v2167 = vpop.xlane.xlu0 %2166
    %v2168 = vmul.f32 %v2162, %v1313
    %vm2169 = vcmask 1044484
    %v2170 = vsel %vm2169, %v2168, 0.0
    %2171 = vadd.xlane.f32.xlu0 %v2170
    %v2172 = vpop.xlane.xlu0 %2171
    %vm2173 = vcmp.eq.s32.totalorder %v687, 3
    %v2174 = vlaneseq
    %v2175 = vshrl.u32 %v2174, 7
    %v2176 = vsub.s32 3, %v2175
    %v2177 = vrot.slane %v2167, %v2176
    %v2178 = vsel %vm2173, %v2177, 0.0
    %v2179 = vadd.f32 %v1902, %v2178
    %vm2180 = vcmp.eq.s32.totalorder %v687, 4
    %v2181 = vlaneseq
    %v2182 = vshrl.u32 %v2181, 7
    %v2183 = vsub.s32 4, %v2182
    %v2184 = vrot.slane %v2172, %v2183
    %v2185 = vsel %vm2180, %v2184, 0.0
    %v2186 = vadd.f32 %v2179, %v2185
    %v2187 = vpack.c.bf16 %v2031, %v2031
    %v2189 = vshrl.u32 %v2187, 16
    %v2191 = vrot.slane %v2189, 1
    %2193 = vmatprep.subr.bf16.mxu0 %v845
    %2194 = vmatpush1.bf16.msra.mxu0 %v844
    %2195 = vmatprep.subr.bf16.mxu0 %v841
    %2196 = vmatpush1.bf16.msra.mxu0 %v840
    %2197 = vmatprep.subr.bf16.mxu0 %v837
    %2198 = vmatpush1.bf16.msra.mxu0 %v836
    %2199 = vmatprep.subr.bf16.mxu0 %v833
    %2200 = vmatpush1.bf16.msra.mxu0 %v832
    %2201 = vmatprep.subr.bf16.mxu0 %v829
    %2202 = vmatpush1.bf16.msra.mxu0 %v828
    %2203 = vmatprep.subr.bf16.mxu0 %v825
    %2204 = vmatpush1.bf16.msra.mxu0 %v824
    %2205 = vmatprep.subr.bf16.mxu0 %v821
    %2206 = vmatpush1.bf16.msra.mxu0 %v820
    %2207 = vmatprep.subr.bf16.mxu0 %v817
    %2208 = vmatpush1.bf16.msra.mxu0 %v816
    %2209 = vmatprep.subr.bf16.mxu0 0
    %2210 = vmatpush2.bf16.msra.mxu0 0
    %2211 = vmatprep.subr.bf16.mxu0 0
    %2212 = vmatpush2.bf16.msra.mxu0 0
    %2213 = vmatprep.subr.bf16.mxu0 0
    %2214 = vmatpush2.bf16.msra.mxu0 0
    %2215 = vmatprep.subr.bf16.mxu0 0
    %2216 = vmatpush2.bf16.msra.mxu0 0
    %2217 = vmatprep.subr.bf16.mxu0 0
    %2218 = vmatpush2.bf16.msra.mxu0 0
    %2219 = vmatprep.subr.bf16.mxu0 0
    %2220 = vmatpush2.bf16.msra.mxu0 0
    %2221 = vmatprep.subr.bf16.mxu0 0
    %2222 = vmatpush2.bf16.msra.mxu0 0
    %2223 = vmatprep.subr.bf16.mxu0 0
    %2224 = vmatpush2.bf16.msra.mxu0 0
    %2225 = vmatprep.mubr.bf16.mxu0 0
    %2226 = vmatmul.mubr.bf16.gmra.mxu0 %v2191
    %v2227 = vpop.f32.mrf.mxu0
    %v2228 = vadd.f32 0.0, %v2227
    %v2229 = vpop.f32.mrf.mxu0
    %v2230 = vadd.f32 0.0, %v2229
    %v2231 = vpop.f32.mrf.mxu0
    %v2232 = vpop.f32.mrf.mxu0
    %2233 = vdwg.mxu0
    %2234 = vmatprep.subr.bf16.mxu0 %v847
    %2235 = vmatpush1.bf16.msra.mxu0 %v846
    %2236 = vmatprep.subr.bf16.mxu0 %v843
    %2237 = vmatpush1.bf16.msra.mxu0 %v842
    %2238 = vmatprep.subr.bf16.mxu0 %v839
    %2239 = vmatpush1.bf16.msra.mxu0 %v838
    %2240 = vmatprep.subr.bf16.mxu0 %v835
    %2241 = vmatpush1.bf16.msra.mxu0 %v834
    %2242 = vmatprep.subr.bf16.mxu0 %v831
    %2243 = vmatpush1.bf16.msra.mxu0 %v830
    %2244 = vmatprep.subr.bf16.mxu0 %v827
    %2245 = vmatpush1.bf16.msra.mxu0 %v826
    %2246 = vmatprep.subr.bf16.mxu0 %v823
    %2247 = vmatpush1.bf16.msra.mxu0 %v822
    %2248 = vmatprep.subr.bf16.mxu0 %v819
    %2249 = vmatpush1.bf16.msra.mxu0 %v818
    %2250 = vmatprep.subr.bf16.mxu0 0
    %2251 = vmatpush2.bf16.msra.mxu0 0
    %2252 = vmatprep.subr.bf16.mxu0 0
    %2253 = vmatpush2.bf16.msra.mxu0 0
    %2254 = vmatprep.subr.bf16.mxu0 0
    %2255 = vmatpush2.bf16.msra.mxu0 0
    %2256 = vmatprep.subr.bf16.mxu0 0
    %2257 = vmatpush2.bf16.msra.mxu0 0
    %2258 = vmatprep.subr.bf16.mxu0 0
    %2259 = vmatpush2.bf16.msra.mxu0 0
    %2260 = vmatprep.subr.bf16.mxu0 0
    %2261 = vmatpush2.bf16.msra.mxu0 0
    %2262 = vmatprep.subr.bf16.mxu0 0
    %2263 = vmatpush2.bf16.msra.mxu0 0
    %2264 = vmatprep.subr.bf16.mxu0 0
    %2265 = vmatpush2.bf16.msra.mxu0 0
    %2266 = vmatprep.mubr.bf16.mxu0 0
    %2267 = vmatmul.mubr.bf16.gmra.mxu0 %v2191
    %v2268 = vpop.f32.mrf.mxu0
    %v2269 = vadd.f32 0.0, %v2268
    %v2270 = vpop.f32.mrf.mxu0
    %v2271 = vadd.f32 0.0, %v2270
    %v2272 = vpop.f32.mrf.mxu0
    %v2273 = vpop.f32.mrf.mxu0
    %2274 = vdwg.mxu0
    %v2279 = vrot.slane %v2228, 4
    %v2280 = vrot.slane %v2230, 4
    %v2281 = vrot.slane %v2269, 4
    %v2282 = vrot.slane %v2271, 4
    %v2287 = vadd.f32 %v556, %v2279
    %v2288 = vadd.f32 %v558, %v2280
    %v2289 = vadd.f32 %v597, %v2281
    %v2290 = vadd.f32 %v599, %v2282
    %v2291 = vxor.u32 %v2287, 2147483648
    %v2292 = vmul.f32 %v2291, 1.442695
    %v2293 = vpow.pop %v2292
    %v2294 = vadd.f32 %v2293, 1.0
    %v2295 = vrcp.pop %v2294
    %v2296 = vmul.f32 1.0, %v2295
    %v2297 = vxor.u32 %v2288, 2147483648
    %v2298 = vmul.f32 %v2297, 1.442695
    %v2299 = vpow.pop %v2298
    %v2300 = vadd.f32 %v2299, 1.0
    %v2301 = vrcp.pop %v2300
    %v2302 = vmul.f32 1.0, %v2301
    %v2303 = vtanh.pop %v2289
    %v2304 = vxor.u32 %v2290, 2147483648
    %v2305 = vmul.f32 %v2304, 1.442695
    %v2306 = vpow.pop %v2305
    %v2307 = vadd.f32 %v2306, 1.0
    %v2308 = vrcp.pop %v2307
    %v2309 = vmul.f32 1.0, %v2308
    %v2311 = vrot.slane %v2029, 7
    %v2313 = vmul.f32 %v2302, %v2311
    %v2314 = vmul.f32 %v2296, %v2303
    %v2315 = vadd.f32 %v2313, %v2314
    %v2316 = vtanh.pop %v2315
    %v2317 = vmul.f32 %v2309, %v2316
    %v2318 = vpack.c.bf16 %v2162, %v2162
    %v2320 = vrot.slane %v2318, 2
    %2322 = vmatprep.subr.bf16.mxu0 %v1147
    %2323 = vmatpush1.bf16.msra.mxu0 %v1146
    %2324 = vmatprep.subr.bf16.mxu0 %v1143
    %2325 = vmatpush1.bf16.msra.mxu0 %v1142
    %2326 = vmatprep.subr.bf16.mxu0 %v1139
    %2327 = vmatpush1.bf16.msra.mxu0 %v1138
    %2328 = vmatprep.subr.bf16.mxu0 %v1135
    %2329 = vmatpush1.bf16.msra.mxu0 %v1134
    %2330 = vmatprep.subr.bf16.mxu0 %v1131
    %2331 = vmatpush1.bf16.msra.mxu0 %v1130
    %2332 = vmatprep.subr.bf16.mxu0 %v1127
    %2333 = vmatpush1.bf16.msra.mxu0 %v1126
    %2334 = vmatprep.subr.bf16.mxu0 %v1123
    %2335 = vmatpush1.bf16.msra.mxu0 %v1122
    %2336 = vmatprep.subr.bf16.mxu0 %v1119
    %2337 = vmatpush1.bf16.msra.mxu0 %v1118
    %2338 = vmatprep.subr.bf16.mxu0 0
    %2339 = vmatpush2.bf16.msra.mxu0 0
    %2340 = vmatprep.subr.bf16.mxu0 0
    %2341 = vmatpush2.bf16.msra.mxu0 0
    %2342 = vmatprep.subr.bf16.mxu0 0
    %2343 = vmatpush2.bf16.msra.mxu0 0
    %2344 = vmatprep.subr.bf16.mxu0 0
    %2345 = vmatpush2.bf16.msra.mxu0 0
    %2346 = vmatprep.subr.bf16.mxu0 0
    %2347 = vmatpush2.bf16.msra.mxu0 0
    %2348 = vmatprep.subr.bf16.mxu0 0
    %2349 = vmatpush2.bf16.msra.mxu0 0
    %2350 = vmatprep.subr.bf16.mxu0 0
    %2351 = vmatpush2.bf16.msra.mxu0 0
    %2352 = vmatprep.subr.bf16.mxu0 0
    %2353 = vmatpush2.bf16.msra.mxu0 0
    %2354 = vmatprep.mubr.bf16.mxu0 0
    %2355 = vmatmul.mubr.bf16.gmra.mxu0 %v2320
    %v2356 = vpop.f32.mrf.mxu0
    %v2357 = vadd.f32 0.0, %v2356
    %v2358 = vpop.f32.mrf.mxu0
    %v2359 = vadd.f32 0.0, %v2358
    %v2360 = vpop.f32.mrf.mxu0
    %v2361 = vpop.f32.mrf.mxu0
    %2362 = vdwg.mxu0
    %2363 = vmatprep.subr.bf16.mxu0 %v1149
    %2364 = vmatpush1.bf16.msra.mxu0 %v1148
    %2365 = vmatprep.subr.bf16.mxu0 %v1145
    %2366 = vmatpush1.bf16.msra.mxu0 %v1144
    %2367 = vmatprep.subr.bf16.mxu0 %v1141
    %2368 = vmatpush1.bf16.msra.mxu0 %v1140
    %2369 = vmatprep.subr.bf16.mxu0 %v1137
    %2370 = vmatpush1.bf16.msra.mxu0 %v1136
    %2371 = vmatprep.subr.bf16.mxu0 %v1133
    %2372 = vmatpush1.bf16.msra.mxu0 %v1132
    %2373 = vmatprep.subr.bf16.mxu0 %v1129
    %2374 = vmatpush1.bf16.msra.mxu0 %v1128
    %2375 = vmatprep.subr.bf16.mxu0 %v1125
    %2376 = vmatpush1.bf16.msra.mxu0 %v1124
    %2377 = vmatprep.subr.bf16.mxu0 %v1121
    %2378 = vmatpush1.bf16.msra.mxu0 %v1120
    %2379 = vmatprep.subr.bf16.mxu0 0
    %2380 = vmatpush2.bf16.msra.mxu0 0
    %2381 = vmatprep.subr.bf16.mxu0 0
    %2382 = vmatpush2.bf16.msra.mxu0 0
    %2383 = vmatprep.subr.bf16.mxu0 0
    %2384 = vmatpush2.bf16.msra.mxu0 0
    %2385 = vmatprep.subr.bf16.mxu0 0
    %2386 = vmatpush2.bf16.msra.mxu0 0
    %2387 = vmatprep.subr.bf16.mxu0 0
    %2388 = vmatpush2.bf16.msra.mxu0 0
    %2389 = vmatprep.subr.bf16.mxu0 0
    %2390 = vmatpush2.bf16.msra.mxu0 0
    %2391 = vmatprep.subr.bf16.mxu0 0
    %2392 = vmatpush2.bf16.msra.mxu0 0
    %2393 = vmatprep.subr.bf16.mxu0 0
    %2394 = vmatpush2.bf16.msra.mxu0 0
    %2395 = vmatprep.mubr.bf16.mxu0 0
    %2396 = vmatmul.mubr.bf16.gmra.mxu0 %v2320
    %v2397 = vpop.f32.mrf.mxu0
    %v2398 = vadd.f32 0.0, %v2397
    %v2399 = vpop.f32.mrf.mxu0
    %v2400 = vadd.f32 0.0, %v2399
    %v2401 = vpop.f32.mrf.mxu0
    %v2402 = vpop.f32.mrf.mxu0
    %2403 = vdwg.mxu0
    %v2408 = vrot.slane %v2357, 5
    %v2409 = vrot.slane %v2359, 5
    %v2410 = vrot.slane %v2398, 5
    %v2411 = vrot.slane %v2400, 5
    %v2416 = vadd.f32 %v638, %v2408
    %v2417 = vadd.f32 %v640, %v2409
    %v2418 = vadd.f32 %v679, %v2410
    %v2419 = vadd.f32 %v681, %v2411
    %v2420 = vxor.u32 %v2416, 2147483648
    %v2421 = vmul.f32 %v2420, 1.442695
    %v2422 = vpow.pop %v2421
    %v2423 = vadd.f32 %v2422, 1.0
    %v2424 = vrcp.pop %v2423
    %v2425 = vmul.f32 1.0, %v2424
    %v2426 = vxor.u32 %v2417, 2147483648
    %v2427 = vmul.f32 %v2426, 1.442695
    %v2428 = vpow.pop %v2427
    %v2429 = vadd.f32 %v2428, 1.0
    %v2430 = vrcp.pop %v2429
    %v2431 = vmul.f32 1.0, %v2430
    %v2432 = vtanh.pop %v2418
    %v2433 = vxor.u32 %v2419, 2147483648
    %v2434 = vmul.f32 %v2433, 1.442695
    %v2435 = vpow.pop %v2434
    %v2436 = vadd.f32 %v2435, 1.0
    %v2437 = vrcp.pop %v2436
    %v2438 = vmul.f32 1.0, %v2437
    %v2440 = vrot.slane %v2160, 1
    %v2442 = vmul.f32 %v2431, %v2440
    %v2443 = vmul.f32 %v2425, %v2432
    %v2444 = vadd.f32 %v2442, %v2443
    %v2445 = vtanh.pop %v2444
    %v2446 = vmul.f32 %v2438, %v2445
    %v2447 = vmul.f32 %v2317, %v1594
    %v2448 = vsel %vm2169, %v2447, 0.0
    %2449 = vadd.xlane.f32.xlu0 %v2448
    %v2450 = vpop.xlane.xlu0 %2449
    %v2451 = vmul.f32 %v2446, %v1313
    %v2452 = vsel %vm2164, %v2451, 0.0
    %2453 = vadd.xlane.f32.xlu0 %v2452
    %v2454 = vpop.xlane.xlu0 %2453
    %v2455 = vlaneseq
    %v2456 = vshrl.u32 %v2455, 7
    %v2457 = vsub.s32 4, %v2456
    %v2458 = vrot.slane %v2450, %v2457
    %v2459 = vsel %vm2180, %v2458, 0.0
    %v2460 = vadd.f32 %v2186, %v2459
    %v2461 = vlaneseq
    %v2462 = vshrl.u32 %v2461, 7
    %v2463 = vsub.s32 3, %v2462
    %v2464 = vrot.slane %v2454, %v2463
    %v2465 = vsel %vm2173, %v2464, 0.0
    %v2466 = vadd.f32 %v2460, %v2465
    %v2467 = vpack.c.bf16 %v2317, %v2317
    %v2469 = vrot.slane %v2467, 2
    %2471 = vmatprep.subr.bf16.mxu0 %v845
    %2472 = vmatpush1.bf16.msra.mxu0 %v844
    %2473 = vmatprep.subr.bf16.mxu0 %v841
    %2474 = vmatpush1.bf16.msra.mxu0 %v840
    %2475 = vmatprep.subr.bf16.mxu0 %v837
    %2476 = vmatpush1.bf16.msra.mxu0 %v836
    %2477 = vmatprep.subr.bf16.mxu0 %v833
    %2478 = vmatpush1.bf16.msra.mxu0 %v832
    %2479 = vmatprep.subr.bf16.mxu0 %v829
    %2480 = vmatpush1.bf16.msra.mxu0 %v828
    %2481 = vmatprep.subr.bf16.mxu0 %v825
    %2482 = vmatpush1.bf16.msra.mxu0 %v824
    %2483 = vmatprep.subr.bf16.mxu0 %v821
    %2484 = vmatpush1.bf16.msra.mxu0 %v820
    %2485 = vmatprep.subr.bf16.mxu0 %v817
    %2486 = vmatpush1.bf16.msra.mxu0 %v816
    %2487 = vmatprep.subr.bf16.mxu0 0
    %2488 = vmatpush2.bf16.msra.mxu0 0
    %2489 = vmatprep.subr.bf16.mxu0 0
    %2490 = vmatpush2.bf16.msra.mxu0 0
    %2491 = vmatprep.subr.bf16.mxu0 0
    %2492 = vmatpush2.bf16.msra.mxu0 0
    %2493 = vmatprep.subr.bf16.mxu0 0
    %2494 = vmatpush2.bf16.msra.mxu0 0
    %2495 = vmatprep.subr.bf16.mxu0 0
    %2496 = vmatpush2.bf16.msra.mxu0 0
    %2497 = vmatprep.subr.bf16.mxu0 0
    %2498 = vmatpush2.bf16.msra.mxu0 0
    %2499 = vmatprep.subr.bf16.mxu0 0
    %2500 = vmatpush2.bf16.msra.mxu0 0
    %2501 = vmatprep.subr.bf16.mxu0 0
    %2502 = vmatpush2.bf16.msra.mxu0 0
    %2503 = vmatprep.mubr.bf16.mxu0 0
    %2504 = vmatmul.mubr.bf16.gmra.mxu0 %v2469
    %v2505 = vpop.f32.mrf.mxu0
    %v2506 = vadd.f32 0.0, %v2505
    %v2507 = vpop.f32.mrf.mxu0
    %v2508 = vadd.f32 0.0, %v2507
    %v2509 = vpop.f32.mrf.mxu0
    %v2510 = vpop.f32.mrf.mxu0
    %2511 = vdwg.mxu0
    %2512 = vmatprep.subr.bf16.mxu0 %v847
    %2513 = vmatpush1.bf16.msra.mxu0 %v846
    %2514 = vmatprep.subr.bf16.mxu0 %v843
    %2515 = vmatpush1.bf16.msra.mxu0 %v842
    %2516 = vmatprep.subr.bf16.mxu0 %v839
    %2517 = vmatpush1.bf16.msra.mxu0 %v838
    %2518 = vmatprep.subr.bf16.mxu0 %v835
    %2519 = vmatpush1.bf16.msra.mxu0 %v834
    %2520 = vmatprep.subr.bf16.mxu0 %v831
    %2521 = vmatpush1.bf16.msra.mxu0 %v830
    %2522 = vmatprep.subr.bf16.mxu0 %v827
    %2523 = vmatpush1.bf16.msra.mxu0 %v826
    %2524 = vmatprep.subr.bf16.mxu0 %v823
    %2525 = vmatpush1.bf16.msra.mxu0 %v822
    %2526 = vmatprep.subr.bf16.mxu0 %v819
    %2527 = vmatpush1.bf16.msra.mxu0 %v818
    %2528 = vmatprep.subr.bf16.mxu0 0
    %2529 = vmatpush2.bf16.msra.mxu0 0
    %2530 = vmatprep.subr.bf16.mxu0 0
    %2531 = vmatpush2.bf16.msra.mxu0 0
    %2532 = vmatprep.subr.bf16.mxu0 0
    %2533 = vmatpush2.bf16.msra.mxu0 0
    %2534 = vmatprep.subr.bf16.mxu0 0
    %2535 = vmatpush2.bf16.msra.mxu0 0
    %2536 = vmatprep.subr.bf16.mxu0 0
    %2537 = vmatpush2.bf16.msra.mxu0 0
    %2538 = vmatprep.subr.bf16.mxu0 0
    %2539 = vmatpush2.bf16.msra.mxu0 0
    %2540 = vmatprep.subr.bf16.mxu0 0
    %2541 = vmatpush2.bf16.msra.mxu0 0
    %2542 = vmatprep.subr.bf16.mxu0 0
    %2543 = vmatpush2.bf16.msra.mxu0 0
    %2544 = vmatprep.mubr.bf16.mxu0 0
    %2545 = vmatmul.mubr.bf16.gmra.mxu0 %v2469
    %v2546 = vpop.f32.mrf.mxu0
    %v2547 = vadd.f32 0.0, %v2546
    %v2548 = vpop.f32.mrf.mxu0
    %v2549 = vadd.f32 0.0, %v2548
    %v2550 = vpop.f32.mrf.mxu0
    %v2551 = vpop.f32.mrf.mxu0
    %2552 = vdwg.mxu0
    %v2557 = vrot.slane %v2506, 3
    %v2558 = vrot.slane %v2508, 3
    %v2559 = vrot.slane %v2547, 3
    %v2560 = vrot.slane %v2549, 3
    %v2565 = vadd.f32 %v556, %v2557
    %v2566 = vadd.f32 %v558, %v2558
    %v2567 = vadd.f32 %v597, %v2559
    %v2568 = vadd.f32 %v599, %v2560
    %v2569 = vxor.u32 %v2565, 2147483648
    %v2570 = vmul.f32 %v2569, 1.442695
    %v2571 = vpow.pop %v2570
    %v2572 = vadd.f32 %v2571, 1.0
    %v2573 = vrcp.pop %v2572
    %v2574 = vmul.f32 1.0, %v2573
    %v2575 = vxor.u32 %v2566, 2147483648
    %v2576 = vmul.f32 %v2575, 1.442695
    %v2577 = vpow.pop %v2576
    %v2578 = vadd.f32 %v2577, 1.0
    %v2579 = vrcp.pop %v2578
    %v2580 = vmul.f32 1.0, %v2579
    %v2581 = vtanh.pop %v2567
    %v2582 = vxor.u32 %v2568, 2147483648
    %v2583 = vmul.f32 %v2582, 1.442695
    %v2584 = vpow.pop %v2583
    %v2585 = vadd.f32 %v2584, 1.0
    %v2586 = vrcp.pop %v2585
    %v2587 = vmul.f32 1.0, %v2586
    %v2589 = vrot.slane %v2315, 7
    %v2591 = vmul.f32 %v2580, %v2589
    %v2592 = vmul.f32 %v2574, %v2581
    %v2593 = vadd.f32 %v2591, %v2592
    %v2594 = vtanh.pop %v2593
    %v2595 = vmul.f32 %v2587, %v2594
    %v2596 = vpack.c.bf16 %v2446, %v2446
    %v2598 = vshrl.u32 %v2596, 16
    %v2600 = vrot.slane %v2598, 1
    %2602 = vmatprep.subr.bf16.mxu0 %v1147
    %2603 = vmatpush1.bf16.msra.mxu0 %v1146
    %2604 = vmatprep.subr.bf16.mxu0 %v1143
    %2605 = vmatpush1.bf16.msra.mxu0 %v1142
    %2606 = vmatprep.subr.bf16.mxu0 %v1139
    %2607 = vmatpush1.bf16.msra.mxu0 %v1138
    %2608 = vmatprep.subr.bf16.mxu0 %v1135
    %2609 = vmatpush1.bf16.msra.mxu0 %v1134
    %2610 = vmatprep.subr.bf16.mxu0 %v1131
    %2611 = vmatpush1.bf16.msra.mxu0 %v1130
    %2612 = vmatprep.subr.bf16.mxu0 %v1127
    %2613 = vmatpush1.bf16.msra.mxu0 %v1126
    %2614 = vmatprep.subr.bf16.mxu0 %v1123
    %2615 = vmatpush1.bf16.msra.mxu0 %v1122
    %2616 = vmatprep.subr.bf16.mxu0 %v1119
    %2617 = vmatpush1.bf16.msra.mxu0 %v1118
    %2618 = vmatprep.subr.bf16.mxu0 0
    %2619 = vmatpush2.bf16.msra.mxu0 0
    %2620 = vmatprep.subr.bf16.mxu0 0
    %2621 = vmatpush2.bf16.msra.mxu0 0
    %2622 = vmatprep.subr.bf16.mxu0 0
    %2623 = vmatpush2.bf16.msra.mxu0 0
    %2624 = vmatprep.subr.bf16.mxu0 0
    %2625 = vmatpush2.bf16.msra.mxu0 0
    %2626 = vmatprep.subr.bf16.mxu0 0
    %2627 = vmatpush2.bf16.msra.mxu0 0
    %2628 = vmatprep.subr.bf16.mxu0 0
    %2629 = vmatpush2.bf16.msra.mxu0 0
    %2630 = vmatprep.subr.bf16.mxu0 0
    %2631 = vmatpush2.bf16.msra.mxu0 0
    %2632 = vmatprep.subr.bf16.mxu0 0
    %2633 = vmatpush2.bf16.msra.mxu0 0
    %2634 = vmatprep.mubr.bf16.mxu0 0
    %2635 = vmatmul.mubr.bf16.gmra.mxu0 %v2600
    %v2636 = vpop.f32.mrf.mxu0
    %v2637 = vadd.f32 0.0, %v2636
    %v2638 = vpop.f32.mrf.mxu0
    %v2639 = vadd.f32 0.0, %v2638
    %v2640 = vpop.f32.mrf.mxu0
    %v2641 = vpop.f32.mrf.mxu0
    %2642 = vdwg.mxu0
    %2643 = vmatprep.subr.bf16.mxu0 %v1149
    %2644 = vmatpush1.bf16.msra.mxu0 %v1148
    %2645 = vmatprep.subr.bf16.mxu0 %v1145
    %2646 = vmatpush1.bf16.msra.mxu0 %v1144
    %2647 = vmatprep.subr.bf16.mxu0 %v1141
    %2648 = vmatpush1.bf16.msra.mxu0 %v1140
    %2649 = vmatprep.subr.bf16.mxu0 %v1137
    %2650 = vmatpush1.bf16.msra.mxu0 %v1136
    %2651 = vmatprep.subr.bf16.mxu0 %v1133
    %2652 = vmatpush1.bf16.msra.mxu0 %v1132
    %2653 = vmatprep.subr.bf16.mxu0 %v1129
    %2654 = vmatpush1.bf16.msra.mxu0 %v1128
    %2655 = vmatprep.subr.bf16.mxu0 %v1125
    %2656 = vmatpush1.bf16.msra.mxu0 %v1124
    %2657 = vmatprep.subr.bf16.mxu0 %v1121
    %2658 = vmatpush1.bf16.msra.mxu0 %v1120
    %2659 = vmatprep.subr.bf16.mxu0 0
    %2660 = vmatpush2.bf16.msra.mxu0 0
    %2661 = vmatprep.subr.bf16.mxu0 0
    %2662 = vmatpush2.bf16.msra.mxu0 0
    %2663 = vmatprep.subr.bf16.mxu0 0
    %2664 = vmatpush2.bf16.msra.mxu0 0
    %2665 = vmatprep.subr.bf16.mxu0 0
    %2666 = vmatpush2.bf16.msra.mxu0 0
    %2667 = vmatprep.subr.bf16.mxu0 0
    %2668 = vmatpush2.bf16.msra.mxu0 0
    %2669 = vmatprep.subr.bf16.mxu0 0
    %2670 = vmatpush2.bf16.msra.mxu0 0
    %2671 = vmatprep.subr.bf16.mxu0 0
    %2672 = vmatpush2.bf16.msra.mxu0 0
    %2673 = vmatprep.subr.bf16.mxu0 0
    %2674 = vmatpush2.bf16.msra.mxu0 0
    %2675 = vmatprep.mubr.bf16.mxu0 0
    %2676 = vmatmul.mubr.bf16.gmra.mxu0 %v2600
    %v2677 = vpop.f32.mrf.mxu0
    %v2678 = vadd.f32 0.0, %v2677
    %v2679 = vpop.f32.mrf.mxu0
    %v2680 = vadd.f32 0.0, %v2679
    %v2681 = vpop.f32.mrf.mxu0
    %v2682 = vpop.f32.mrf.mxu0
    %2683 = vdwg.mxu0
    %v2688 = vrot.slane %v2637, 6
    %v2689 = vrot.slane %v2639, 6
    %v2690 = vrot.slane %v2678, 6
    %v2691 = vrot.slane %v2680, 6
    %v2696 = vadd.f32 %v638, %v2688
    %v2697 = vadd.f32 %v640, %v2689
    %v2698 = vadd.f32 %v679, %v2690
    %v2699 = vadd.f32 %v681, %v2691
    %v2700 = vxor.u32 %v2696, 2147483648
    %v2701 = vmul.f32 %v2700, 1.442695
    %v2702 = vpow.pop %v2701
    %v2703 = vadd.f32 %v2702, 1.0
    %v2704 = vrcp.pop %v2703
    %v2705 = vmul.f32 1.0, %v2704
    %v2706 = vxor.u32 %v2697, 2147483648
    %v2707 = vmul.f32 %v2706, 1.442695
    %v2708 = vpow.pop %v2707
    %v2709 = vadd.f32 %v2708, 1.0
    %v2710 = vrcp.pop %v2709
    %v2711 = vmul.f32 1.0, %v2710
    %v2712 = vtanh.pop %v2698
    %v2713 = vxor.u32 %v2699, 2147483648
    %v2714 = vmul.f32 %v2713, 1.442695
    %v2715 = vpow.pop %v2714
    %v2716 = vadd.f32 %v2715, 1.0
    %v2717 = vrcp.pop %v2716
    %v2718 = vmul.f32 1.0, %v2717
    %v2720 = vrot.slane %v2444, 1
    %v2722 = vmul.f32 %v2711, %v2720
    %v2723 = vmul.f32 %v2705, %v2712
    %v2724 = vadd.f32 %v2722, %v2723
    %v2725 = vtanh.pop %v2724
    %v2726 = vmul.f32 %v2718, %v2725
    %v2727 = vmul.f32 %v2595, %v1594
    %v2728 = vsel %vm1885, %v2727, 0.0
    %2729 = vadd.xlane.f32.xlu0 %v2728
    %v2730 = vpop.xlane.xlu0 %2729
    %v2731 = vmul.f32 %v2726, %v1313
    %v2732 = vsel %vm1880, %v2731, 0.0
    %2733 = vadd.xlane.f32.xlu0 %v2732
    %v2734 = vpop.xlane.xlu0 %2733
    %v2735 = vlaneseq
    %v2736 = vshrl.u32 %v2735, 7
    %v2737 = vsub.s32 5, %v2736
    %v2738 = vrot.slane %v2730, %v2737
    %v2739 = vsel %vm1896, %v2738, 0.0
    %v2740 = vadd.f32 %v2466, %v2739
    %v2741 = vlaneseq
    %v2742 = vshrl.u32 %v2741, 7
    %v2743 = vsub.s32 2, %v2742
    %v2744 = vrot.slane %v2734, %v2743
    %v2745 = vsel %vm1889, %v2744, 0.0
    %v2746 = vadd.f32 %v2740, %v2745
    %v2747 = vpack.c.bf16 %v2595, %v2595
    %v2749 = vshrl.u32 %v2747, 16
    %v2751 = vrot.slane %v2749, 2
    %2753 = vmatprep.subr.bf16.mxu0 %v845
    %2754 = vmatpush1.bf16.msra.mxu0 %v844
    %2755 = vmatprep.subr.bf16.mxu0 %v841
    %2756 = vmatpush1.bf16.msra.mxu0 %v840
    %2757 = vmatprep.subr.bf16.mxu0 %v837
    %2758 = vmatpush1.bf16.msra.mxu0 %v836
    %2759 = vmatprep.subr.bf16.mxu0 %v833
    %2760 = vmatpush1.bf16.msra.mxu0 %v832
    %2761 = vmatprep.subr.bf16.mxu0 %v829
    %2762 = vmatpush1.bf16.msra.mxu0 %v828
    %2763 = vmatprep.subr.bf16.mxu0 %v825
    %2764 = vmatpush1.bf16.msra.mxu0 %v824
    %2765 = vmatprep.subr.bf16.mxu0 %v821
    %2766 = vmatpush1.bf16.msra.mxu0 %v820
    %2767 = vmatprep.subr.bf16.mxu0 %v817
    %2768 = vmatpush1.bf16.msra.mxu0 %v816
    %2769 = vmatprep.subr.bf16.mxu0 0
    %2770 = vmatpush2.bf16.msra.mxu0 0
    %2771 = vmatprep.subr.bf16.mxu0 0
    %2772 = vmatpush2.bf16.msra.mxu0 0
    %2773 = vmatprep.subr.bf16.mxu0 0
    %2774 = vmatpush2.bf16.msra.mxu0 0
    %2775 = vmatprep.subr.bf16.mxu0 0
    %2776 = vmatpush2.bf16.msra.mxu0 0
    %2777 = vmatprep.subr.bf16.mxu0 0
    %2778 = vmatpush2.bf16.msra.mxu0 0
    %2779 = vmatprep.subr.bf16.mxu0 0
    %2780 = vmatpush2.bf16.msra.mxu0 0
    %2781 = vmatprep.subr.bf16.mxu0 0
    %2782 = vmatpush2.bf16.msra.mxu0 0
    %2783 = vmatprep.subr.bf16.mxu0 0
    %2784 = vmatpush2.bf16.msra.mxu0 0
    %2785 = vmatprep.mubr.bf16.mxu0 0
    %2786 = vmatmul.mubr.bf16.gmra.mxu0 %v2751
    %v2787 = vpop.f32.mrf.mxu0
    %v2788 = vadd.f32 0.0, %v2787
    %v2789 = vpop.f32.mrf.mxu0
    %v2790 = vadd.f32 0.0, %v2789
    %v2791 = vpop.f32.mrf.mxu0
    %v2792 = vpop.f32.mrf.mxu0
    %2793 = vdwg.mxu0
    %2794 = vmatprep.subr.bf16.mxu0 %v847
    %2795 = vmatpush1.bf16.msra.mxu0 %v846
    %2796 = vmatprep.subr.bf16.mxu0 %v843
    %2797 = vmatpush1.bf16.msra.mxu0 %v842
    %2798 = vmatprep.subr.bf16.mxu0 %v839
    %2799 = vmatpush1.bf16.msra.mxu0 %v838
    %2800 = vmatprep.subr.bf16.mxu0 %v835
    %2801 = vmatpush1.bf16.msra.mxu0 %v834
    %2802 = vmatprep.subr.bf16.mxu0 %v831
    %2803 = vmatpush1.bf16.msra.mxu0 %v830
    %2804 = vmatprep.subr.bf16.mxu0 %v827
    %2805 = vmatpush1.bf16.msra.mxu0 %v826
    %2806 = vmatprep.subr.bf16.mxu0 %v823
    %2807 = vmatpush1.bf16.msra.mxu0 %v822
    %2808 = vmatprep.subr.bf16.mxu0 %v819
    %2809 = vmatpush1.bf16.msra.mxu0 %v818
    %2810 = vmatprep.subr.bf16.mxu0 0
    %2811 = vmatpush2.bf16.msra.mxu0 0
    %2812 = vmatprep.subr.bf16.mxu0 0
    %2813 = vmatpush2.bf16.msra.mxu0 0
    %2814 = vmatprep.subr.bf16.mxu0 0
    %2815 = vmatpush2.bf16.msra.mxu0 0
    %2816 = vmatprep.subr.bf16.mxu0 0
    %2817 = vmatpush2.bf16.msra.mxu0 0
    %2818 = vmatprep.subr.bf16.mxu0 0
    %2819 = vmatpush2.bf16.msra.mxu0 0
    %2820 = vmatprep.subr.bf16.mxu0 0
    %2821 = vmatpush2.bf16.msra.mxu0 0
    %2822 = vmatprep.subr.bf16.mxu0 0
    %2823 = vmatpush2.bf16.msra.mxu0 0
    %2824 = vmatprep.subr.bf16.mxu0 0
    %2825 = vmatpush2.bf16.msra.mxu0 0
    %2826 = vmatprep.mubr.bf16.mxu0 0
    %2827 = vmatmul.mubr.bf16.gmra.mxu0 %v2751
    %v2828 = vpop.f32.mrf.mxu0
    %v2829 = vadd.f32 0.0, %v2828
    %v2830 = vpop.f32.mrf.mxu0
    %v2831 = vadd.f32 0.0, %v2830
    %v2832 = vpop.f32.mrf.mxu0
    %v2833 = vpop.f32.mrf.mxu0
    %2834 = vdwg.mxu0
    %v2839 = vrot.slane %v2788, 2
    %v2840 = vrot.slane %v2790, 2
    %v2841 = vrot.slane %v2829, 2
    %v2842 = vrot.slane %v2831, 2
    %v2847 = vadd.f32 %v556, %v2839
    %v2848 = vadd.f32 %v558, %v2840
    %v2849 = vadd.f32 %v597, %v2841
    %v2850 = vadd.f32 %v599, %v2842
    %v2851 = vxor.u32 %v2847, 2147483648
    %v2852 = vmul.f32 %v2851, 1.442695
    %v2853 = vpow.pop %v2852
    %v2854 = vadd.f32 %v2853, 1.0
    %v2855 = vrcp.pop %v2854
    %v2856 = vmul.f32 1.0, %v2855
    %v2857 = vxor.u32 %v2848, 2147483648
    %v2858 = vmul.f32 %v2857, 1.442695
    %v2859 = vpow.pop %v2858
    %v2860 = vadd.f32 %v2859, 1.0
    %v2861 = vrcp.pop %v2860
    %v2862 = vmul.f32 1.0, %v2861
    %v2863 = vtanh.pop %v2849
    %v2864 = vxor.u32 %v2850, 2147483648
    %v2865 = vmul.f32 %v2864, 1.442695
    %v2866 = vpow.pop %v2865
    %v2867 = vadd.f32 %v2866, 1.0
    %v2868 = vrcp.pop %v2867
    %v2869 = vmul.f32 1.0, %v2868
    %v2871 = vrot.slane %v2593, 7
    %v2873 = vmul.f32 %v2862, %v2871
    %v2874 = vmul.f32 %v2856, %v2863
    %v2875 = vadd.f32 %v2873, %v2874
    %v2876 = vtanh.pop %v2875
    %v2877 = vmul.f32 %v2869, %v2876
    %v2878 = vpack.c.bf16 %v2726, %v2726
    %v2880 = vrot.slane %v2878, 1
    %2882 = vmatprep.subr.bf16.mxu0 %v1147
    %2883 = vmatpush1.bf16.msra.mxu0 %v1146
    %2884 = vmatprep.subr.bf16.mxu0 %v1143
    %2885 = vmatpush1.bf16.msra.mxu0 %v1142
    %2886 = vmatprep.subr.bf16.mxu0 %v1139
    %2887 = vmatpush1.bf16.msra.mxu0 %v1138
    %2888 = vmatprep.subr.bf16.mxu0 %v1135
    %2889 = vmatpush1.bf16.msra.mxu0 %v1134
    %2890 = vmatprep.subr.bf16.mxu0 %v1131
    %2891 = vmatpush1.bf16.msra.mxu0 %v1130
    %2892 = vmatprep.subr.bf16.mxu0 %v1127
    %2893 = vmatpush1.bf16.msra.mxu0 %v1126
    %2894 = vmatprep.subr.bf16.mxu0 %v1123
    %2895 = vmatpush1.bf16.msra.mxu0 %v1122
    %2896 = vmatprep.subr.bf16.mxu0 %v1119
    %2897 = vmatpush1.bf16.msra.mxu0 %v1118
    %2898 = vmatprep.subr.bf16.mxu0 0
    %2899 = vmatpush2.bf16.msra.mxu0 0
    %2900 = vmatprep.subr.bf16.mxu0 0
    %2901 = vmatpush2.bf16.msra.mxu0 0
    %2902 = vmatprep.subr.bf16.mxu0 0
    %2903 = vmatpush2.bf16.msra.mxu0 0
    %2904 = vmatprep.subr.bf16.mxu0 0
    %2905 = vmatpush2.bf16.msra.mxu0 0
    %2906 = vmatprep.subr.bf16.mxu0 0
    %2907 = vmatpush2.bf16.msra.mxu0 0
    %2908 = vmatprep.subr.bf16.mxu0 0
    %2909 = vmatpush2.bf16.msra.mxu0 0
    %2910 = vmatprep.subr.bf16.mxu0 0
    %2911 = vmatpush2.bf16.msra.mxu0 0
    %2912 = vmatprep.subr.bf16.mxu0 0
    %2913 = vmatpush2.bf16.msra.mxu0 0
    %2914 = vmatprep.mubr.bf16.mxu0 0
    %2915 = vmatmul.mubr.bf16.gmra.mxu0 %v2880
    %v2916 = vpop.f32.mrf.mxu0
    %v2917 = vadd.f32 0.0, %v2916
    %v2918 = vpop.f32.mrf.mxu0
    %v2919 = vadd.f32 0.0, %v2918
    %v2920 = vpop.f32.mrf.mxu0
    %v2921 = vpop.f32.mrf.mxu0
    %2922 = vdwg.mxu0
    %2923 = vmatprep.subr.bf16.mxu0 %v1149
    %2924 = vmatpush1.bf16.msra.mxu0 %v1148
    %2925 = vmatprep.subr.bf16.mxu0 %v1145
    %2926 = vmatpush1.bf16.msra.mxu0 %v1144
    %2927 = vmatprep.subr.bf16.mxu0 %v1141
    %2928 = vmatpush1.bf16.msra.mxu0 %v1140
    %2929 = vmatprep.subr.bf16.mxu0 %v1137
    %2930 = vmatpush1.bf16.msra.mxu0 %v1136
    %2931 = vmatprep.subr.bf16.mxu0 %v1133
    %2932 = vmatpush1.bf16.msra.mxu0 %v1132
    %2933 = vmatprep.subr.bf16.mxu0 %v1129
    %2934 = vmatpush1.bf16.msra.mxu0 %v1128
    %2935 = vmatprep.subr.bf16.mxu0 %v1125
    %2936 = vmatpush1.bf16.msra.mxu0 %v1124
    %2937 = vmatprep.subr.bf16.mxu0 %v1121
    %2938 = vmatpush1.bf16.msra.mxu0 %v1120
    %2939 = vmatprep.subr.bf16.mxu0 0
    %2940 = vmatpush2.bf16.msra.mxu0 0
    %2941 = vmatprep.subr.bf16.mxu0 0
    %2942 = vmatpush2.bf16.msra.mxu0 0
    %2943 = vmatprep.subr.bf16.mxu0 0
    %2944 = vmatpush2.bf16.msra.mxu0 0
    %2945 = vmatprep.subr.bf16.mxu0 0
    %2946 = vmatpush2.bf16.msra.mxu0 0
    %2947 = vmatprep.subr.bf16.mxu0 0
    %2948 = vmatpush2.bf16.msra.mxu0 0
    %2949 = vmatprep.subr.bf16.mxu0 0
    %2950 = vmatpush2.bf16.msra.mxu0 0
    %2951 = vmatprep.subr.bf16.mxu0 0
    %2952 = vmatpush2.bf16.msra.mxu0 0
    %2953 = vmatprep.subr.bf16.mxu0 0
    %2954 = vmatpush2.bf16.msra.mxu0 0
    %2955 = vmatprep.mubr.bf16.mxu0 0
    %2956 = vmatmul.mubr.bf16.gmra.mxu0 %v2880
    %v2957 = vpop.f32.mrf.mxu0
    %v2958 = vadd.f32 0.0, %v2957
    %v2959 = vpop.f32.mrf.mxu0
    %v2960 = vadd.f32 0.0, %v2959
    %v2961 = vpop.f32.mrf.mxu0
    %v2962 = vpop.f32.mrf.mxu0
    %2963 = vdwg.mxu0
    %v2968 = vrot.slane %v2917, 7
    %v2969 = vrot.slane %v2919, 7
    %v2970 = vrot.slane %v2958, 7
    %v2971 = vrot.slane %v2960, 7
    %v2976 = vadd.f32 %v638, %v2968
    %v2977 = vadd.f32 %v640, %v2969
    %v2978 = vadd.f32 %v679, %v2970
    %v2979 = vadd.f32 %v681, %v2971
    %v2980 = vxor.u32 %v2976, 2147483648
    %v2981 = vmul.f32 %v2980, 1.442695
    %v2982 = vpow.pop %v2981
    %v2983 = vadd.f32 %v2982, 1.0
    %v2984 = vrcp.pop %v2983
    %v2985 = vmul.f32 1.0, %v2984
    %v2986 = vxor.u32 %v2977, 2147483648
    %v2987 = vmul.f32 %v2986, 1.442695
    %v2988 = vpow.pop %v2987
    %v2989 = vadd.f32 %v2988, 1.0
    %v2990 = vrcp.pop %v2989
    %v2991 = vmul.f32 1.0, %v2990
    %v2992 = vtanh.pop %v2978
    %v2993 = vxor.u32 %v2979, 2147483648
    %v2994 = vmul.f32 %v2993, 1.442695
    %v2995 = vpow.pop %v2994
    %v2996 = vadd.f32 %v2995, 1.0
    %v2997 = vrcp.pop %v2996
    %v2998 = vmul.f32 1.0, %v2997
    %v3000 = vrot.slane %v2724, 1
    %v3002 = vmul.f32 %v2991, %v3000
    %v3003 = vmul.f32 %v2985, %v2992
    %v3004 = vadd.f32 %v3002, %v3003
    %v3005 = vtanh.pop %v3004
    %v3006 = vmul.f32 %v2998, %v3005
    %v3007 = vmul.f32 %v2877, %v1594
    %v3008 = vsel %vm1602, %v3007, 0.0
    %3009 = vadd.xlane.f32.xlu0 %v3008
    %v3010 = vpop.xlane.xlu0 %3009
    %v3011 = vmul.f32 %v3006, %v1313
    %v3012 = vsel %vm1597, %v3011, 0.0
    %3013 = vadd.xlane.f32.xlu0 %v3012
    %v3014 = vpop.xlane.xlu0 %3013
    %v3015 = vlaneseq
    %v3016 = vshrl.u32 %v3015, 7
    %v3017 = vsub.s32 6, %v3016
    %v3018 = vrot.slane %v3010, %v3017
    %v3019 = vsel %vm1613, %v3018, 0.0
    %v3020 = vadd.f32 %v2746, %v3019
    %v3021 = vlaneseq
    %v3022 = vshrl.u32 %v3021, 7
    %v3023 = vsub.s32 1, %v3022
    %v3024 = vrot.slane %v3014, %v3023
    %v3025 = vsel %vm1606, %v3024, 0.0
    %v3026 = vadd.f32 %v3020, %v3025
    %v3027 = vpack.c.bf16 %v2877, %v2877
    %v3029 = vrot.slane %v3027, 3
    %3031 = vmatprep.subr.bf16.mxu0 %v845
    %3032 = vmatpush1.bf16.msra.mxu0 %v844
    %3033 = vmatprep.subr.bf16.mxu0 %v841
    %3034 = vmatpush1.bf16.msra.mxu0 %v840
    %3035 = vmatprep.subr.bf16.mxu0 %v837
    %3036 = vmatpush1.bf16.msra.mxu0 %v836
    %3037 = vmatprep.subr.bf16.mxu0 %v833
    %3038 = vmatpush1.bf16.msra.mxu0 %v832
    %3039 = vmatprep.subr.bf16.mxu0 %v829
    %3040 = vmatpush1.bf16.msra.mxu0 %v828
    %3041 = vmatprep.subr.bf16.mxu0 %v825
    %3042 = vmatpush1.bf16.msra.mxu0 %v824
    %3043 = vmatprep.subr.bf16.mxu0 %v821
    %3044 = vmatpush1.bf16.msra.mxu0 %v820
    %3045 = vmatprep.subr.bf16.mxu0 %v817
    %3046 = vmatpush1.bf16.msra.mxu0 %v816
    %3047 = vmatprep.subr.bf16.mxu0 0
    %3048 = vmatpush2.bf16.msra.mxu0 0
    %3049 = vmatprep.subr.bf16.mxu0 0
    %3050 = vmatpush2.bf16.msra.mxu0 0
    %3051 = vmatprep.subr.bf16.mxu0 0
    %3052 = vmatpush2.bf16.msra.mxu0 0
    %3053 = vmatprep.subr.bf16.mxu0 0
    %3054 = vmatpush2.bf16.msra.mxu0 0
    %3055 = vmatprep.subr.bf16.mxu0 0
    %3056 = vmatpush2.bf16.msra.mxu0 0
    %3057 = vmatprep.subr.bf16.mxu0 0
    %3058 = vmatpush2.bf16.msra.mxu0 0
    %3059 = vmatprep.subr.bf16.mxu0 0
    %3060 = vmatpush2.bf16.msra.mxu0 0
    %3061 = vmatprep.subr.bf16.mxu0 0
    %3062 = vmatpush2.bf16.msra.mxu0 0
    %3063 = vmatprep.mubr.bf16.mxu0 0
    %3064 = vmatmul.mubr.bf16.gmra.mxu0 %v3029
    %v3065 = vpop.f32.mrf.mxu0
    %v3066 = vadd.f32 0.0, %v3065
    %v3067 = vpop.f32.mrf.mxu0
    %v3068 = vadd.f32 0.0, %v3067
    %v3069 = vpop.f32.mrf.mxu0
    %v3070 = vpop.f32.mrf.mxu0
    %3071 = vdwg.mxu0
    %3072 = vmatprep.subr.bf16.mxu0 %v847
    %3073 = vmatpush1.bf16.msra.mxu0 %v846
    %3074 = vmatprep.subr.bf16.mxu0 %v843
    %3075 = vmatpush1.bf16.msra.mxu0 %v842
    %3076 = vmatprep.subr.bf16.mxu0 %v839
    %3077 = vmatpush1.bf16.msra.mxu0 %v838
    %3078 = vmatprep.subr.bf16.mxu0 %v835
    %3079 = vmatpush1.bf16.msra.mxu0 %v834
    %3080 = vmatprep.subr.bf16.mxu0 %v831
    %3081 = vmatpush1.bf16.msra.mxu0 %v830
    %3082 = vmatprep.subr.bf16.mxu0 %v827
    %3083 = vmatpush1.bf16.msra.mxu0 %v826
    %3084 = vmatprep.subr.bf16.mxu0 %v823
    %3085 = vmatpush1.bf16.msra.mxu0 %v822
    %3086 = vmatprep.subr.bf16.mxu0 %v819
    %3087 = vmatpush1.bf16.msra.mxu0 %v818
    %3088 = vmatprep.subr.bf16.mxu0 0
    %3089 = vmatpush2.bf16.msra.mxu0 0
    %3090 = vmatprep.subr.bf16.mxu0 0
    %3091 = vmatpush2.bf16.msra.mxu0 0
    %3092 = vmatprep.subr.bf16.mxu0 0
    %3093 = vmatpush2.bf16.msra.mxu0 0
    %3094 = vmatprep.subr.bf16.mxu0 0
    %3095 = vmatpush2.bf16.msra.mxu0 0
    %3096 = vmatprep.subr.bf16.mxu0 0
    %3097 = vmatpush2.bf16.msra.mxu0 0
    %3098 = vmatprep.subr.bf16.mxu0 0
    %3099 = vmatpush2.bf16.msra.mxu0 0
    %3100 = vmatprep.subr.bf16.mxu0 0
    %3101 = vmatpush2.bf16.msra.mxu0 0
    %3102 = vmatprep.subr.bf16.mxu0 0
    %3103 = vmatpush2.bf16.msra.mxu0 0
    %3104 = vmatprep.mubr.bf16.mxu0 0
    %3105 = vmatmul.mubr.bf16.gmra.mxu0 %v3029
    %v3106 = vpop.f32.mrf.mxu0
    %v3107 = vadd.f32 0.0, %v3106
    %v3108 = vpop.f32.mrf.mxu0
    %v3109 = vadd.f32 0.0, %v3108
    %v3110 = vpop.f32.mrf.mxu0
    %v3111 = vpop.f32.mrf.mxu0
    %3112 = vdwg.mxu0
    %v3117 = vrot.slane %v3066, 1
    %v3118 = vrot.slane %v3068, 1
    %v3119 = vrot.slane %v3107, 1
    %v3120 = vrot.slane %v3109, 1
    %v3125 = vadd.f32 %v556, %v3117
    %v3126 = vadd.f32 %v558, %v3118
    %v3127 = vadd.f32 %v597, %v3119
    %v3128 = vadd.f32 %v599, %v3120
    %v3129 = vxor.u32 %v3125, 2147483648
    %v3130 = vmul.f32 %v3129, 1.442695
    %v3131 = vpow.pop %v3130
    %v3132 = vadd.f32 %v3131, 1.0
    %v3133 = vrcp.pop %v3132
    %v3134 = vmul.f32 1.0, %v3133
    %v3135 = vxor.u32 %v3126, 2147483648
    %v3136 = vmul.f32 %v3135, 1.442695
    %v3137 = vpow.pop %v3136
    %v3138 = vadd.f32 %v3137, 1.0
    %v3139 = vrcp.pop %v3138
    %v3140 = vmul.f32 1.0, %v3139
    %v3141 = vtanh.pop %v3127
    %v3142 = vxor.u32 %v3128, 2147483648
    %v3143 = vmul.f32 %v3142, 1.442695
    %v3144 = vpow.pop %v3143
    %v3145 = vadd.f32 %v3144, 1.0
    %v3146 = vrcp.pop %v3145
    %v3147 = vmul.f32 1.0, %v3146
    %v3149 = vrot.slane %v2875, 7
    %v3151 = vmul.f32 %v3140, %v3149
    %v3152 = vmul.f32 %v3134, %v3141
    %v3153 = vadd.f32 %v3151, %v3152
    %v3154 = vtanh.pop %v3153
    %v3155 = vmul.f32 %v3147, %v3154
    %v3156 = vpack.c.bf16 %v3006, %v3006
    %v3158 = vshrl.u32 %v3156, 16
    %3161 = vmatprep.subr.bf16.mxu0 %v1147
    %3162 = vmatpush1.bf16.msra.mxu0 %v1146
    %3163 = vmatprep.subr.bf16.mxu0 %v1143
    %3164 = vmatpush1.bf16.msra.mxu0 %v1142
    %3165 = vmatprep.subr.bf16.mxu0 %v1139
    %3166 = vmatpush1.bf16.msra.mxu0 %v1138
    %3167 = vmatprep.subr.bf16.mxu0 %v1135
    %3168 = vmatpush1.bf16.msra.mxu0 %v1134
    %3169 = vmatprep.subr.bf16.mxu0 %v1131
    %3170 = vmatpush1.bf16.msra.mxu0 %v1130
    %3171 = vmatprep.subr.bf16.mxu0 %v1127
    %3172 = vmatpush1.bf16.msra.mxu0 %v1126
    %3173 = vmatprep.subr.bf16.mxu0 %v1123
    %3174 = vmatpush1.bf16.msra.mxu0 %v1122
    %3175 = vmatprep.subr.bf16.mxu0 %v1119
    %3176 = vmatpush1.bf16.msra.mxu0 %v1118
    %3177 = vmatprep.subr.bf16.mxu0 0
    %3178 = vmatpush2.bf16.msra.mxu0 0
    %3179 = vmatprep.subr.bf16.mxu0 0
    %3180 = vmatpush2.bf16.msra.mxu0 0
    %3181 = vmatprep.subr.bf16.mxu0 0
    %3182 = vmatpush2.bf16.msra.mxu0 0
    %3183 = vmatprep.subr.bf16.mxu0 0
    %3184 = vmatpush2.bf16.msra.mxu0 0
    %3185 = vmatprep.subr.bf16.mxu0 0
    %3186 = vmatpush2.bf16.msra.mxu0 0
    %3187 = vmatprep.subr.bf16.mxu0 0
    %3188 = vmatpush2.bf16.msra.mxu0 0
    %3189 = vmatprep.subr.bf16.mxu0 0
    %3190 = vmatpush2.bf16.msra.mxu0 0
    %3191 = vmatprep.subr.bf16.mxu0 0
    %3192 = vmatpush2.bf16.msra.mxu0 0
    %3193 = vmatprep.mubr.bf16.mxu0 0
    %3194 = vmatmul.mubr.bf16.gmra.mxu0 %v3158
    %v3195 = vpop.f32.mrf.mxu0
    %v3196 = vadd.f32 0.0, %v3195
    %v3197 = vpop.f32.mrf.mxu0
    %v3198 = vadd.f32 0.0, %v3197
    %v3199 = vpop.f32.mrf.mxu0
    %v3200 = vpop.f32.mrf.mxu0
    %3201 = vdwg.mxu0
    %3202 = vmatprep.subr.bf16.mxu0 %v1149
    %3203 = vmatpush1.bf16.msra.mxu0 %v1148
    %3204 = vmatprep.subr.bf16.mxu0 %v1145
    %3205 = vmatpush1.bf16.msra.mxu0 %v1144
    %3206 = vmatprep.subr.bf16.mxu0 %v1141
    %3207 = vmatpush1.bf16.msra.mxu0 %v1140
    %3208 = vmatprep.subr.bf16.mxu0 %v1137
    %3209 = vmatpush1.bf16.msra.mxu0 %v1136
    %3210 = vmatprep.subr.bf16.mxu0 %v1133
    %3211 = vmatpush1.bf16.msra.mxu0 %v1132
    %3212 = vmatprep.subr.bf16.mxu0 %v1129
    %3213 = vmatpush1.bf16.msra.mxu0 %v1128
    %3214 = vmatprep.subr.bf16.mxu0 %v1125
    %3215 = vmatpush1.bf16.msra.mxu0 %v1124
    %3216 = vmatprep.subr.bf16.mxu0 %v1121
    %3217 = vmatpush1.bf16.msra.mxu0 %v1120
    %3218 = vmatprep.subr.bf16.mxu0 0
    %3219 = vmatpush2.bf16.msra.mxu0 0
    %3220 = vmatprep.subr.bf16.mxu0 0
    %3221 = vmatpush2.bf16.msra.mxu0 0
    %3222 = vmatprep.subr.bf16.mxu0 0
    %3223 = vmatpush2.bf16.msra.mxu0 0
    %3224 = vmatprep.subr.bf16.mxu0 0
    %3225 = vmatpush2.bf16.msra.mxu0 0
    %3226 = vmatprep.subr.bf16.mxu0 0
    %3227 = vmatpush2.bf16.msra.mxu0 0
    %3228 = vmatprep.subr.bf16.mxu0 0
    %3229 = vmatpush2.bf16.msra.mxu0 0
    %3230 = vmatprep.subr.bf16.mxu0 0
    %3231 = vmatpush2.bf16.msra.mxu0 0
    %3232 = vmatprep.subr.bf16.mxu0 0
    %3233 = vmatpush2.bf16.msra.mxu0 0
    %3234 = vmatprep.mubr.bf16.mxu0 0
    %3235 = vmatmul.mubr.bf16.gmra.mxu0 %v3158
    %v3236 = vpop.f32.mrf.mxu0
    %v3237 = vadd.f32 0.0, %v3236
    %v3238 = vpop.f32.mrf.mxu0
    %v3239 = vadd.f32 0.0, %v3238
    %v3240 = vpop.f32.mrf.mxu0
    %v3241 = vpop.f32.mrf.mxu0
    %3242 = vdwg.mxu0
    %v3243 = vadd.f32 %v638, %v3196
    %v3244 = vadd.f32 %v640, %v3198
    %v3245 = vadd.f32 %v679, %v3237
    %v3246 = vadd.f32 %v681, %v3239
    %v3247 = vxor.u32 %v3243, 2147483648
    %v3248 = vmul.f32 %v3247, 1.442695
    %v3249 = vpow.pop %v3248
    %v3250 = vadd.f32 %v3249, 1.0
    %v3251 = vrcp.pop %v3250
    %v3252 = vmul.f32 1.0, %v3251
    %v3253 = vxor.u32 %v3244, 2147483648
    %v3254 = vmul.f32 %v3253, 1.442695
    %v3255 = vpow.pop %v3254
    %v3256 = vadd.f32 %v3255, 1.0
    %v3257 = vrcp.pop %v3256
    %v3258 = vmul.f32 1.0, %v3257
    %v3259 = vtanh.pop %v3245
    %v3260 = vxor.u32 %v3246, 2147483648
    %v3261 = vmul.f32 %v3260, 1.442695
    %v3262 = vpow.pop %v3261
    %v3263 = vadd.f32 %v3262, 1.0
    %v3264 = vrcp.pop %v3263
    %v3265 = vmul.f32 1.0, %v3264
    %v3267 = vrot.slane %v3004, 1
    %v3269 = vmul.f32 %v3258, %v3267
    %v3270 = vmul.f32 %v3252, %v3259
    %v3271 = vadd.f32 %v3269, %v3270
    %v3272 = vtanh.pop %v3271
    %v3273 = vmul.f32 %v3265, %v3272
    %v3274 = vmul.f32 %v3155, %v1594
    %v3275 = vsel %vm1316, %v3274, 0.0
    %3276 = vadd.xlane.f32.xlu0 %v3275
    %v3277 = vpop.xlane.xlu0 %3276
    %v3278 = vmul.f32 %v3273, %v1313
    %v3279 = vsel %vm1305, %v3278, 0.0
    %3280 = vadd.xlane.f32.xlu0 %v3279
    %v3281 = vpop.xlane.xlu0 %3280
    %v3282 = vlaneseq
    %v3283 = vshrl.u32 %v3282, 7
    %v3284 = vsub.s32 7, %v3283
    %v3285 = vrot.slane %v3277, %v3284
    %v3286 = vsel %vm1327, %v3285, 0.0
    %v3287 = vadd.f32 %v3026, %v3286
    %v3288 = vlaneseq
    %v3289 = vshrl.u32 %v3288, 7
    %v3290 = vsub.s32 0, %v3289
    %v3291 = vrot.slane %v3281, %v3290
    %v3292 = vsel %vm1320, %v3291, 0.0
    %v3293 = vadd.f32 %v3287, %v3292
    %v3294 = vld [vmem:[#allocation2] sm:$0x1]
    %v3296 = vlaneseq
    %v3297 = vshrl.u32 %v3296, 7
    %v3298 = vsub.s32 0, %v3297
    %v3299 = vrot.slane %v3294, %v3298
    %v3301 = vadd.f32 %v3293, %v3299
    %v3302 = vxor.u32 %v3301, 2147483648
    %v3303 = vmul.f32 %v3302, 1.442695
    %v3304 = vpow.pop %v3303
    %v3305 = vadd.f32 %v3304, 1.0
    %v3306 = vrcp.pop %v3305
    %v3307 = vmul.f32 1.0, %v3306
    %vm3308 = vcmask 7168
    %3309 = vst.msk [vmem:[%s7] sm:$0xff] %vm3308, %v3307
    // Predicated region
    $region50: #{tpu_custom_call.1} parent=1 // pred_check
      _
    $region51: #{tpu_custom_call.1} parent=1 // pred_check_branch
      %3311 = sbr.rel (0) target = $region53
    $region52: #{tpu_custom_call.1} parent=1 // pred_region
      _
    $region53: #{tpu_custom_call.1} parent=1 // pred_fallthru
      _
    // Predicated region
    $region54: #{tpu_custom_call.1} parent=1 // pred_check
      _
    $region55: #{tpu_custom_call.1} parent=1 // pred_check_branch
      %3313 = sbr.rel (0) target = $region57
    $region56: #{tpu_custom_call.1} parent=1 // pred_region
      _
    $region57: #{tpu_custom_call.1} parent=1 // pred_fallthru
      _
    %3314 = vsyncpa [#allocation4], 1
    %3315 = vsyncpa [#allocation6], 1
    %3316 = vsyncpa [#allocation9], 1

</llo_original>
